<compile_context>
chip_gen: v7x
topology: tpu7x:2x2x1
jax: 0.10.0
libtpu: 0.0.40
codegen_flags: <defaults>
</compile_context>

<pallas_src>
import functools

import jax
import jax.numpy as jnp
from jax.experimental import pallas as pl
from jax.experimental.pallas import tpu as pltpu


# ----------------------------------------------------------------------------
# Model configuration (synthetic mini-BERT backbone; all hidden dims lane-dense)
# ----------------------------------------------------------------------------
VOCAB = 100
MAX_POS = 16
TYPE_VOCAB = 2
HIDDEN = 128        # backbone hidden size (multiple of 128 -> lane-dense)
NUM_LAYERS = 2
NUM_HEADS = 2       # per-head dim = 64
INTERMEDIATE = 512  # FFN intermediate size
DIM = 512           # VisnLangModel output dim (module default dim=512)
MLP_HIDDEN = 512    # hardcoded 512 * len(layers) in the reference module
LAYERS = (-1,)      # `layers` argument of VisnLangModel


# ----------------------------------------------------------------------------
# Single fused kernel: BERT backbone + tanh pooler + MLP head + L2 norm
# Grid is over the batch; each grid step processes one batch element (S rows).
# ----------------------------------------------------------------------------
def _visn_lang_kernel(
    emb_ref, mask_ref,
    eg_ref, eb_ref,
    wqkv_ref, bqkv_ref, wo_ref, bo_ref,
    wi_ref, bi_ref, wf_ref, bf_ref,
    g1_ref, be1_ref, g2_ref, be2_ref,
    pw_ref, pb_ref,
    w1_ref, b1_ref, w2_ref, b2_ref, w3_ref, b3_ref,
    h0_ref, hs_ref, pooled_ref, x_ref,
    *, S, H, NH, L):
  f32 = jnp.float32
  bf16 = jnp.bfloat16
  HD = H // NH
  scale = 1.0 / (float(HD) ** 0.5)

  def layer_norm(x, g, b):
    mu = jnp.mean(x, axis=-1, keepdims=True)
    var = jnp.mean(jnp.square(x - mu), axis=-1, keepdims=True)
    return (x - mu) * jax.lax.rsqrt(var + 1e-12) * g + b

  # --- embedding LayerNorm (hidden_states[0]); gathered embedding sum is input ---
  h = layer_norm(emb_ref[...], eg_ref[...], eb_ref[...])           # [S, H] f32
  h0_ref[...] = h.astype(h0_ref.dtype)

  # Hoisted once (not per layer / per head): additive mask, broadcasts to [NH,S,S].
  mask_b = mask_ref[...]                                           # [1, 1, S] f32

  def layer_body(li, h):
    # --- self attention: fused QKV projection (one MXU matmul) ---
    h_bf = h.astype(bf16)
    qkv = jnp.dot(h_bf, wqkv_ref[li], preferred_element_type=f32) + bqkv_ref[li]  # [S,3H]
    qkv_bf = qkv.astype(bf16)
    # 128-lane-aligned slices; heads handled batched via reshape (no per-head loop).
    q = qkv_bf[:, 0:H].reshape(S, NH, HD)
    k = qkv_bf[:, H:2 * H].reshape(S, NH, HD)
    v = qkv_bf[:, 2 * H:3 * H].reshape(S, NH, HD)
    s = jnp.einsum("qhd,khd->hqk", q, k, preferred_element_type=f32)   # [NH,S,S] f32
    s = s * scale + mask_b
    # numerically-stable softmax in f32; reciprocal goes to the EUP slot
    s_max = jnp.max(s, axis=-1, keepdims=True)
    e = jnp.exp(s - s_max)
    p = e * pl.reciprocal(jnp.sum(e, axis=-1, keepdims=True), approx=True)
    ctx = jnp.einsum("hqk,khd->qhd", p.astype(bf16), v,
                     preferred_element_type=f32)                       # [S,NH,HD] f32
    attn = jnp.dot(ctx.reshape(S, H).astype(bf16), wo_ref[li],
                   preferred_element_type=f32) + bo_ref[li]
    h = layer_norm(h + attn, g1_ref[li], be1_ref[li])

    # --- feed-forward ---
    inter = jnp.dot(h.astype(bf16), wi_ref[li],
                    preferred_element_type=f32) + bi_ref[li]
    # TODO(synk): HF BERT uses exact erf GELU; the tanh approximation is used here.
    inter = jax.nn.gelu(inter, approximate=True)
    ffn = jnp.dot(inter.astype(bf16), wf_ref[li],
                  preferred_element_type=f32) + bf_ref[li]
    h = layer_norm(h + ffn, g2_ref[li], be2_ref[li])
    hs_ref[li] = h.astype(hs_ref.dtype)                               # hidden_states[li+1]
    return h

  h = jax.lax.fori_loop(0, L, layer_body, h)

  # --- tanh pooler on the [CLS] (token 0) row; final h cast to bf16 once and
  #     reused by both the pooler and the fused MLP head ---
  h_bf = h.astype(bf16)
  pooled = jnp.tanh(jnp.dot(h_bf[0:1, :], pw_ref[...],
                            preferred_element_type=f32) + pb_ref[...])  # [1, H]
  pooled_ref[...] = pooled.reshape(1, 1, H).astype(pooled_ref.dtype)

  # --- VisnLangModel head fused in VMEM (layers == (-1,): head input is h) ---
  # Linear -> ReLU -> (Dropout=identity) -> Linear -> ReLU -> (Dropout) -> Linear -> L2
  y = jnp.dot(h_bf, w1_ref[...], preferred_element_type=f32) + b1_ref[...]
  y = jnp.maximum(y, 0.0)
  y = jnp.dot(y.astype(bf16), w2_ref[...], preferred_element_type=f32) + b2_ref[...]
  y = jnp.maximum(y, 0.0)
  y = jnp.dot(y.astype(bf16), w3_ref[...], preferred_element_type=f32) + b3_ref[...]
  # x = x / x.norm(2, dim=-1, keepdim=True)  -- rsqrt (EUP) + eps, no divide
  inv = jax.lax.rsqrt(jnp.sum(y * y, axis=-1, keepdims=True) + 1e-12)
  x_ref[...] = (y * inv).astype(x_ref.dtype)


def pallas_visn_lang(params, emb_sum, ext_mask3):
  """emb_sum: [B*S, H] f32 (word+pos+type), ext_mask3: [B, 1, S] f32 additive mask."""
  B, _, S = ext_mask3.shape
  H, L, NH = HIDDEN, NUM_LAYERS, NUM_HEADS
  kernel = functools.partial(_visn_lang_kernel, S=S, H=H, NH=NH, L=L)

  weights = (
      params["emb_ln_g"].reshape(1, H), params["emb_ln_b"].reshape(1, H),
      params["wqkv"], params["bqkv"], params["wo"], params["bo"],
      params["wi"], params["bi"], params["wf"], params["bf"],
      params["ln1_g"], params["ln1_b"], params["ln2_g"], params["ln2_b"],
      params["pooler_w"], params["pooler_b"],
      params["mlp_w1"], params["mlp_b1"].reshape(1, -1),
      params["mlp_w2"], params["mlp_b2"].reshape(1, -1),
      params["mlp_w3"], params["mlp_b3"].reshape(1, -1),
  )

  def const_spec(a):
    # Whole-array block, same block index at every grid step -> DMA'd once.
    zeros = (0,) * a.ndim
    return pl.BlockSpec(a.shape, lambda b, _z=zeros: _z)

  in_specs = (
      [pl.BlockSpec((S, H), lambda b: (b, 0)),          # emb rows of batch element b
       pl.BlockSpec((1, 1, S), lambda b: (b, 0, 0))]    # additive mask of element b
      + [const_spec(w) for w in weights]
  )

  out_shape = (
      jax.ShapeDtypeStruct((B * S, H), jnp.float32),    # hidden_states[0] (emb LN)
      jax.ShapeDtypeStruct((L, B * S, H), jnp.float32), # hidden_states[1..L]
      jax.ShapeDtypeStruct((B, 1, H), jnp.float32),     # pooled_output
      jax.ShapeDtypeStruct((B * S, DIM), jnp.float32),  # MLP head + L2-norm output
  )
  out_specs = (
      pl.BlockSpec((S, H), lambda b: (b, 0)),
      pl.BlockSpec((L, S, H), lambda b: (0, b, 0)),
      pl.BlockSpec((1, 1, H), lambda b: (b, 0, 0)),
      pl.BlockSpec((S, DIM), lambda b: (b, 0)),
  )
  return pl.pallas_call(
      kernel,
      out_shape=out_shape,
      grid=(B,),
      in_specs=in_specs,
      out_specs=out_specs,
      # "parallel" over the batch -> shards across v7x's 2 TensorCores.
      # At real BERT sizes: add a layer grid axis with BlockSpecs over the
      # stacked [L,...] weights (pipeline_mode=pl.Buffered(2)) and set
      # vmem_limit_bytes; unnecessary at these toy dims (<2 MiB of weights).
      compiler_params=pltpu.CompilerParams(dimension_semantics=("parallel",)),
  )(emb_sum, ext_mask3, *weights)


# ----------------------------------------------------------------------------
# Synthetic mini-BERT parameters (deterministic; matmul weights stored in bf16)
# ----------------------------------------------------------------------------
def init_params(key):
  ks = jax.random.split(key, 12)
  H, I, L = HIDDEN, INTERMEDIATE, NUM_LAYERS

  def w(k, *shape):
    return 0.02 * jax.random.normal(k, shape, jnp.float32)

  return {
      "word_emb": w(ks[0], VOCAB, H),
      "pos_emb": w(ks[1], MAX_POS, H),
      "type_emb": w(ks[2], TYPE_VOCAB, H),
      "emb_ln_g": jnp.ones((H,), jnp.float32),
      "emb_ln_b": jnp.zeros((H,), jnp.float32),
      # stacked per-layer encoder weights; MXU operands in bf16, biases/LN in f32
      "wqkv": w(ks[3], L, H, 3 * H).astype(jnp.bfloat16),   # Wq|Wk|Wv fused
      "bqkv": jnp.zeros((L, 1, 3 * H), jnp.float32),
      "wo": w(ks[4], L, H, H).astype(jnp.bfloat16),
      "bo": jnp.zeros((L, 1, H), jnp.float32),
      "wi": w(ks[5], L, H, I).astype(jnp.bfloat16),
      "bi": jnp.zeros((L, 1, I), jnp.float32),
      "wf": w(ks[6], L, I, H).astype(jnp.bfloat16),
      "bf": jnp.zeros((L, 1, H), jnp.float32),
      "ln1_g": jnp.ones((L, 1, H), jnp.float32),
      "ln1_b": jnp.zeros((L, 1, H), jnp.float32),
      "ln2_g": jnp.ones((L, 1, H), jnp.float32),
      "ln2_b": jnp.zeros((L, 1, H), jnp.float32),
      "pooler_w": w(ks[7], H, H).astype(jnp.bfloat16),
      "pooler_b": jnp.zeros((1, H), jnp.float32),
      # VisnLangModel MLP head:
      #   Linear(H*len(layers), 512*len(layers)) / Linear(512*len(layers), 512)
      #   / Linear(512, dim)
      "mlp_w1": w(ks[8], H * len(LAYERS), MLP_HIDDEN * len(LAYERS)).astype(jnp.bfloat16),
      "mlp_b1": jnp.zeros((MLP_HIDDEN * len(LAYERS),), jnp.float32),
      "mlp_w2": w(ks[9], MLP_HIDDEN * len(LAYERS), MLP_HIDDEN).astype(jnp.bfloat16),
      "mlp_b2": jnp.zeros((MLP_HIDDEN,), jnp.float32),
      "mlp_w3": w(ks[10], MLP_HIDDEN, DIM).astype(jnp.bfloat16),
      "mlp_b3": jnp.zeros((DIM,), jnp.float32),
  }


# ----------------------------------------------------------------------------
# VisnLangModel.forward
# ----------------------------------------------------------------------------
def visn_lang_forward(params, input_ids, attention_mask, token_type_ids):
  B, S = input_ids.shape
  H, L = HIDDEN, NUM_LAYERS
  # TODO(synk): the fused head assumes layers=(-1,) (the module default); for
  # multi-layer concatenation the head input would need the stacked hidden states.
  assert LAYERS == (-1,)

  # Embedding gathers + BERT-style extended additive mask (plain-JAX glue).
  positions = jnp.arange(S)[None, :]
  emb_sum = (params["word_emb"][input_ids]
             + params["pos_emb"][positions]
             + params["type_emb"][token_type_ids]).reshape(B * S, H)
  ext_mask3 = ((1.0 - attention_mask.astype(jnp.float32)) * -10000.0).reshape(B, 1, S)

  # --- single fused Pallas kernel: backbone + pooler + MLP head + L2 norm ---
  h0, hs, pooled3, x2d = pallas_visn_lang(params, emb_sum, ext_mask3)

  output = hs[L - 1].reshape(B, S, H)                       # last-layer hidden states
  hidden_states = (h0.reshape(B, S, H),) + tuple(
      hs[i].reshape(B, S, H) for i in range(L))
  pooled_output = pooled3.reshape(B, H)
  x = x2d.reshape(B, S, DIM)

  lang_visn_embedding = jnp.concatenate((output, x), axis=-1)               # [B,S,H+DIM]
  lang_visn_pooled_output = jnp.concatenate((pooled_output, x[:, 0]), axis=-1)  # [B,H+DIM]

  # new_bert_output[0] / [1] replaced, rest (hidden_states) passed through.
  return (lang_visn_embedding, lang_visn_pooled_output, hidden_states)


if __name__ == "__main__":
  key = jax.random.PRNGKey(0)
  k_params, k_ids = jax.random.split(key)
  params = init_params(k_params)

  B, S = 2, 8
  input_ids = jax.random.randint(k_ids, (B, S), 0, VOCAB, dtype=jnp.int32)
  attention_mask = jnp.array(
      [[1, 1, 1, 1, 1, 1, 1, 1],
       [1, 1, 1, 1, 1, 1, 0, 0]], dtype=jnp.int32)
  token_type_ids = jnp.zeros((B, S), dtype=jnp.int32)

  fwd = jax.jit(visn_lang_forward)
  out = jax.block_until_ready(fwd(params, input_ids, attention_mask, token_type_ids))

  emb, pooled, hidden_states = out
  assert emb.shape == (B, S, HIDDEN + DIM)
  assert pooled.shape == (B, HIDDEN + DIM)
  assert len(hidden_states) == NUM_LAYERS + 1
  assert bool(jnp.all(jnp.isfinite(emb))) and bool(jnp.all(jnp.isfinite(pooled)))
  print("KERNEL_OK")
</pallas_src>

<mosaic_0001>
module attributes {stable_mosaic.version = 11 : i64} {
  func.func @_visn_lang_kernel(%arg0: i32, %arg1: memref<8x128xf32, #tpu.memory_space<vmem>>, %arg2: memref<1x1x8xf32, #tpu.memory_space<vmem>>, %arg3: memref<1x128xf32, #tpu.memory_space<vmem>>, %arg4: memref<1x128xf32, #tpu.memory_space<vmem>>, %arg5: memref<2x128x384xbf16, #tpu.memory_space<vmem>>, %arg6: memref<2x1x384xf32, #tpu.memory_space<vmem>>, %arg7: memref<2x128x128xbf16, #tpu.memory_space<vmem>>, %arg8: memref<2x1x128xf32, #tpu.memory_space<vmem>>, %arg9: memref<2x128x512xbf16, #tpu.memory_space<vmem>>, %arg10: memref<2x1x512xf32, #tpu.memory_space<vmem>>, %arg11: memref<2x512x128xbf16, #tpu.memory_space<vmem>>, %arg12: memref<2x1x128xf32, #tpu.memory_space<vmem>>, %arg13: memref<2x1x128xf32, #tpu.memory_space<vmem>>, %arg14: memref<2x1x128xf32, #tpu.memory_space<vmem>>, %arg15: memref<2x1x128xf32, #tpu.memory_space<vmem>>, %arg16: memref<2x1x128xf32, #tpu.memory_space<vmem>>, %arg17: memref<128x128xbf16, #tpu.memory_space<vmem>>, %arg18: memref<1x128xf32, #tpu.memory_space<vmem>>, %arg19: memref<128x512xbf16, #tpu.memory_space<vmem>>, %arg20: memref<1x512xf32, #tpu.memory_space<vmem>>, %arg21: memref<512x512xbf16, #tpu.memory_space<vmem>>, %arg22: memref<1x512xf32, #tpu.memory_space<vmem>>, %arg23: memref<512x512xbf16, #tpu.memory_space<vmem>>, %arg24: memref<1x512xf32, #tpu.memory_space<vmem>>, %arg25: memref<8x128xf32, #tpu.memory_space<vmem>>, %arg26: memref<2x8x128xf32, #tpu.memory_space<vmem>>, %arg27: memref<1x1x128xf32, #tpu.memory_space<vmem>>, %arg28: memref<8x512xf32, #tpu.memory_space<vmem>>) attributes {dimension_semantics = [#tpu.dimension_semantics<parallel>], iteration_bounds = array<i64: 2>, scalar_prefetch = 0 : i64, scratch_operands = 0 : i64, tpu.core_type = #tpu.core_type<tc>, window_params = [{transform_indices = @transform_0, window_bounds = array<i64: 8, 128>}, {transform_indices = @transform_1, window_bounds = array<i64: 1, 1, 8>}, {pipeline_mode = #tpu.pipeline_mode<synchronous>, transform_indices = @transform_2, window_bounds = array<i64: 1, 128>}, {pipeline_mode = #tpu.pipeline_mode<synchronous>, transform_indices = @transform_3, window_bounds = array<i64: 1, 128>}, {pipeline_mode = #tpu.pipeline_mode<synchronous>, transform_indices = @transform_4, window_bounds = array<i64: 2, 128, 384>}, {pipeline_mode = #tpu.pipeline_mode<synchronous>, transform_indices = @transform_5, window_bounds = array<i64: 2, 1, 384>}, {pipeline_mode = #tpu.pipeline_mode<synchronous>, transform_indices = @transform_6, window_bounds = array<i64: 2, 128, 128>}, {pipeline_mode = #tpu.pipeline_mode<synchronous>, transform_indices = @transform_7, window_bounds = array<i64: 2, 1, 128>}, {pipeline_mode = #tpu.pipeline_mode<synchronous>, transform_indices = @transform_8, window_bounds = array<i64: 2, 128, 512>}, {pipeline_mode = #tpu.pipeline_mode<synchronous>, transform_indices = @transform_9, window_bounds = array<i64: 2, 1, 512>}, {pipeline_mode = #tpu.pipeline_mode<synchronous>, transform_indices = @transform_10, window_bounds = array<i64: 2, 512, 128>}, {pipeline_mode = #tpu.pipeline_mode<synchronous>, transform_indices = @transform_11, window_bounds = array<i64: 2, 1, 128>}, {pipeline_mode = #tpu.pipeline_mode<synchronous>, transform_indices = @transform_12, window_bounds = array<i64: 2, 1, 128>}, {pipeline_mode = #tpu.pipeline_mode<synchronous>, transform_indices = @transform_13, window_bounds = array<i64: 2, 1, 128>}, {pipeline_mode = #tpu.pipeline_mode<synchronous>, transform_indices = @transform_14, window_bounds = array<i64: 2, 1, 128>}, {pipeline_mode = #tpu.pipeline_mode<synchronous>, transform_indices = @transform_15, window_bounds = array<i64: 2, 1, 128>}, {pipeline_mode = #tpu.pipeline_mode<synchronous>, transform_indices = @transform_16, window_bounds = array<i64: 128, 128>}, {pipeline_mode = #tpu.pipeline_mode<synchronous>, transform_indices = @transform_17, window_bounds = array<i64: 1, 128>}, {pipeline_mode = #tpu.pipeline_mode<synchronous>, transform_indices = @transform_18, window_bounds = array<i64: 128, 512>}, {pipeline_mode = #tpu.pipeline_mode<synchronous>, transform_indices = @transform_19, window_bounds = array<i64: 1, 512>}, {pipeline_mode = #tpu.pipeline_mode<synchronous>, transform_indices = @transform_20, window_bounds = array<i64: 512, 512>}, {pipeline_mode = #tpu.pipeline_mode<synchronous>, transform_indices = @transform_21, window_bounds = array<i64: 1, 512>}, {pipeline_mode = #tpu.pipeline_mode<synchronous>, transform_indices = @transform_22, window_bounds = array<i64: 512, 512>}, {pipeline_mode = #tpu.pipeline_mode<synchronous>, transform_indices = @transform_23, window_bounds = array<i64: 1, 512>}, {transform_indices = @transform_24, window_bounds = array<i64: 8, 128>}, {transform_indices = @transform_25, window_bounds = array<i64: 2, 8, 128>}, {transform_indices = @transform_26, window_bounds = array<i64: 1, 1, 128>}, {transform_indices = @transform_27, window_bounds = array<i64: 8, 512>}]} {
    %c0 = arith.constant 0 : index
    %c0_0 = arith.constant 0 : index
    %0 = vector.load %arg1[%c0, %c0_0] : memref<8x128xf32, #tpu.memory_space<vmem>>, vector<8x128xf32>
    %c0_1 = arith.constant 0 : index
    %c0_2 = arith.constant 0 : index
    %1 = vector.load %arg3[%c0_1, %c0_2] : memref<1x128xf32, #tpu.memory_space<vmem>>, vector<1x128xf32>
    %c0_3 = arith.constant 0 : index
    %c0_4 = arith.constant 0 : index
    %2 = vector.load %arg4[%c0_3, %c0_4] : memref<1x128xf32, #tpu.memory_space<vmem>>, vector<1x128xf32>
    %cst = arith.constant dense<0.000000e+00> : vector<8xf32>
    %3 = vector.multi_reduction <add>, %0, %cst [1] : vector<8x128xf32> to vector<8xf32>
    %4 = vector.shape_cast %3 : vector<8xf32> to vector<8x1xf32>
    %cst_5 = arith.constant 1.280000e+02 : f32
    %5 = vector.broadcast %cst_5 : f32 to vector<8x1xf32>
    %6 = arith.divf %4, %5 : vector<8x1xf32>
    %7 = vector.broadcast %6 : vector<8x1xf32> to vector<8x128xf32>
    %8 = arith.subf %0, %7 : vector<8x128xf32>
    %9 = arith.mulf %8, %8 : vector<8x128xf32>
    %cst_6 = arith.constant dense<0.000000e+00> : vector<8xf32>
    %10 = vector.multi_reduction <add>, %9, %cst_6 [1] : vector<8x128xf32> to vector<8xf32>
    %11 = vector.shape_cast %10 : vector<8xf32> to vector<8x1xf32>
    %cst_7 = arith.constant 1.280000e+02 : f32
    %12 = vector.broadcast %cst_7 : f32 to vector<8x1xf32>
    %13 = arith.divf %11, %12 : vector<8x1xf32>
    %14 = vector.broadcast %6 : vector<8x1xf32> to vector<8x128xf32>
    %15 = arith.subf %0, %14 : vector<8x128xf32>
    %cst_8 = arith.constant 9.99999996E-13 : f32
    %16 = vector.broadcast %cst_8 : f32 to vector<8x1xf32>
    %17 = arith.addf %13, %16 : vector<8x1xf32>
    %18 = math.rsqrt %17 : vector<8x1xf32>
    %19 = vector.broadcast %18 : vector<8x1xf32> to vector<8x128xf32>
    %20 = arith.mulf %15, %19 : vector<8x128xf32>
    %21 = vector.broadcast %1 : vector<1x128xf32> to vector<8x128xf32>
    %22 = arith.mulf %20, %21 : vector<8x128xf32>
    %23 = vector.broadcast %2 : vector<1x128xf32> to vector<8x128xf32>
    %24 = arith.addf %22, %23 : vector<8x128xf32>
    %c0_9 = arith.constant 0 : index
    %c0_10 = arith.constant 0 : index
    %25 = vector.load %arg25[%c0_9, %c0_10] : memref<8x128xf32, #tpu.memory_space<vmem>>, vector<8x128xf32>
    tpu.vector_store %arg25[%c0_9, %c0_10], %24 {strides = array<i32>} : memref<8x128xf32, #tpu.memory_space<vmem>>, vector<8x128xf32>,
    %c0_11 = arith.constant 0 : index
    %c0_12 = arith.constant 0 : index
    %c0_13 = arith.constant 0 : index
    %26 = vector.load %arg2[%c0_11, %c0_12, %c0_13] : memref<1x1x8xf32, #tpu.memory_space<vmem>>, vector<1x1x8xf32>
    %c0_i32 = arith.constant 0 : i32
    %c2_i32 = arith.constant 2 : i32
    %27 = arith.addi %c0_i32, %c2_i32 : i32
    %c1_i32 = arith.constant 1 : i32
    %28 = scf.for %arg29 = %c0_i32 to %27 step %c1_i32 iter_args(%arg30 = %24) -> (vector<8x128xf32>)  : i32 {
      %68 = arith.truncf %arg30 : vector<8x128xf32> to vector<8x128xbf16>
      %69 = arith.index_cast %arg29 : i32 to index
      %c0_44 = arith.constant 0 : index
      %c0_45 = arith.constant 0 : index
      %70 = vector.load %arg5[%69, %c0_44, %c0_45] : memref<2x128x384xbf16, #tpu.memory_space<vmem>>, vector<1x128x384xbf16>
      %71 = vector.shape_cast %70 : vector<1x128x384xbf16> to vector<128x384xbf16>
      %cst_46 = arith.constant dense<0.000000e+00> : vector<8x384xf32>
      %72 = tpu.matmul %68, %71, %cst_46 {dimension_numbers = #tpu.dot_dimension_numbers<[1], [0], [0], [1], [0, 0, 1, 1], [], []>} : vector<8x128xbf16>, vector<128x384xbf16>, vector<8x384xf32> -> vector<8x384xf32>
      %73 = arith.index_cast %arg29 : i32 to index
      %c0_47 = arith.constant 0 : index
      %c0_48 = arith.constant 0 : index
      %74 = vector.load %arg6[%73, %c0_47, %c0_48] : memref<2x1x384xf32, #tpu.memory_space<vmem>>, vector<1x1x384xf32>
      %75 = vector.shape_cast %74 : vector<1x1x384xf32> to vector<1x384xf32>
      %76 = vector.broadcast %75 : vector<1x384xf32> to vector<8x384xf32>
      %77 = arith.addf %72, %76 : vector<8x384xf32>
      %78 = arith.truncf %77 : vector<8x384xf32> to vector<8x384xbf16>
      %79 = vector.extract_strided_slice %78 {offsets = [0, 0], sizes = [8, 128], strides = [1, 1]} : vector<8x384xbf16> to vector<8x128xbf16>
      %80 = vector.shape_cast %79 : vector<8x128xbf16> to vector<8x2x64xbf16>
      %81 = vector.extract_strided_slice %78 {offsets = [0, 128], sizes = [8, 128], strides = [1, 1]} : vector<8x384xbf16> to vector<8x128xbf16>
      %82 = vector.shape_cast %81 : vector<8x128xbf16> to vector<8x2x64xbf16>
      %83 = vector.extract_strided_slice %78 {offsets = [0, 256], sizes = [8, 128], strides = [1, 1]} : vector<8x384xbf16> to vector<8x128xbf16>
      %84 = vector.shape_cast %83 : vector<8x128xbf16> to vector<8x2x64xbf16>
      "tpu.trace_start"() <{level = 10 : i32, message = "qhd,khd->hqk"}> : () -> ()
      %cst_49 = arith.constant dense<0.000000e+00> : vector<2x8x8xf32>
      %85 = tpu.matmul %80, %82, %cst_49 {dimension_numbers = #tpu.dot_dimension_numbers<[2], [2], [0], [0], [0, 1, 0, 0, 1, 0], [1], [1]>} : vector<8x2x64xbf16>, vector<8x2x64xbf16>, vector<2x8x8xf32> -> vector<2x8x8xf32>
      "tpu.trace_stop"() : () -> ()
      %cst_50 = arith.constant 1.250000e-01 : f32
      %86 = vector.broadcast %cst_50 : f32 to vector<2x8x8xf32>
      %87 = arith.mulf %85, %86 : vector<2x8x8xf32>
      %88 = vector.broadcast %26 : vector<1x1x8xf32> to vector<2x8x8xf32>
      %89 = arith.addf %87, %88 : vector<2x8x8xf32>
      %cst_51 = arith.constant dense<0xFF800000> : vector<2x8xf32>
      %90 = vector.multi_reduction <maximumf>, %89, %cst_51 [2] : vector<2x8x8xf32> to vector<2x8xf32>
      %91 = vector.shape_cast %90 : vector<2x8xf32> to vector<2x8x1xf32>
      %92 = vector.broadcast %91 : vector<2x8x1xf32> to vector<2x8x8xf32>
      %93 = arith.subf %89, %92 : vector<2x8x8xf32>
      %94 = math.exp %93 : vector<2x8x8xf32>
      %cst_52 = arith.constant dense<0.000000e+00> : vector<2x8xf32>
      %95 = vector.multi_reduction <add>, %94, %cst_52 [2] : vector<2x8x8xf32> to vector<2x8xf32>
      %96 = vector.shape_cast %95 : vector<2x8xf32> to vector<2x8x1xf32>
      %97 = tpu.reciprocal %96 {approx = true} : vector<2x8x1xf32> -> vector<2x8x1xf32>
      %98 = vector.broadcast %97 : vector<2x8x1xf32> to vector<2x8x8xf32>
      %99 = arith.mulf %94, %98 : vector<2x8x8xf32>
      %100 = arith.truncf %99 : vector<2x8x8xf32> to vector<2x8x8xbf16>
      "tpu.trace_start"() <{level = 10 : i32, message = "hqk,khd->qhd"}> : () -> ()
      %cst_53 = arith.constant dense<0.000000e+00> : vector<2x64x8xf32>
      %101 = tpu.matmul %84, %100, %cst_53 {dimension_numbers = #tpu.dot_dimension_numbers<[0], [2], [2], [1], [0, 1, 0, 2, 1, 1], [1], [0]>} : vector<8x2x64xbf16>, vector<2x8x8xbf16>, vector<2x64x8xf32> -> vector<2x64x8xf32>
      %102 = tpu.transpose %101, [2, 0, 1] : vector<2x64x8xf32> -> vector<8x2x64xf32>
      "tpu.trace_stop"() : () -> ()
      %103 = vector.shape_cast %102 : vector<8x2x64xf32> to vector<8x128xf32>
      %104 = arith.truncf %103 : vector<8x128xf32> to vector<8x128xbf16>
      %105 = arith.index_cast %arg29 : i32 to index
      %c0_54 = arith.constant 0 : index
      %c0_55 = arith.constant 0 : index
      %106 = vector.load %arg7[%105, %c0_54, %c0_55] : memref<2x128x128xbf16, #tpu.memory_space<vmem>>, vector<1x128x128xbf16>
      %107 = vector.shape_cast %106 : vector<1x128x128xbf16> to vector<128x128xbf16>
      %cst_56 = arith.constant dense<0.000000e+00> : vector<8x128xf32>
      %108 = tpu.matmul %104, %107, %cst_56 {dimension_numbers = #tpu.dot_dimension_numbers<[1], [0], [0], [1], [0, 0, 1, 1], [], []>} : vector<8x128xbf16>, vector<128x128xbf16>, vector<8x128xf32> -> vector<8x128xf32>
      %109 = arith.index_cast %arg29 : i32 to index
      %c0_57 = arith.constant 0 : index
      %c0_58 = arith.constant 0 : index
      %110 = vector.load %arg8[%109, %c0_57, %c0_58] : memref<2x1x128xf32, #tpu.memory_space<vmem>>, vector<1x1x128xf32>
      %111 = vector.shape_cast %110 : vector<1x1x128xf32> to vector<1x128xf32>
      %112 = vector.broadcast %111 : vector<1x128xf32> to vector<8x128xf32>
      %113 = arith.addf %108, %112 : vector<8x128xf32>
      %114 = arith.addf %arg30, %113 : vector<8x128xf32>
      %115 = arith.index_cast %arg29 : i32 to index
      %c0_59 = arith.constant 0 : index
      %c0_60 = arith.constant 0 : index
      %116 = vector.load %arg13[%115, %c0_59, %c0_60] : memref<2x1x128xf32, #tpu.memory_space<vmem>>, vector<1x1x128xf32>
      %117 = vector.shape_cast %116 : vector<1x1x128xf32> to vector<1x128xf32>
      %118 = arith.index_cast %arg29 : i32 to index
      %c0_61 = arith.constant 0 : index
      %c0_62 = arith.constant 0 : index
      %119 = vector.load %arg14[%118, %c0_61, %c0_62] : memref<2x1x128xf32, #tpu.memory_space<vmem>>, vector<1x1x128xf32>
      %120 = vector.shape_cast %119 : vector<1x1x128xf32> to vector<1x128xf32>
      %cst_63 = arith.constant dense<0.000000e+00> : vector<8xf32>
      %121 = vector.multi_reduction <add>, %114, %cst_63 [1] : vector<8x128xf32> to vector<8xf32>
      %122 = vector.shape_cast %121 : vector<8xf32> to vector<8x1xf32>
      %cst_64 = arith.constant 1.280000e+02 : f32
      %123 = vector.broadcast %cst_64 : f32 to vector<8x1xf32>
      %124 = arith.divf %122, %123 : vector<8x1xf32>
      %125 = vector.broadcast %124 : vector<8x1xf32> to vector<8x128xf32>
      %126 = arith.subf %114, %125 : vector<8x128xf32>
      %127 = arith.mulf %126, %126 : vector<8x128xf32>
      %cst_65 = arith.constant dense<0.000000e+00> : vector<8xf32>
      %128 = vector.multi_reduction <add>, %127, %cst_65 [1] : vector<8x128xf32> to vector<8xf32>
      %129 = vector.shape_cast %128 : vector<8xf32> to vector<8x1xf32>
      %cst_66 = arith.constant 1.280000e+02 : f32
      %130 = vector.broadcast %cst_66 : f32 to vector<8x1xf32>
      %131 = arith.divf %129, %130 : vector<8x1xf32>
      %132 = vector.broadcast %124 : vector<8x1xf32> to vector<8x128xf32>
      %133 = arith.subf %114, %132 : vector<8x128xf32>
      %cst_67 = arith.constant 9.99999996E-13 : f32
      %134 = vector.broadcast %cst_67 : f32 to vector<8x1xf32>
      %135 = arith.addf %131, %134 : vector<8x1xf32>
      %136 = math.rsqrt %135 : vector<8x1xf32>
      %137 = vector.broadcast %136 : vector<8x1xf32> to vector<8x128xf32>
      %138 = arith.mulf %133, %137 : vector<8x128xf32>
      %139 = vector.broadcast %117 : vector<1x128xf32> to vector<8x128xf32>
      %140 = arith.mulf %138, %139 : vector<8x128xf32>
      %141 = vector.broadcast %120 : vector<1x128xf32> to vector<8x128xf32>
      %142 = arith.addf %140, %141 : vector<8x128xf32>
      %143 = arith.truncf %142 : vector<8x128xf32> to vector<8x128xbf16>
      %144 = arith.index_cast %arg29 : i32 to index
      %c0_68 = arith.constant 0 : index
      %c0_69 = arith.constant 0 : index
      %145 = vector.load %arg9[%144, %c0_68, %c0_69] : memref<2x128x512xbf16, #tpu.memory_space<vmem>>, vector<1x128x512xbf16>
      %146 = vector.shape_cast %145 : vector<1x128x512xbf16> to vector<128x512xbf16>
      %cst_70 = arith.constant dense<0.000000e+00> : vector<8x512xf32>
      %147 = tpu.matmul %143, %146, %cst_70 {dimension_numbers = #tpu.dot_dimension_numbers<[1], [0], [0], [1], [0, 0, 1, 1], [], []>} : vector<8x128xbf16>, vector<128x512xbf16>, vector<8x512xf32> -> vector<8x512xf32>
      %148 = arith.index_cast %arg29 : i32 to index
      %c0_71 = arith.constant 0 : index
      %c0_72 = arith.constant 0 : index
      %149 = vector.load %arg10[%148, %c0_71, %c0_72] : memref<2x1x512xf32, #tpu.memory_space<vmem>>, vector<1x1x512xf32>
      %150 = vector.shape_cast %149 : vector<1x1x512xf32> to vector<1x512xf32>
      %151 = vector.broadcast %150 : vector<1x512xf32> to vector<8x512xf32>
      %152 = arith.addf %147, %151 : vector<8x512xf32>
      %153 = arith.mulf %152, %152 : vector<8x512xf32>
      %154 = arith.mulf %152, %153 : vector<8x512xf32>
      %cst_73 = arith.constant 4.471500e-02 : f32
      %155 = vector.broadcast %cst_73 : f32 to vector<8x512xf32>
      %156 = arith.mulf %155, %154 : vector<8x512xf32>
      %157 = arith.addf %152, %156 : vector<8x512xf32>
      %cst_74 = arith.constant 0.797884583 : f32
      %158 = vector.broadcast %cst_74 : f32 to vector<8x512xf32>
      %159 = arith.mulf %158, %157 : vector<8x512xf32>
      %160 = math.tanh %159 : vector<8x512xf32>
      %cst_75 = arith.constant 1.000000e+00 : f32
      %161 = vector.broadcast %cst_75 : f32 to vector<8x512xf32>
      %162 = arith.addf %161, %160 : vector<8x512xf32>
      %cst_76 = arith.constant 5.000000e-01 : f32
      %163 = vector.broadcast %cst_76 : f32 to vector<8x512xf32>
      %164 = arith.mulf %163, %162 : vector<8x512xf32>
      %165 = arith.mulf %152, %164 : vector<8x512xf32>
      %166 = arith.truncf %165 : vector<8x512xf32> to vector<8x512xbf16>
      %167 = arith.index_cast %arg29 : i32 to index
      %c0_77 = arith.constant 0 : index
      %c0_78 = arith.constant 0 : index
      %168 = vector.load %arg11[%167, %c0_77, %c0_78] : memref<2x512x128xbf16, #tpu.memory_space<vmem>>, vector<1x512x128xbf16>
      %169 = vector.shape_cast %168 : vector<1x512x128xbf16> to vector<512x128xbf16>
      %cst_79 = arith.constant dense<0.000000e+00> : vector<8x128xf32>
      %170 = tpu.matmul %166, %169, %cst_79 {dimension_numbers = #tpu.dot_dimension_numbers<[1], [0], [0], [1], [0, 0, 1, 1], [], []>} : vector<8x512xbf16>, vector<512x128xbf16>, vector<8x128xf32> -> vector<8x128xf32>
      %171 = arith.index_cast %arg29 : i32 to index
      %c0_80 = arith.constant 0 : index
      %c0_81 = arith.constant 0 : index
      %172 = vector.load %arg12[%171, %c0_80, %c0_81] : memref<2x1x128xf32, #tpu.memory_space<vmem>>, vector<1x1x128xf32>
      %173 = vector.shape_cast %172 : vector<1x1x128xf32> to vector<1x128xf32>
      %174 = vector.broadcast %173 : vector<1x128xf32> to vector<8x128xf32>
      %175 = arith.addf %170, %174 : vector<8x128xf32>
      %176 = arith.addf %142, %175 : vector<8x128xf32>
      %177 = arith.index_cast %arg29 : i32 to index
      %c0_82 = arith.constant 0 : index
      %c0_83 = arith.constant 0 : index
      %178 = vector.load %arg15[%177, %c0_82, %c0_83] : memref<2x1x128xf32, #tpu.memory_space<vmem>>, vector<1x1x128xf32>
      %179 = vector.shape_cast %178 : vector<1x1x128xf32> to vector<1x128xf32>
      %180 = arith.index_cast %arg29 : i32 to index
      %c0_84 = arith.constant 0 : index
      %c0_85 = arith.constant 0 : index
      %181 = vector.load %arg16[%180, %c0_84, %c0_85] : memref<2x1x128xf32, #tpu.memory_space<vmem>>, vector<1x1x128xf32>
      %182 = vector.shape_cast %181 : vector<1x1x128xf32> to vector<1x128xf32>
      %cst_86 = arith.constant dense<0.000000e+00> : vector<8xf32>
      %183 = vector.multi_reduction <add>, %176, %cst_86 [1] : vector<8x128xf32> to vector<8xf32>
      %184 = vector.shape_cast %183 : vector<8xf32> to vector<8x1xf32>
      %cst_87 = arith.constant 1.280000e+02 : f32
      %185 = vector.broadcast %cst_87 : f32 to vector<8x1xf32>
      %186 = arith.divf %184, %185 : vector<8x1xf32>
      %187 = vector.broadcast %186 : vector<8x1xf32> to vector<8x128xf32>
      %188 = arith.subf %176, %187 : vector<8x128xf32>
      %189 = arith.mulf %188, %188 : vector<8x128xf32>
      %cst_88 = arith.constant dense<0.000000e+00> : vector<8xf32>
      %190 = vector.multi_reduction <add>, %189, %cst_88 [1] : vector<8x128xf32> to vector<8xf32>
      %191 = vector.shape_cast %190 : vector<8xf32> to vector<8x1xf32>
      %cst_89 = arith.constant 1.280000e+02 : f32
      %192 = vector.broadcast %cst_89 : f32 to vector<8x1xf32>
      %193 = arith.divf %191, %192 : vector<8x1xf32>
      %194 = vector.broadcast %186 : vector<8x1xf32> to vector<8x128xf32>
      %195 = arith.subf %176, %194 : vector<8x128xf32>
      %cst_90 = arith.constant 9.99999996E-13 : f32
      %196 = vector.broadcast %cst_90 : f32 to vector<8x1xf32>
      %197 = arith.addf %193, %196 : vector<8x1xf32>
      %198 = math.rsqrt %197 : vector<8x1xf32>
      %199 = vector.broadcast %198 : vector<8x1xf32> to vector<8x128xf32>
      %200 = arith.mulf %195, %199 : vector<8x128xf32>
      %201 = vector.broadcast %179 : vector<1x128xf32> to vector<8x128xf32>
      %202 = arith.mulf %200, %201 : vector<8x128xf32>
      %203 = vector.broadcast %182 : vector<1x128xf32> to vector<8x128xf32>
      %204 = arith.addf %202, %203 : vector<8x128xf32>
      %205 = arith.index_cast %arg29 : i32 to index
      %c0_91 = arith.constant 0 : index
      %c0_92 = arith.constant 0 : index
      %206 = vector.load %arg26[%205, %c0_91, %c0_92] : memref<2x8x128xf32, #tpu.memory_space<vmem>>, vector<1x8x128xf32>
      %207 = vector.shape_cast %206 : vector<1x8x128xf32> to vector<8x128xf32>
      %208 = vector.shape_cast %204 : vector<8x128xf32> to vector<1x8x128xf32>
      tpu.vector_store %arg26[%205, %c0_91, %c0_92], %208 {strides = array<i32>} : memref<2x8x128xf32, #tpu.memory_space<vmem>>, vector<1x8x128xf32>,
      scf.yield %204 : vector<8x128xf32>
    }
    %c2_i32_14 = arith.constant 2 : i32
    %29 = arith.truncf %28 : vector<8x128xf32> to vector<8x128xbf16>
    %30 = vector.extract_strided_slice %29 {offsets = [0, 0], sizes = [1, 128], strides = [1, 1]} : vector<8x128xbf16> to vector<1x128xbf16>
    %c0_15 = arith.constant 0 : index
    %c0_16 = arith.constant 0 : index
    %31 = vector.load %arg17[%c0_15, %c0_16] : memref<128x128xbf16, #tpu.memory_space<vmem>>, vector<128x128xbf16>
    %cst_17 = arith.constant dense<0.000000e+00> : vector<1x128xf32>
    %32 = tpu.matmul %30, %31, %cst_17 {dimension_numbers = #tpu.dot_dimension_numbers<[1], [0], [0], [1], [0, 0, 1, 1], [], []>} : vector<1x128xbf16>, vector<128x128xbf16>, vector<1x128xf32> -> vector<1x128xf32>
    %c0_18 = arith.constant 0 : index
    %c0_19 = arith.constant 0 : index
    %33 = vector.load %arg18[%c0_18, %c0_19] : memref<1x128xf32, #tpu.memory_space<vmem>>, vector<1x128xf32>
    %34 = arith.addf %32, %33 : vector<1x128xf32>
    %35 = math.tanh %34 : vector<1x128xf32>
    %36 = vector.shape_cast %35 : vector<1x128xf32> to vector<1x1x128xf32>
    %c0_20 = arith.constant 0 : index
    %c0_21 = arith.constant 0 : index
    %c0_22 = arith.constant 0 : index
    %37 = vector.load %arg27[%c0_20, %c0_21, %c0_22] : memref<1x1x128xf32, #tpu.memory_space<vmem>>, vector<1x1x128xf32>
    tpu.vector_store %arg27[%c0_20, %c0_21, %c0_22], %36 {strides = array<i32>} : memref<1x1x128xf32, #tpu.memory_space<vmem>>, vector<1x1x128xf32>,
    %c0_23 = arith.constant 0 : index
    %c0_24 = arith.constant 0 : index
    %38 = vector.load %arg19[%c0_23, %c0_24] : memref<128x512xbf16, #tpu.memory_space<vmem>>, vector<128x512xbf16>
    %cst_25 = arith.constant dense<0.000000e+00> : vector<8x512xf32>
    %39 = tpu.matmul %29, %38, %cst_25 {dimension_numbers = #tpu.dot_dimension_numbers<[1], [0], [0], [1], [0, 0, 1, 1], [], []>} : vector<8x128xbf16>, vector<128x512xbf16>, vector<8x512xf32> -> vector<8x512xf32>
    %c0_26 = arith.constant 0 : index
    %c0_27 = arith.constant 0 : index
    %40 = vector.load %arg20[%c0_26, %c0_27] : memref<1x512xf32, #tpu.memory_space<vmem>>, vector<1x512xf32>
    %41 = vector.broadcast %40 : vector<1x512xf32> to vector<8x512xf32>
    %42 = arith.addf %39, %41 : vector<8x512xf32>
    %cst_28 = arith.constant 0.000000e+00 : f32
    %43 = vector.broadcast %cst_28 : f32 to vector<8x512xf32>
    %44 = arith.maximumf %42, %43 : vector<8x512xf32>
    %45 = arith.truncf %44 : vector<8x512xf32> to vector<8x512xbf16>
    %c0_29 = arith.constant 0 : index
    %c0_30 = arith.constant 0 : index
    %46 = vector.load %arg21[%c0_29, %c0_30] : memref<512x512xbf16, #tpu.memory_space<vmem>>, vector<512x512xbf16>
    %cst_31 = arith.constant dense<0.000000e+00> : vector<8x512xf32>
    %47 = tpu.matmul %45, %46, %cst_31 {dimension_numbers = #tpu.dot_dimension_numbers<[1], [0], [0], [1], [0, 0, 1, 1], [], []>} : vector<8x512xbf16>, vector<512x512xbf16>, vector<8x512xf32> -> vector<8x512xf32>
    %c0_32 = arith.constant 0 : index
    %c0_33 = arith.constant 0 : index
    %48 = vector.load %arg22[%c0_32, %c0_33] : memref<1x512xf32, #tpu.memory_space<vmem>>, vector<1x512xf32>
    %49 = vector.broadcast %48 : vector<1x512xf32> to vector<8x512xf32>
    %50 = arith.addf %47, %49 : vector<8x512xf32>
    %cst_34 = arith.constant 0.000000e+00 : f32
    %51 = vector.broadcast %cst_34 : f32 to vector<8x512xf32>
    %52 = arith.maximumf %50, %51 : vector<8x512xf32>
    %53 = arith.truncf %52 : vector<8x512xf32> to vector<8x512xbf16>
    %c0_35 = arith.constant 0 : index
    %c0_36 = arith.constant 0 : index
    %54 = vector.load %arg23[%c0_35, %c0_36] : memref<512x512xbf16, #tpu.memory_space<vmem>>, vector<512x512xbf16>
    %cst_37 = arith.constant dense<0.000000e+00> : vector<8x512xf32>
    %55 = tpu.matmul %53, %54, %cst_37 {dimension_numbers = #tpu.dot_dimension_numbers<[1], [0], [0], [1], [0, 0, 1, 1], [], []>} : vector<8x512xbf16>, vector<512x512xbf16>, vector<8x512xf32> -> vector<8x512xf32>
    %c0_38 = arith.constant 0 : index
    %c0_39 = arith.constant 0 : index
    %56 = vector.load %arg24[%c0_38, %c0_39] : memref<1x512xf32, #tpu.memory_space<vmem>>, vector<1x512xf32>
    %57 = vector.broadcast %56 : vector<1x512xf32> to vector<8x512xf32>
    %58 = arith.addf %55, %57 : vector<8x512xf32>
    %59 = arith.mulf %58, %58 : vector<8x512xf32>
    %cst_40 = arith.constant dense<0.000000e+00> : vector<8xf32>
    %60 = vector.multi_reduction <add>, %59, %cst_40 [1] : vector<8x512xf32> to vector<8xf32>
    %61 = vector.shape_cast %60 : vector<8xf32> to vector<8x1xf32>
    %cst_41 = arith.constant 9.99999996E-13 : f32
    %62 = vector.broadcast %cst_41 : f32 to vector<8x1xf32>
    %63 = arith.addf %61, %62 : vector<8x1xf32>
    %64 = math.rsqrt %63 : vector<8x1xf32>
    %65 = vector.broadcast %64 : vector<8x1xf32> to vector<8x512xf32>
    %66 = arith.mulf %58, %65 : vector<8x512xf32>
    %c0_42 = arith.constant 0 : index
    %c0_43 = arith.constant 0 : index
    %67 = vector.load %arg28[%c0_42, %c0_43] : memref<8x512xf32, #tpu.memory_space<vmem>>, vector<8x512xf32>
    tpu.vector_store %arg28[%c0_42, %c0_43], %66 {strides = array<i32>} : memref<8x512xf32, #tpu.memory_space<vmem>>, vector<8x512xf32>,
    return
  }
  func.func @transform_0(%arg0: i32) -> (i32, i32) {
    %c0_i32 = arith.constant 0 : i32
    %c0_i32_0 = arith.constant 0 : i32
    return %arg0, %c0_i32 : i32, i32
  }
  func.func @transform_1(%arg0: i32) -> (i32, i32, i32) {
    %c0_i32 = arith.constant 0 : i32
    %c0_i32_0 = arith.constant 0 : i32
    %c0_i32_1 = arith.constant 0 : i32
    return %arg0, %c0_i32, %c0_i32_0 : i32, i32, i32
  }
  func.func @transform_2(%arg0: i32) -> (i32, i32) {
    %c0_i32 = arith.constant 0 : i32
    %c0_i32_0 = arith.constant 0 : i32
    %c0_i32_1 = arith.constant 0 : i32
    return %c0_i32, %c0_i32_0 : i32, i32
  }
  func.func @transform_3(%arg0: i32) -> (i32, i32) {
    %c0_i32 = arith.constant 0 : i32
    %c0_i32_0 = arith.constant 0 : i32
    %c0_i32_1 = arith.constant 0 : i32
    return %c0_i32, %c0_i32_0 : i32, i32
  }
  func.func @transform_4(%arg0: i32) -> (i32, i32, i32) {
    %c0_i32 = arith.constant 0 : i32
    %c0_i32_0 = arith.constant 0 : i32
    %c0_i32_1 = arith.constant 0 : i32
    %c0_i32_2 = arith.constant 0 : i32
    return %c0_i32, %c0_i32_0, %c0_i32_1 : i32, i32, i32
  }
  func.func @transform_5(%arg0: i32) -> (i32, i32, i32) {
    %c0_i32 = arith.constant 0 : i32
    %c0_i32_0 = arith.constant 0 : i32
    %c0_i32_1 = arith.constant 0 : i32
    %c0_i32_2 = arith.constant 0 : i32
    return %c0_i32, %c0_i32_0, %c0_i32_1 : i32, i32, i32
  }
  func.func @transform_6(%arg0: i32) -> (i32, i32, i32) {
    %c0_i32 = arith.constant 0 : i32
    %c0_i32_0 = arith.constant 0 : i32
    %c0_i32_1 = arith.constant 0 : i32
    %c0_i32_2 = arith.constant 0 : i32
    return %c0_i32, %c0_i32_0, %c0_i32_1 : i32, i32, i32
  }
  func.func @transform_7(%arg0: i32) -> (i32, i32, i32) {
    %c0_i32 = arith.constant 0 : i32
    %c0_i32_0 = arith.constant 0 : i32
    %c0_i32_1 = arith.constant 0 : i32
    %c0_i32_2 = arith.constant 0 : i32
    return %c0_i32, %c0_i32_0, %c0_i32_1 : i32, i32, i32
  }
  func.func @transform_8(%arg0: i32) -> (i32, i32, i32) {
    %c0_i32 = arith.constant 0 : i32
    %c0_i32_0 = arith.constant 0 : i32
    %c0_i32_1 = arith.constant 0 : i32
    %c0_i32_2 = arith.constant 0 : i32
    return %c0_i32, %c0_i32_0, %c0_i32_1 : i32, i32, i32
  }
  func.func @transform_9(%arg0: i32) -> (i32, i32, i32) {
    %c0_i32 = arith.constant 0 : i32
    %c0_i32_0 = arith.constant 0 : i32
    %c0_i32_1 = arith.constant 0 : i32
    %c0_i32_2 = arith.constant 0 : i32
    return %c0_i32, %c0_i32_0, %c0_i32_1 : i32, i32, i32
  }
  func.func @transform_10(%arg0: i32) -> (i32, i32, i32) {
    %c0_i32 = arith.constant 0 : i32
    %c0_i32_0 = arith.constant 0 : i32
    %c0_i32_1 = arith.constant 0 : i32
    %c0_i32_2 = arith.constant 0 : i32
    return %c0_i32, %c0_i32_0, %c0_i32_1 : i32, i32, i32
  }
  func.func @transform_11(%arg0: i32) -> (i32, i32, i32) {
    %c0_i32 = arith.constant 0 : i32
    %c0_i32_0 = arith.constant 0 : i32
    %c0_i32_1 = arith.constant 0 : i32
    %c0_i32_2 = arith.constant 0 : i32
    return %c0_i32, %c0_i32_0, %c0_i32_1 : i32, i32, i32
  }
  func.func @transform_12(%arg0: i32) -> (i32, i32, i32) {
    %c0_i32 = arith.constant 0 : i32
    %c0_i32_0 = arith.constant 0 : i32
    %c0_i32_1 = arith.constant 0 : i32
    %c0_i32_2 = arith.constant 0 : i32
    return %c0_i32, %c0_i32_0, %c0_i32_1 : i32, i32, i32
  }
  func.func @transform_13(%arg0: i32) -> (i32, i32, i32) {
    %c0_i32 = arith.constant 0 : i32
    %c0_i32_0 = arith.constant 0 : i32
    %c0_i32_1 = arith.constant 0 : i32
    %c0_i32_2 = arith.constant 0 : i32
    return %c0_i32, %c0_i32_0, %c0_i32_1 : i32, i32, i32
  }
  func.func @transform_14(%arg0: i32) -> (i32, i32, i32) {
    %c0_i32 = arith.constant 0 : i32
    %c0_i32_0 = arith.constant 0 : i32
    %c0_i32_1 = arith.constant 0 : i32
    %c0_i32_2 = arith.constant 0 : i32
    return %c0_i32, %c0_i32_0, %c0_i32_1 : i32, i32, i32
  }
  func.func @transform_15(%arg0: i32) -> (i32, i32, i32) {
    %c0_i32 = arith.constant 0 : i32
    %c0_i32_0 = arith.constant 0 : i32
    %c0_i32_1 = arith.constant 0 : i32
    %c0_i32_2 = arith.constant 0 : i32
    return %c0_i32, %c0_i32_0, %c0_i32_1 : i32, i32, i32
  }
  func.func @transform_16(%arg0: i32) -> (i32, i32) {
    %c0_i32 = arith.constant 0 : i32
    %c0_i32_0 = arith.constant 0 : i32
    %c0_i32_1 = arith.constant 0 : i32
    return %c0_i32, %c0_i32_0 : i32, i32
  }
  func.func @transform_17(%arg0: i32) -> (i32, i32) {
    %c0_i32 = arith.constant 0 : i32
    %c0_i32_0 = arith.constant 0 : i32
    %c0_i32_1 = arith.constant 0 : i32
    return %c0_i32, %c0_i32_0 : i32, i32
  }
  func.func @transform_18(%arg0: i32) -> (i32, i32) {
    %c0_i32 = arith.constant 0 : i32
    %c0_i32_0 = arith.constant 0 : i32
    %c0_i32_1 = arith.constant 0 : i32
    return %c0_i32, %c0_i32_0 : i32, i32
  }
  func.func @transform_19(%arg0: i32) -> (i32, i32) {
    %c0_i32 = arith.constant 0 : i32
    %c0_i32_0 = arith.constant 0 : i32
    %c0_i32_1 = arith.constant 0 : i32
    return %c0_i32, %c0_i32_0 : i32, i32
  }
  func.func @transform_20(%arg0: i32) -> (i32, i32) {
    %c0_i32 = arith.constant 0 : i32
    %c0_i32_0 = arith.constant 0 : i32
    %c0_i32_1 = arith.constant 0 : i32
    return %c0_i32, %c0_i32_0 : i32, i32
  }
  func.func @transform_21(%arg0: i32) -> (i32, i32) {
    %c0_i32 = arith.constant 0 : i32
    %c0_i32_0 = arith.constant 0 : i32
    %c0_i32_1 = arith.constant 0 : i32
    return %c0_i32, %c0_i32_0 : i32, i32
  }
  func.func @transform_22(%arg0: i32) -> (i32, i32) {
    %c0_i32 = arith.constant 0 : i32
    %c0_i32_0 = arith.constant 0 : i32
    %c0_i32_1 = arith.constant 0 : i32
    return %c0_i32, %c0_i32_0 : i32, i32
  }
  func.func @transform_23(%arg0: i32) -> (i32, i32) {
    %c0_i32 = arith.constant 0 : i32
    %c0_i32_0 = arith.constant 0 : i32
    %c0_i32_1 = arith.constant 0 : i32
    return %c0_i32, %c0_i32_0 : i32, i32
  }
  func.func @transform_24(%arg0: i32) -> (i32, i32) {
    %c0_i32 = arith.constant 0 : i32
    %c0_i32_0 = arith.constant 0 : i32
    return %arg0, %c0_i32 : i32, i32
  }
  func.func @transform_25(%arg0: i32) -> (i32, i32, i32) {
    %c0_i32 = arith.constant 0 : i32
    %c0_i32_0 = arith.constant 0 : i32
    %c0_i32_1 = arith.constant 0 : i32
    return %c0_i32, %arg0, %c0_i32_0 : i32, i32, i32
  }
  func.func @transform_26(%arg0: i32) -> (i32, i32, i32) {
    %c0_i32 = arith.constant 0 : i32
    %c0_i32_0 = arith.constant 0 : i32
    %c0_i32_1 = arith.constant 0 : i32
    return %arg0, %c0_i32, %c0_i32_0 : i32, i32, i32
  }
  func.func @transform_27(%arg0: i32) -> (i32, i32) {
    %c0_i32 = arith.constant 0 : i32
    %c0_i32_0 = arith.constant 0 : i32
    return %arg0, %c0_i32 : i32, i32
  }
}

</mosaic_0001>

<llo_original>
// kernel: visn_lang_forward.1
$region0: #{visn_lang_forward.1}
  #allocation0 [shape = 'u32[]', space=smem, size = 0x4, offset = 0x4, fixed_abs, tag = 'smem constant byte address 0x4 - core index']
  #allocation1 [shape = 'u32[144,128]{1,0:T(1,128)}', space=vmem, size = 0x12000, scoped, tag = 'internal scratch']
  %s0 = inlined_call_operand.vmem [shape: f32[16,128], index: 0, kind: input, shape index: {}]
  %s1 = inlined_call_operand.vmem [shape: f32[2,1,8], index: 1, kind: input, shape index: {}]
  %s2 = inlined_call_operand.vmem [shape: f32[1,128], index: 2, kind: input, shape index: {}]
  %s3 = inlined_call_operand.vmem [shape: f32[1,128], index: 3, kind: input, shape index: {}]
  %s4 = inlined_call_operand.hbm [shape: bf16[2,128,384], index: 4, kind: input, shape index: {}]
  %s5 = inlined_call_operand.vmem [shape: f32[2,1,384], index: 5, kind: input, shape index: {}]
  %s6 = inlined_call_operand.vmem [shape: bf16[2,128,128], index: 6, kind: input, shape index: {}]
  %s7 = inlined_call_operand.vmem [shape: f32[2,1,128], index: 7, kind: input, shape index: {}]
  %s8 = inlined_call_operand.hbm [shape: bf16[2,128,512], index: 8, kind: input, shape index: {}]
  %s9 = inlined_call_operand.vmem [shape: f32[2,1,512], index: 9, kind: input, shape index: {}]
  %s10 = inlined_call_operand.hbm [shape: bf16[2,512,128], index: 10, kind: input, shape index: {}]
  %s11 = inlined_call_operand.vmem [shape: f32[2,1,128], index: 11, kind: input, shape index: {}]
  %s12 = inlined_call_operand.vmem [shape: f32[2,1,128], index: 12, kind: input, shape index: {}]
  %s13 = inlined_call_operand.vmem [shape: f32[2,1,128], index: 13, kind: input, shape index: {}]
  %s14 = inlined_call_operand.vmem [shape: f32[2,1,128], index: 14, kind: input, shape index: {}]
  %s15 = inlined_call_operand.vmem [shape: f32[2,1,128], index: 15, kind: input, shape index: {}]
  %s16 = inlined_call_operand.vmem [shape: bf16[128,128], index: 16, kind: input, shape index: {}]
  %s17 = inlined_call_operand.vmem [shape: f32[1,128], index: 17, kind: input, shape index: {}]
  %s18 = inlined_call_operand.vmem [shape: bf16[128,512], index: 18, kind: input, shape index: {}]
  %s19 = inlined_call_operand.vmem [shape: f32[1,512], index: 19, kind: input, shape index: {}]
  %s20 = inlined_call_operand.hbm [shape: bf16[512,512], index: 20, kind: input, shape index: {}]
  %s21 = inlined_call_operand.vmem [shape: f32[1,512], index: 21, kind: input, shape index: {}]
  %s22 = inlined_call_operand.hbm [shape: bf16[512,512], index: 22, kind: input, shape index: {}]
  %s23 = inlined_call_operand.vmem [shape: f32[1,512], index: 23, kind: input, shape index: {}]
  %s24 = inlined_call_operand.hbm [shape: f32[16,128], index: 24, kind: output, shape index: {0}]
  %s25 = inlined_call_operand.vmem [shape: f32[2,16,128], index: 25, kind: output, shape index: {1}]
  %s26 = inlined_call_operand.vmem [shape: f32[2,1,128], index: 26, kind: output, shape index: {2}]
  %s27 = inlined_call_operand.vmem [shape: f32[16,512], index: 27, kind: output, shape index: {3}]
  %28 = xla_tuple %s24, %s25, %s26, %s27
  %s29 = sld [smem:[#allocation0]]
  $region214: #{visn_lang_forward.1} parent=0
    _
  %s31 = ssub.s32 1, %s29
  %s32 = scalar_select 0, %s31, %s29
  $region1: #{visn_lang_forward.1} parent=0
    #allocation2 [shape = 'u8[196608]{0}', space=vmem, size = 0x30000, scoped, tag = 'input window, operand 4, single buffered']
    #allocation3 [shape = 's32[2]{0}', space=sflag, size = 0x8, scoped, tag = 'scoped memory for visn_lang_forward.1']
    #allocation4 [shape = 's32[2]{0}', space=sflag, size = 0x8, scoped, tag = 'scoped memory for visn_lang_forward.1']
    #allocation5 [shape = 'u8[262144]{0}', space=vmem, size = 0x40000, scoped, tag = 'input window, operand 8, single buffered']
    #allocation6 [shape = 's32[1]{0}', space=sflag, size = 0x4, scoped, tag = 'scoped memory for visn_lang_forward.1']
    #allocation7 [shape = 'u8[262144]{0}', space=vmem, size = 0x40000, scoped, tag = 'input window, operand 10, single buffered']
    #allocation8 [shape = 'u8[524288]{0}', space=vmem, size = 0x80000, scoped, tag = 'input window, operand 20, single buffered']
    #allocation9 [shape = 's32[1]{0}', space=sflag, size = 0x4, scoped, tag = 'scoped memory for visn_lang_forward.1']
    #allocation10 [shape = 'u8[524288]{0}', space=vmem, size = 0x80000, scoped, tag = 'input window, operand 22, single buffered']
    #allocation11 [shape = 'u8[8192]{0}', space=vmem, size = 0x2000, scoped, tag = 'output window, operand 0']
    #allocation12 [shape = 'u8[16384]{0}', space=vmem, size = 0x4000, scoped, tag = 'output window, operand 1']
    %33 = vsyncpa [#allocation3], 0
    %34 = vsyncpa [#allocation6], 0
    %35 = vsyncpa [#allocation9], 0
    %36 = vsyncpa [#allocation4], 0
    %s37 = scalar_lea.sflag [#allocation4], 1
    %38 = vsyncpa %s37, 0
    loop: start=0, step=1, limit=4
    $region2: #{visn_lang_forward.1} parent=1 // loop_pre_header
      _
    $region3: #{visn_lang_forward.1} parent=1 // loop_header
      %s40 = sphi 0, %s44
      %p41 = scmp.ge.s32.totalorder %s40, 4
      %s50 = sphi 0, %s52
      %s53 = sphi 0, %s50
      %s54 = sphi 0, %s53
      %s70 = sphi 0, %s54
      %s76 = sphi 0, %s78
      %s79 = sphi 0, %s76
      %s80 = sphi 0, %s79
      %s96 = sphi 0, %s80
      %s100 = sphi 0, %s100
      %s102 = sphi 0, %s100
      %s103 = sphi 0, %s102
      %s117 = sphi 0, %s103
      %s121 = sphi 0, %s121
      %s123 = sphi 0, %s121
      %s124 = sphi 0, %s123
      %s138 = sphi 0, %s124
      %s142 = sphi 0, %s142
      %s144 = sphi 0, %s142
      %s145 = sphi 0, %s144
      %s159 = sphi 0, %s145
      %s163 = sphi 0, %s163
      %s165 = sphi 0, %s163
      %s166 = sphi 0, %s165
      %s180 = sphi 0, %s166
      %s184 = sphi 0, %s184
      %s186 = sphi 0, %s184
      %s187 = sphi 0, %s186
      %s201 = sphi 0, %s187
      %s205 = sphi 0, %s205
      %s207 = sphi 0, %s205
      %s208 = sphi 0, %s207
      %s222 = sphi 0, %s208
      %s226 = sphi 0, %s226
      %s228 = sphi 0, %s226
      %s229 = sphi 0, %s228
      %s243 = sphi 0, %s229
      %s247 = sphi 0, %s247
      %s249 = sphi 0, %s247
      %s250 = sphi 0, %s249
      %s264 = sphi 0, %s250
      %s268 = sphi 0, %s268
      %s270 = sphi 0, %s268
      %s271 = sphi 0, %s270
      %s285 = sphi 0, %s271
      %s289 = sphi 0, %s289
      %s291 = sphi 0, %s289
      %s292 = sphi 0, %s291
      %s306 = sphi 0, %s292
      %s310 = sphi 0, %s310
      %s312 = sphi 0, %s310
      %s313 = sphi 0, %s312
      %s327 = sphi 0, %s313
      %s331 = sphi 0, %s331
      %s333 = sphi 0, %s331
      %s334 = sphi 0, %s333
      %s348 = sphi 0, %s334
      %s352 = sphi 0, %s352
      %s354 = sphi 0, %s352
      %s355 = sphi 0, %s354
      %s369 = sphi 0, %s355
      %s373 = sphi 0, %s373
      %s375 = sphi 0, %s373
      %s376 = sphi 0, %s375
      %s390 = sphi 0, %s376
      %s394 = sphi 0, %s394
      %s396 = sphi 0, %s394
      %s397 = sphi 0, %s396
      %s411 = sphi 0, %s397
      %s415 = sphi 0, %s415
      %s417 = sphi 0, %s415
      %s418 = sphi 0, %s417
      %s432 = sphi 0, %s418
      %s436 = sphi 0, %s436
      %s438 = sphi 0, %s436
      %s439 = sphi 0, %s438
      %s453 = sphi 0, %s439
      %s457 = sphi 0, %s457
      %s459 = sphi 0, %s457
      %s460 = sphi 0, %s459
      %s474 = sphi 0, %s460
      %s478 = sphi 0, %s478
      %s480 = sphi 0, %s478
      %s481 = sphi 0, %s480
      %s495 = sphi 0, %s481
      %s499 = sphi 0, %s499
      %s501 = sphi 0, %s499
      %s502 = sphi 0, %s501
      %s516 = sphi 0, %s502
      %s520 = sphi 0, %s520
      %s522 = sphi 0, %s520
      %s523 = sphi 0, %s522
      %s537 = sphi 0, %s523
      %s541 = sphi 0, %s541
      %s543 = sphi 0, %s541
      %s544 = sphi 0, %s543
      %s558 = sphi 0, %s544
      %s564 = sphi 0, %s566
      %s567 = sphi 0, %s564
      %s568 = sphi 0, %s567
      %s584 = sphi 0, %s568
      %s590 = sphi 0, %s592
      %s593 = sphi 0, %s590
      %s594 = sphi 0, %s593
      %s610 = sphi 0, %s594
      %s616 = sphi 0, %s618
      %s619 = sphi 0, %s616
      %s620 = sphi 0, %s619
      %s636 = sphi 0, %s620
      %s642 = sphi 0, %s644
      %s645 = sphi 0, %s642
      %s646 = sphi 0, %s645
      %s662 = sphi 0, %s646
    $region4: #{visn_lang_forward.1} parent=1 // loop_header_branch
      %43 = sbr.rel (%p41) target = $region8
    $region5: #{visn_lang_forward.1} parent=1 // loop_body
      %s45 = ssub.s32 %s40, 1
      %s46 = ssub.s32 %s40, 2
      %s47 = sadd.s32 %s40, 1
      %s48 = ssub.s32 %s40, %s47
      %p49 = scmp.eq.s32.totalorder %s48, 0
      %s51 = sadd.s32 %s50, 1
      %s52 = scalar_select %p49, %s50, %s51
      %p55 = pneg %p49
      %p56 = scmp.eq.s32.totalorder %s40, 1
      %p57 = por %p55, %p56
      %p58 = scmp.ne.s32.totalorder %s50, %s53
      %p59 = scmp.eq.s32.totalorder %s40, 0
      %p60 = por %p58, %p59
      %p61 = scmp.ne.s32.totalorder %s50, %s53
      %p62 = scmp.eq.s32.totalorder %s45, 1
      %p63 = por %p61, %p62
      %p64 = scmp.ne.s32.totalorder %s53, %s54
      %p65 = scmp.eq.s32.totalorder %s45, 0
      %p66 = por %p64, %p65
      %p67 = scmp.ne.s32.totalorder %s53, %s54
      %p68 = scmp.eq.s32.totalorder %s46, 1
      %p69 = por %p67, %p68
      %p71 = scmp.ne.s32.totalorder %s54, %s70
      %p72 = scmp.eq.s32.totalorder %s46, 0
      %p73 = por %p71, %p72
      %s74 = ssub.s32 %s40, %s47
      %p75 = scmp.eq.s32.totalorder %s74, 0
      %s77 = sadd.s32 %s76, 1
      %s78 = scalar_select %p75, %s76, %s77
      %p81 = pneg %p75
      %p82 = scmp.eq.s32.totalorder %s40, 1
      %p83 = por %p81, %p82
      %p84 = scmp.ne.s32.totalorder %s76, %s79
      %p85 = scmp.eq.s32.totalorder %s40, 0
      %p86 = por %p84, %p85
      %p87 = scmp.ne.s32.totalorder %s76, %s79
      %p88 = scmp.eq.s32.totalorder %s45, 1
      %p89 = por %p87, %p88
      %p90 = scmp.ne.s32.totalorder %s79, %s80
      %p91 = scmp.eq.s32.totalorder %s45, 0
      %p92 = por %p90, %p91
      %p93 = scmp.ne.s32.totalorder %s79, %s80
      %p94 = scmp.eq.s32.totalorder %s46, 1
      %p95 = por %p93, %p94
      %p97 = scmp.ne.s32.totalorder %s80, %s96
      %p98 = scmp.eq.s32.totalorder %s46, 0
      %p99 = por %p97, %p98
      %s101 = sadd.s32 %s100, 1
      %p104 = scmp.eq.s32.totalorder %s40, 1
      %p105 = scmp.ne.s32.totalorder %s100, %s102
      %p106 = scmp.eq.s32.totalorder %s40, 0
      %p107 = por %p105, %p106
      %p108 = scmp.ne.s32.totalorder %s100, %s102
      %p109 = scmp.eq.s32.totalorder %s45, 1
      %p110 = por %p108, %p109
      %p111 = scmp.ne.s32.totalorder %s102, %s103
      %p112 = scmp.eq.s32.totalorder %s45, 0
      %p113 = por %p111, %p112
      %p114 = scmp.ne.s32.totalorder %s102, %s103
      %p115 = scmp.eq.s32.totalorder %s46, 1
      %p116 = por %p114, %p115
      %p118 = scmp.ne.s32.totalorder %s103, %s117
      %p119 = scmp.eq.s32.totalorder %s46, 0
      %p120 = por %p118, %p119
      %s122 = sadd.s32 %s121, 1
      %p125 = scmp.eq.s32.totalorder %s40, 1
      %p126 = scmp.ne.s32.totalorder %s121, %s123
      %p127 = scmp.eq.s32.totalorder %s40, 0
      %p128 = por %p126, %p127
      %p129 = scmp.ne.s32.totalorder %s121, %s123
      %p130 = scmp.eq.s32.totalorder %s45, 1
      %p131 = por %p129, %p130
      %p132 = scmp.ne.s32.totalorder %s123, %s124
      %p133 = scmp.eq.s32.totalorder %s45, 0
      %p134 = por %p132, %p133
      %p135 = scmp.ne.s32.totalorder %s123, %s124
      %p136 = scmp.eq.s32.totalorder %s46, 1
      %p137 = por %p135, %p136
      %p139 = scmp.ne.s32.totalorder %s124, %s138
      %p140 = scmp.eq.s32.totalorder %s46, 0
      %p141 = por %p139, %p140
      %s143 = sadd.s32 %s142, 1
      %p146 = scmp.eq.s32.totalorder %s40, 1
      %p147 = scmp.ne.s32.totalorder %s142, %s144
      %p148 = scmp.eq.s32.totalorder %s40, 0
      %p149 = por %p147, %p148
      %p150 = scmp.ne.s32.totalorder %s142, %s144
      %p151 = scmp.eq.s32.totalorder %s45, 1
      %p152 = por %p150, %p151
      %p153 = scmp.ne.s32.totalorder %s144, %s145
      %p154 = scmp.eq.s32.totalorder %s45, 0
      %p155 = por %p153, %p154
      %p156 = scmp.ne.s32.totalorder %s144, %s145
      %p157 = scmp.eq.s32.totalorder %s46, 1
      %p158 = por %p156, %p157
      %p160 = scmp.ne.s32.totalorder %s145, %s159
      %p161 = scmp.eq.s32.totalorder %s46, 0
      %p162 = por %p160, %p161
      %s164 = sadd.s32 %s163, 1
      %p167 = scmp.eq.s32.totalorder %s40, 1
      %p168 = scmp.ne.s32.totalorder %s163, %s165
      %p169 = scmp.eq.s32.totalorder %s40, 0
      %p170 = por %p168, %p169
      %p171 = scmp.ne.s32.totalorder %s163, %s165
      %p172 = scmp.eq.s32.totalorder %s45, 1
      %p173 = por %p171, %p172
      %p174 = scmp.ne.s32.totalorder %s165, %s166
      %p175 = scmp.eq.s32.totalorder %s45, 0
      %p176 = por %p174, %p175
      %p177 = scmp.ne.s32.totalorder %s165, %s166
      %p178 = scmp.eq.s32.totalorder %s46, 1
      %p179 = por %p177, %p178
      %p181 = scmp.ne.s32.totalorder %s166, %s180
      %p182 = scmp.eq.s32.totalorder %s46, 0
      %p183 = por %p181, %p182
      %s185 = sadd.s32 %s184, 1
      %p188 = scmp.eq.s32.totalorder %s40, 1
      %p189 = scmp.ne.s32.totalorder %s184, %s186
      %p190 = scmp.eq.s32.totalorder %s40, 0
      %p191 = por %p189, %p190
      %p192 = scmp.ne.s32.totalorder %s184, %s186
      %p193 = scmp.eq.s32.totalorder %s45, 1
      %p194 = por %p192, %p193
      %p195 = scmp.ne.s32.totalorder %s186, %s187
      %p196 = scmp.eq.s32.totalorder %s45, 0
      %p197 = por %p195, %p196
      %p198 = scmp.ne.s32.totalorder %s186, %s187
      %p199 = scmp.eq.s32.totalorder %s46, 1
      %p200 = por %p198, %p199
      %p202 = scmp.ne.s32.totalorder %s187, %s201
      %p203 = scmp.eq.s32.totalorder %s46, 0
      %p204 = por %p202, %p203
      %s206 = sadd.s32 %s205, 1
      %p209 = scmp.eq.s32.totalorder %s40, 1
      %p210 = scmp.ne.s32.totalorder %s205, %s207
      %p211 = scmp.eq.s32.totalorder %s40, 0
      %p212 = por %p210, %p211
      %p213 = scmp.ne.s32.totalorder %s205, %s207
      %p214 = scmp.eq.s32.totalorder %s45, 1
      %p215 = por %p213, %p214
      %p216 = scmp.ne.s32.totalorder %s207, %s208
      %p217 = scmp.eq.s32.totalorder %s45, 0
      %p218 = por %p216, %p217
      %p219 = scmp.ne.s32.totalorder %s207, %s208
      %p220 = scmp.eq.s32.totalorder %s46, 1
      %p221 = por %p219, %p220
      %p223 = scmp.ne.s32.totalorder %s208, %s222
      %p224 = scmp.eq.s32.totalorder %s46, 0
      %p225 = por %p223, %p224
      %s227 = sadd.s32 %s226, 1
      %p230 = scmp.eq.s32.totalorder %s40, 1
      %p231 = scmp.ne.s32.totalorder %s226, %s228
      %p232 = scmp.eq.s32.totalorder %s40, 0
      %p233 = por %p231, %p232
      %p234 = scmp.ne.s32.totalorder %s226, %s228
      %p235 = scmp.eq.s32.totalorder %s45, 1
      %p236 = por %p234, %p235
      %p237 = scmp.ne.s32.totalorder %s228, %s229
      %p238 = scmp.eq.s32.totalorder %s45, 0
      %p239 = por %p237, %p238
      %p240 = scmp.ne.s32.totalorder %s228, %s229
      %p241 = scmp.eq.s32.totalorder %s46, 1
      %p242 = por %p240, %p241
      %p244 = scmp.ne.s32.totalorder %s229, %s243
      %p245 = scmp.eq.s32.totalorder %s46, 0
      %p246 = por %p244, %p245
      %s248 = sadd.s32 %s247, 1
      %p251 = scmp.eq.s32.totalorder %s40, 1
      %p252 = scmp.ne.s32.totalorder %s247, %s249
      %p253 = scmp.eq.s32.totalorder %s40, 0
      %p254 = por %p252, %p253
      %p255 = scmp.ne.s32.totalorder %s247, %s249
      %p256 = scmp.eq.s32.totalorder %s45, 1
      %p257 = por %p255, %p256
      %p258 = scmp.ne.s32.totalorder %s249, %s250
      %p259 = scmp.eq.s32.totalorder %s45, 0
      %p260 = por %p258, %p259
      %p261 = scmp.ne.s32.totalorder %s249, %s250
      %p262 = scmp.eq.s32.totalorder %s46, 1
      %p263 = por %p261, %p262
      %p265 = scmp.ne.s32.totalorder %s250, %s264
      %p266 = scmp.eq.s32.totalorder %s46, 0
      %p267 = por %p265, %p266
      %s269 = sadd.s32 %s268, 1
      %p272 = scmp.eq.s32.totalorder %s40, 1
      %p273 = scmp.ne.s32.totalorder %s268, %s270
      %p274 = scmp.eq.s32.totalorder %s40, 0
      %p275 = por %p273, %p274
      %p276 = scmp.ne.s32.totalorder %s268, %s270
      %p277 = scmp.eq.s32.totalorder %s45, 1
      %p278 = por %p276, %p277
      %p279 = scmp.ne.s32.totalorder %s270, %s271
      %p280 = scmp.eq.s32.totalorder %s45, 0
      %p281 = por %p279, %p280
      %p282 = scmp.ne.s32.totalorder %s270, %s271
      %p283 = scmp.eq.s32.totalorder %s46, 1
      %p284 = por %p282, %p283
      %p286 = scmp.ne.s32.totalorder %s271, %s285
      %p287 = scmp.eq.s32.totalorder %s46, 0
      %p288 = por %p286, %p287
      %s290 = sadd.s32 %s289, 1
      %p293 = scmp.eq.s32.totalorder %s40, 1
      %p294 = scmp.ne.s32.totalorder %s289, %s291
      %p295 = scmp.eq.s32.totalorder %s40, 0
      %p296 = por %p294, %p295
      %p297 = scmp.ne.s32.totalorder %s289, %s291
      %p298 = scmp.eq.s32.totalorder %s45, 1
      %p299 = por %p297, %p298
      %p300 = scmp.ne.s32.totalorder %s291, %s292
      %p301 = scmp.eq.s32.totalorder %s45, 0
      %p302 = por %p300, %p301
      %p303 = scmp.ne.s32.totalorder %s291, %s292
      %p304 = scmp.eq.s32.totalorder %s46, 1
      %p305 = por %p303, %p304
      %p307 = scmp.ne.s32.totalorder %s292, %s306
      %p308 = scmp.eq.s32.totalorder %s46, 0
      %p309 = por %p307, %p308
      %s311 = sadd.s32 %s310, 1
      %p314 = scmp.eq.s32.totalorder %s40, 1
      %p315 = scmp.ne.s32.totalorder %s310, %s312
      %p316 = scmp.eq.s32.totalorder %s40, 0
      %p317 = por %p315, %p316
      %p318 = scmp.ne.s32.totalorder %s310, %s312
      %p319 = scmp.eq.s32.totalorder %s45, 1
      %p320 = por %p318, %p319
      %p321 = scmp.ne.s32.totalorder %s312, %s313
      %p322 = scmp.eq.s32.totalorder %s45, 0
      %p323 = por %p321, %p322
      %p324 = scmp.ne.s32.totalorder %s312, %s313
      %p325 = scmp.eq.s32.totalorder %s46, 1
      %p326 = por %p324, %p325
      %p328 = scmp.ne.s32.totalorder %s313, %s327
      %p329 = scmp.eq.s32.totalorder %s46, 0
      %p330 = por %p328, %p329
      %s332 = sadd.s32 %s331, 1
      %p335 = scmp.eq.s32.totalorder %s40, 1
      %p336 = scmp.ne.s32.totalorder %s331, %s333
      %p337 = scmp.eq.s32.totalorder %s40, 0
      %p338 = por %p336, %p337
      %p339 = scmp.ne.s32.totalorder %s331, %s333
      %p340 = scmp.eq.s32.totalorder %s45, 1
      %p341 = por %p339, %p340
      %p342 = scmp.ne.s32.totalorder %s333, %s334
      %p343 = scmp.eq.s32.totalorder %s45, 0
      %p344 = por %p342, %p343
      %p345 = scmp.ne.s32.totalorder %s333, %s334
      %p346 = scmp.eq.s32.totalorder %s46, 1
      %p347 = por %p345, %p346
      %p349 = scmp.ne.s32.totalorder %s334, %s348
      %p350 = scmp.eq.s32.totalorder %s46, 0
      %p351 = por %p349, %p350
      %s353 = sadd.s32 %s352, 1
      %p356 = scmp.eq.s32.totalorder %s40, 1
      %p357 = scmp.ne.s32.totalorder %s352, %s354
      %p358 = scmp.eq.s32.totalorder %s40, 0
      %p359 = por %p357, %p358
      %p360 = scmp.ne.s32.totalorder %s352, %s354
      %p361 = scmp.eq.s32.totalorder %s45, 1
      %p362 = por %p360, %p361
      %p363 = scmp.ne.s32.totalorder %s354, %s355
      %p364 = scmp.eq.s32.totalorder %s45, 0
      %p365 = por %p363, %p364
      %p366 = scmp.ne.s32.totalorder %s354, %s355
      %p367 = scmp.eq.s32.totalorder %s46, 1
      %p368 = por %p366, %p367
      %p370 = scmp.ne.s32.totalorder %s355, %s369
      %p371 = scmp.eq.s32.totalorder %s46, 0
      %p372 = por %p370, %p371
      %s374 = sadd.s32 %s373, 1
      %p377 = scmp.eq.s32.totalorder %s40, 1
      %p378 = scmp.ne.s32.totalorder %s373, %s375
      %p379 = scmp.eq.s32.totalorder %s40, 0
      %p380 = por %p378, %p379
      %p381 = scmp.ne.s32.totalorder %s373, %s375
      %p382 = scmp.eq.s32.totalorder %s45, 1
      %p383 = por %p381, %p382
      %p384 = scmp.ne.s32.totalorder %s375, %s376
      %p385 = scmp.eq.s32.totalorder %s45, 0
      %p386 = por %p384, %p385
      %p387 = scmp.ne.s32.totalorder %s375, %s376
      %p388 = scmp.eq.s32.totalorder %s46, 1
      %p389 = por %p387, %p388
      %p391 = scmp.ne.s32.totalorder %s376, %s390
      %p392 = scmp.eq.s32.totalorder %s46, 0
      %p393 = por %p391, %p392
      %s395 = sadd.s32 %s394, 1
      %p398 = scmp.eq.s32.totalorder %s40, 1
      %p399 = scmp.ne.s32.totalorder %s394, %s396
      %p400 = scmp.eq.s32.totalorder %s40, 0
      %p401 = por %p399, %p400
      %p402 = scmp.ne.s32.totalorder %s394, %s396
      %p403 = scmp.eq.s32.totalorder %s45, 1
      %p404 = por %p402, %p403
      %p405 = scmp.ne.s32.totalorder %s396, %s397
      %p406 = scmp.eq.s32.totalorder %s45, 0
      %p407 = por %p405, %p406
      %p408 = scmp.ne.s32.totalorder %s396, %s397
      %p409 = scmp.eq.s32.totalorder %s46, 1
      %p410 = por %p408, %p409
      %p412 = scmp.ne.s32.totalorder %s397, %s411
      %p413 = scmp.eq.s32.totalorder %s46, 0
      %p414 = por %p412, %p413
      %s416 = sadd.s32 %s415, 1
      %p419 = scmp.eq.s32.totalorder %s40, 1
      %p420 = scmp.ne.s32.totalorder %s415, %s417
      %p421 = scmp.eq.s32.totalorder %s40, 0
      %p422 = por %p420, %p421
      %p423 = scmp.ne.s32.totalorder %s415, %s417
      %p424 = scmp.eq.s32.totalorder %s45, 1
      %p425 = por %p423, %p424
      %p426 = scmp.ne.s32.totalorder %s417, %s418
      %p427 = scmp.eq.s32.totalorder %s45, 0
      %p428 = por %p426, %p427
      %p429 = scmp.ne.s32.totalorder %s417, %s418
      %p430 = scmp.eq.s32.totalorder %s46, 1
      %p431 = por %p429, %p430
      %p433 = scmp.ne.s32.totalorder %s418, %s432
      %p434 = scmp.eq.s32.totalorder %s46, 0
      %p435 = por %p433, %p434
      %s437 = sadd.s32 %s436, 1
      %p440 = scmp.eq.s32.totalorder %s40, 1
      %p441 = scmp.ne.s32.totalorder %s436, %s438
      %p442 = scmp.eq.s32.totalorder %s40, 0
      %p443 = por %p441, %p442
      %p444 = scmp.ne.s32.totalorder %s436, %s438
      %p445 = scmp.eq.s32.totalorder %s45, 1
      %p446 = por %p444, %p445
      %p447 = scmp.ne.s32.totalorder %s438, %s439
      %p448 = scmp.eq.s32.totalorder %s45, 0
      %p449 = por %p447, %p448
      %p450 = scmp.ne.s32.totalorder %s438, %s439
      %p451 = scmp.eq.s32.totalorder %s46, 1
      %p452 = por %p450, %p451
      %p454 = scmp.ne.s32.totalorder %s439, %s453
      %p455 = scmp.eq.s32.totalorder %s46, 0
      %p456 = por %p454, %p455
      %s458 = sadd.s32 %s457, 1
      %p461 = scmp.eq.s32.totalorder %s40, 1
      %p462 = scmp.ne.s32.totalorder %s457, %s459
      %p463 = scmp.eq.s32.totalorder %s40, 0
      %p464 = por %p462, %p463
      %p465 = scmp.ne.s32.totalorder %s457, %s459
      %p466 = scmp.eq.s32.totalorder %s45, 1
      %p467 = por %p465, %p466
      %p468 = scmp.ne.s32.totalorder %s459, %s460
      %p469 = scmp.eq.s32.totalorder %s45, 0
      %p470 = por %p468, %p469
      %p471 = scmp.ne.s32.totalorder %s459, %s460
      %p472 = scmp.eq.s32.totalorder %s46, 1
      %p473 = por %p471, %p472
      %p475 = scmp.ne.s32.totalorder %s460, %s474
      %p476 = scmp.eq.s32.totalorder %s46, 0
      %p477 = por %p475, %p476
      %s479 = sadd.s32 %s478, 1
      %p482 = scmp.eq.s32.totalorder %s40, 1
      %p483 = scmp.ne.s32.totalorder %s478, %s480
      %p484 = scmp.eq.s32.totalorder %s40, 0
      %p485 = por %p483, %p484
      %p486 = scmp.ne.s32.totalorder %s478, %s480
      %p487 = scmp.eq.s32.totalorder %s45, 1
      %p488 = por %p486, %p487
      %p489 = scmp.ne.s32.totalorder %s480, %s481
      %p490 = scmp.eq.s32.totalorder %s45, 0
      %p491 = por %p489, %p490
      %p492 = scmp.ne.s32.totalorder %s480, %s481
      %p493 = scmp.eq.s32.totalorder %s46, 1
      %p494 = por %p492, %p493
      %p496 = scmp.ne.s32.totalorder %s481, %s495
      %p497 = scmp.eq.s32.totalorder %s46, 0
      %p498 = por %p496, %p497
      %s500 = sadd.s32 %s499, 1
      %p503 = scmp.eq.s32.totalorder %s40, 1
      %p504 = scmp.ne.s32.totalorder %s499, %s501
      %p505 = scmp.eq.s32.totalorder %s40, 0
      %p506 = por %p504, %p505
      %p507 = scmp.ne.s32.totalorder %s499, %s501
      %p508 = scmp.eq.s32.totalorder %s45, 1
      %p509 = por %p507, %p508
      %p510 = scmp.ne.s32.totalorder %s501, %s502
      %p511 = scmp.eq.s32.totalorder %s45, 0
      %p512 = por %p510, %p511
      %p513 = scmp.ne.s32.totalorder %s501, %s502
      %p514 = scmp.eq.s32.totalorder %s46, 1
      %p515 = por %p513, %p514
      %p517 = scmp.ne.s32.totalorder %s502, %s516
      %p518 = scmp.eq.s32.totalorder %s46, 0
      %p519 = por %p517, %p518
      %s521 = sadd.s32 %s520, 1
      %p524 = scmp.eq.s32.totalorder %s40, 1
      %p525 = scmp.ne.s32.totalorder %s520, %s522
      %p526 = scmp.eq.s32.totalorder %s40, 0
      %p527 = por %p525, %p526
      %p528 = scmp.ne.s32.totalorder %s520, %s522
      %p529 = scmp.eq.s32.totalorder %s45, 1
      %p530 = por %p528, %p529
      %p531 = scmp.ne.s32.totalorder %s522, %s523
      %p532 = scmp.eq.s32.totalorder %s45, 0
      %p533 = por %p531, %p532
      %p534 = scmp.ne.s32.totalorder %s522, %s523
      %p535 = scmp.eq.s32.totalorder %s46, 1
      %p536 = por %p534, %p535
      %p538 = scmp.ne.s32.totalorder %s523, %s537
      %p539 = scmp.eq.s32.totalorder %s46, 0
      %p540 = por %p538, %p539
      %s542 = sadd.s32 %s541, 1
      %p545 = scmp.eq.s32.totalorder %s40, 1
      %p546 = scmp.ne.s32.totalorder %s541, %s543
      %p547 = scmp.eq.s32.totalorder %s40, 0
      %p548 = por %p546, %p547
      %p549 = scmp.ne.s32.totalorder %s541, %s543
      %p550 = scmp.eq.s32.totalorder %s45, 1
      %p551 = por %p549, %p550
      %p552 = scmp.ne.s32.totalorder %s543, %s544
      %p553 = scmp.eq.s32.totalorder %s45, 0
      %p554 = por %p552, %p553
      %p555 = scmp.ne.s32.totalorder %s543, %s544
      %p556 = scmp.eq.s32.totalorder %s46, 1
      %p557 = por %p555, %p556
      %p559 = scmp.ne.s32.totalorder %s544, %s558
      %p560 = scmp.eq.s32.totalorder %s46, 0
      %p561 = por %p559, %p560
      %s562 = ssub.s32 %s40, %s47
      %p563 = scmp.eq.s32.totalorder %s562, 0
      %s565 = sadd.s32 %s564, 1
      %s566 = scalar_select %p563, %s564, %s565
      %p569 = pneg %p563
      %p570 = scmp.eq.s32.totalorder %s40, 1
      %p571 = por %p569, %p570
      %p572 = scmp.ne.s32.totalorder %s564, %s567
      %p573 = scmp.eq.s32.totalorder %s40, 0
      %p574 = por %p572, %p573
      %p575 = scmp.ne.s32.totalorder %s564, %s567
      %p576 = scmp.eq.s32.totalorder %s45, 1
      %p577 = por %p575, %p576
      %p578 = scmp.ne.s32.totalorder %s567, %s568
      %p579 = scmp.eq.s32.totalorder %s45, 0
      %p580 = por %p578, %p579
      %p581 = scmp.ne.s32.totalorder %s567, %s568
      %p582 = scmp.eq.s32.totalorder %s46, 1
      %p583 = por %p581, %p582
      %p585 = scmp.ne.s32.totalorder %s568, %s584
      %p586 = scmp.eq.s32.totalorder %s46, 0
      %p587 = por %p585, %p586
      %s588 = ssub.s32 %s40, %s47
      %p589 = scmp.eq.s32.totalorder %s588, 0
      %s591 = sadd.s32 %s590, 1
      %s592 = scalar_select %p589, %s590, %s591
      %p595 = pneg %p589
      %p596 = scmp.eq.s32.totalorder %s40, 1
      %p597 = por %p595, %p596
      %p598 = scmp.ne.s32.totalorder %s590, %s593
      %p599 = scmp.eq.s32.totalorder %s40, 0
      %p600 = por %p598, %p599
      %p601 = scmp.ne.s32.totalorder %s590, %s593
      %p602 = scmp.eq.s32.totalorder %s45, 1
      %p603 = por %p601, %p602
      %p604 = scmp.ne.s32.totalorder %s593, %s594
      %p605 = scmp.eq.s32.totalorder %s45, 0
      %p606 = por %p604, %p605
      %p607 = scmp.ne.s32.totalorder %s593, %s594
      %p608 = scmp.eq.s32.totalorder %s46, 1
      %p609 = por %p607, %p608
      %p611 = scmp.ne.s32.totalorder %s594, %s610
      %p612 = scmp.eq.s32.totalorder %s46, 0
      %p613 = por %p611, %p612
      %s614 = ssub.s32 %s40, %s47
      %p615 = scmp.eq.s32.totalorder %s614, 0
      %s617 = sadd.s32 %s616, 1
      %s618 = scalar_select %p615, %s616, %s617
      %p621 = pneg %p615
      %p622 = scmp.eq.s32.totalorder %s40, 1
      %p623 = por %p621, %p622
      %p624 = scmp.ne.s32.totalorder %s616, %s619
      %p625 = scmp.eq.s32.totalorder %s40, 0
      %p626 = por %p624, %p625
      %p627 = scmp.ne.s32.totalorder %s616, %s619
      %p628 = scmp.eq.s32.totalorder %s45, 1
      %p629 = por %p627, %p628
      %p630 = scmp.ne.s32.totalorder %s619, %s620
      %p631 = scmp.eq.s32.totalorder %s45, 0
      %p632 = por %p630, %p631
      %p633 = scmp.ne.s32.totalorder %s619, %s620
      %p634 = scmp.eq.s32.totalorder %s46, 1
      %p635 = por %p633, %p634
      %p637 = scmp.ne.s32.totalorder %s620, %s636
      %p638 = scmp.eq.s32.totalorder %s46, 0
      %p639 = por %p637, %p638
      %s640 = ssub.s32 %s40, %s47
      %p641 = scmp.eq.s32.totalorder %s640, 0
      %s643 = sadd.s32 %s642, 1
      %s644 = scalar_select %p641, %s642, %s643
      %p647 = pneg %p641
      %p648 = scmp.eq.s32.totalorder %s40, 1
      %p649 = por %p647, %p648
      %p650 = scmp.ne.s32.totalorder %s642, %s645
      %p651 = scmp.eq.s32.totalorder %s40, 0
      %p652 = por %p650, %p651
      %p653 = scmp.ne.s32.totalorder %s642, %s645
      %p654 = scmp.eq.s32.totalorder %s45, 1
      %p655 = por %p653, %p654
      %p656 = scmp.ne.s32.totalorder %s645, %s646
      %p657 = scmp.eq.s32.totalorder %s45, 0
      %p658 = por %p656, %p657
      %p659 = scmp.ne.s32.totalorder %s645, %s646
      %p660 = scmp.eq.s32.totalorder %s46, 1
      %p661 = por %p659, %p660
      %p663 = scmp.ne.s32.totalorder %s646, %s662
      %p664 = scmp.eq.s32.totalorder %s46, 0
      %p665 = por %p663, %p664
      %p666 = scmp.le.s32.totalorder 1, %s40
      %p667 = scmp.lt.s32.totalorder %s40, 3
      %p668 = pnand %p666, %p667
      %p669 = pneg %p668
      // Predicated region
      $region9: #{visn_lang_forward.1} parent=5 // pred_check
        _
      $region10: #{visn_lang_forward.1} parent=5 // pred_check_branch
        %671 = sbr.rel (%p668) target = $region12
      $region11: #{visn_lang_forward.1} parent=5 // pred_region
        %s672 = ssub.s32 %s40, 1
        // Predicated region
        $region13: #{visn_lang_forward.1} parent=11 // pred_check
          %p673 = pneg %p113
        $region14: #{visn_lang_forward.1} parent=11 // pred_check_branch
          %675 = sbr.rel (%p673) target = $region16
        $region15: #{visn_lang_forward.1} parent=11 // pred_region
          _
        $region16: #{visn_lang_forward.1} parent=11 // pred_fallthru
          _
        // Predicated region
        $region17: #{visn_lang_forward.1} parent=11 // pred_check
          %p676 = pneg %p134
        $region18: #{visn_lang_forward.1} parent=11 // pred_check_branch
          %678 = sbr.rel (%p676) target = $region20
        $region19: #{visn_lang_forward.1} parent=11 // pred_region
          _
        $region20: #{visn_lang_forward.1} parent=11 // pred_fallthru
          _
        // Predicated region
        $region21: #{visn_lang_forward.1} parent=11 // pred_check
          %p679 = pneg %p155
        $region22: #{visn_lang_forward.1} parent=11 // pred_check_branch
          %681 = sbr.rel (%p679) target = $region24
        $region23: #{visn_lang_forward.1} parent=11 // pred_region
          %s683 = ssub.s32 6144, 6144
          %684 = vsyncadd [#allocation3], %s683
          %s685 = sshll.u32 [#allocation2], 4
          %s686 = int_to_ptr.vmem [resolvable:$true] %s685
          %691 = dma.hbm_to_vmem [thread:$0]  %s4, 6144, %s686, [#allocation3], 192, 192, 12
        $region24: #{visn_lang_forward.1} parent=11 // pred_fallthru
          _
        // Predicated region
        $region25: #{visn_lang_forward.1} parent=11 // pred_check
          %p692 = pneg %p176
        $region26: #{visn_lang_forward.1} parent=11 // pred_check_branch
          %694 = sbr.rel (%p692) target = $region28
        $region27: #{visn_lang_forward.1} parent=11 // pred_region
          _
        $region28: #{visn_lang_forward.1} parent=11 // pred_fallthru
          _
        // Predicated region
        $region29: #{visn_lang_forward.1} parent=11 // pred_check
          %p695 = pneg %p197
        $region30: #{visn_lang_forward.1} parent=11 // pred_check_branch
          %697 = sbr.rel (%p695) target = $region32
        $region31: #{visn_lang_forward.1} parent=11 // pred_region
          _
        $region32: #{visn_lang_forward.1} parent=11 // pred_fallthru
          _
        // Predicated region
        $region33: #{visn_lang_forward.1} parent=11 // pred_check
          %p698 = pneg %p218
        $region34: #{visn_lang_forward.1} parent=11 // pred_check_branch
          %700 = sbr.rel (%p698) target = $region36
        $region35: #{visn_lang_forward.1} parent=11 // pred_region
          _
        $region36: #{visn_lang_forward.1} parent=11 // pred_fallthru
          _
        // Predicated region
        $region37: #{visn_lang_forward.1} parent=11 // pred_check
          %p701 = pneg %p239
        $region38: #{visn_lang_forward.1} parent=11 // pred_check_branch
          %703 = sbr.rel (%p701) target = $region40
        $region39: #{visn_lang_forward.1} parent=11 // pred_region
          %s705 = ssub.s32 8192, 8192
          %706 = vsyncadd [#allocation6], %s705
          %s707 = sshll.u32 [#allocation5], 4
          %s708 = int_to_ptr.vmem [resolvable:$true] %s707
          %713 = dma.hbm_to_vmem [thread:$0]  %s8, 8192, %s708, [#allocation6], 256, 256, 16
        $region40: #{visn_lang_forward.1} parent=11 // pred_fallthru
          _
        // Predicated region
        $region41: #{visn_lang_forward.1} parent=11 // pred_check
          %p714 = pneg %p260
        $region42: #{visn_lang_forward.1} parent=11 // pred_check_branch
          %716 = sbr.rel (%p714) target = $region44
        $region43: #{visn_lang_forward.1} parent=11 // pred_region
          _
        $region44: #{visn_lang_forward.1} parent=11 // pred_fallthru
          _
        // Predicated region
        $region45: #{visn_lang_forward.1} parent=11 // pred_check
          %p717 = pneg %p281
        $region46: #{visn_lang_forward.1} parent=11 // pred_check_branch
          %719 = sbr.rel (%p717) target = $region48
        $region47: #{visn_lang_forward.1} parent=11 // pred_region
          %s721 = ssub.s32 8192, 8192
          %722 = vsyncadd [#allocation6], %s721
          %s723 = sshll.u32 [#allocation7], 4
          %s724 = int_to_ptr.vmem [resolvable:$true] %s723
          %729 = dma.hbm_to_vmem [thread:$0]  %s10, 8192, %s724, [#allocation6], 64, 64, 4
        $region48: #{visn_lang_forward.1} parent=11 // pred_fallthru
          _
        // Predicated region
        $region49: #{visn_lang_forward.1} parent=11 // pred_check
          %p730 = pneg %p302
        $region50: #{visn_lang_forward.1} parent=11 // pred_check_branch
          %732 = sbr.rel (%p730) target = $region52
        $region51: #{visn_lang_forward.1} parent=11 // pred_region
          _
        $region52: #{visn_lang_forward.1} parent=11 // pred_fallthru
          _
        // Predicated region
        $region53: #{visn_lang_forward.1} parent=11 // pred_check
          %p733 = pneg %p323
        $region54: #{visn_lang_forward.1} parent=11 // pred_check_branch
          %735 = sbr.rel (%p733) target = $region56
        $region55: #{visn_lang_forward.1} parent=11 // pred_region
          _
        $region56: #{visn_lang_forward.1} parent=11 // pred_fallthru
          _
        // Predicated region
        $region57: #{visn_lang_forward.1} parent=11 // pred_check
          %p736 = pneg %p344
        $region58: #{visn_lang_forward.1} parent=11 // pred_check_branch
          %738 = sbr.rel (%p736) target = $region60
        $region59: #{visn_lang_forward.1} parent=11 // pred_region
          _
        $region60: #{visn_lang_forward.1} parent=11 // pred_fallthru
          _
        // Predicated region
        $region61: #{visn_lang_forward.1} parent=11 // pred_check
          %p739 = pneg %p365
        $region62: #{visn_lang_forward.1} parent=11 // pred_check_branch
          %741 = sbr.rel (%p739) target = $region64
        $region63: #{visn_lang_forward.1} parent=11 // pred_region
          _
        $region64: #{visn_lang_forward.1} parent=11 // pred_fallthru
          _
        // Predicated region
        $region65: #{visn_lang_forward.1} parent=11 // pred_check
          %p742 = pneg %p386
        $region66: #{visn_lang_forward.1} parent=11 // pred_check_branch
          %744 = sbr.rel (%p742) target = $region68
        $region67: #{visn_lang_forward.1} parent=11 // pred_region
          _
        $region68: #{visn_lang_forward.1} parent=11 // pred_fallthru
          _
        // Predicated region
        $region69: #{visn_lang_forward.1} parent=11 // pred_check
          %p745 = pneg %p407
        $region70: #{visn_lang_forward.1} parent=11 // pred_check_branch
          %747 = sbr.rel (%p745) target = $region72
        $region71: #{visn_lang_forward.1} parent=11 // pred_region
          _
        $region72: #{visn_lang_forward.1} parent=11 // pred_fallthru
          _
        // Predicated region
        $region73: #{visn_lang_forward.1} parent=11 // pred_check
          %p748 = pneg %p428
        $region74: #{visn_lang_forward.1} parent=11 // pred_check_branch
          %750 = sbr.rel (%p748) target = $region76
        $region75: #{visn_lang_forward.1} parent=11 // pred_region
          _
        $region76: #{visn_lang_forward.1} parent=11 // pred_fallthru
          _
        // Predicated region
        $region77: #{visn_lang_forward.1} parent=11 // pred_check
          %p751 = pneg %p449
        $region78: #{visn_lang_forward.1} parent=11 // pred_check_branch
          %753 = sbr.rel (%p751) target = $region80
        $region79: #{visn_lang_forward.1} parent=11 // pred_region
          _
        $region80: #{visn_lang_forward.1} parent=11 // pred_fallthru
          _
        // Predicated region
        $region81: #{visn_lang_forward.1} parent=11 // pred_check
          %p754 = pneg %p470
        $region82: #{visn_lang_forward.1} parent=11 // pred_check_branch
          %756 = sbr.rel (%p754) target = $region84
        $region83: #{visn_lang_forward.1} parent=11 // pred_region
          _
        $region84: #{visn_lang_forward.1} parent=11 // pred_fallthru
          _
        // Predicated region
        $region85: #{visn_lang_forward.1} parent=11 // pred_check
          %p757 = pneg %p491
        $region86: #{visn_lang_forward.1} parent=11 // pred_check_branch
          %759 = sbr.rel (%p757) target = $region88
        $region87: #{visn_lang_forward.1} parent=11 // pred_region
          %s761 = ssub.s32 16384, 16384
          %762 = vsyncadd [#allocation9], %s761
          %s763 = sshll.u32 [#allocation8], 4
          %s764 = int_to_ptr.vmem [resolvable:$true] %s763
          %769 = dma.hbm_to_vmem [thread:$0]  %s20, 16384, %s764, [#allocation9], 256, 256, 16
        $region88: #{visn_lang_forward.1} parent=11 // pred_fallthru
          _
        // Predicated region
        $region89: #{visn_lang_forward.1} parent=11 // pred_check
          %p770 = pneg %p512
        $region90: #{visn_lang_forward.1} parent=11 // pred_check_branch
          %772 = sbr.rel (%p770) target = $region92
        $region91: #{visn_lang_forward.1} parent=11 // pred_region
          _
        $region92: #{visn_lang_forward.1} parent=11 // pred_fallthru
          _
        // Predicated region
        $region93: #{visn_lang_forward.1} parent=11 // pred_check
          %p773 = pneg %p533
        $region94: #{visn_lang_forward.1} parent=11 // pred_check_branch
          %775 = sbr.rel (%p773) target = $region96
        $region95: #{visn_lang_forward.1} parent=11 // pred_region
          %s777 = ssub.s32 16384, 16384
          %778 = vsyncadd [#allocation9], %s777
          %s779 = sshll.u32 [#allocation10], 4
          %s780 = int_to_ptr.vmem [resolvable:$true] %s779
          %785 = dma.hbm_to_vmem [thread:$0]  %s22, 16384, %s780, [#allocation9], 256, 256, 16
        $region96: #{visn_lang_forward.1} parent=11 // pred_fallthru
          _
        // Predicated region
        $region97: #{visn_lang_forward.1} parent=11 // pred_check
          %p786 = pneg %p554
        $region98: #{visn_lang_forward.1} parent=11 // pred_check_branch
          %788 = sbr.rel (%p786) target = $region100
        $region99: #{visn_lang_forward.1} parent=11 // pred_region
          _
        $region100: #{visn_lang_forward.1} parent=11 // pred_fallthru
          _
      $region12: #{visn_lang_forward.1} parent=5 // pred_fallthru
        _
      %p789 = scmp.lt.s32.totalorder %s40, 2
      // Predicated region
      $region101: #{visn_lang_forward.1} parent=5 // pred_check
        %p790 = pneg %p789
      $region102: #{visn_lang_forward.1} parent=5 // pred_check_branch
        %792 = sbr.rel (%p790) target = $region104
      $region103: #{visn_lang_forward.1} parent=5 // pred_region
        // Predicated region
        $region105: #{visn_lang_forward.1} parent=103 // pred_check
          %p793 = pneg %p60
        $region106: #{visn_lang_forward.1} parent=103 // pred_check_branch
          %795 = sbr.rel (%p793) target = $region108
        $region107: #{visn_lang_forward.1} parent=103 // pred_region
          %p796 = scmp.lt.s32.totalorder %s40, 1
          %s797 = scalar_select %p796, %s40, 1
          %s798 = smul.addr %s797, 8
          %s799 = scalar_lea.vmem %s0, %s798
        $region108: #{visn_lang_forward.1} parent=103 // pred_fallthru
          _
        // Predicated region
        $region109: #{visn_lang_forward.1} parent=103 // pred_check
          %p800 = pneg %p86
        $region110: #{visn_lang_forward.1} parent=103 // pred_check_branch
          %802 = sbr.rel (%p800) target = $region112
        $region111: #{visn_lang_forward.1} parent=103 // pred_region
          %p803 = scmp.lt.s32.totalorder %s40, 1
          %s804 = scalar_select %p803, %s40, 1
          %s805 = scalar_lea.vmem %s1, %s804
        $region112: #{visn_lang_forward.1} parent=103 // pred_fallthru
          _
      $region104: #{visn_lang_forward.1} parent=5 // pred_fallthru
        _
      %p806 = scmp.le.s32.totalorder 1, %s40
      %p807 = scmp.lt.s32.totalorder %s40, 3
      %p808 = pnand %p806, %p807
      %p809 = pneg %p808
      // Predicated region
      $region113: #{visn_lang_forward.1} parent=5 // pred_check
        _
      $region114: #{visn_lang_forward.1} parent=5 // pred_check_branch
        %811 = sbr.rel (%p808) target = $region116
      $region115: #{visn_lang_forward.1} parent=5 // pred_region
        %s812 = ssub.s32 %s40, 1
        // Predicated region
        $region117: #{visn_lang_forward.1} parent=115 // pred_check
          %p813 = pneg %p155
        $region118: #{visn_lang_forward.1} parent=115 // pred_check_branch
          %815 = sbr.rel (%p813) target = $region120
        $region119: #{visn_lang_forward.1} parent=115 // pred_region
          %816 = dma.done [#allocation3], 6144
        $region120: #{visn_lang_forward.1} parent=115 // pred_fallthru
          _
        // Predicated region
        $region121: #{visn_lang_forward.1} parent=115 // pred_check
          %p817 = pneg %p239
        $region122: #{visn_lang_forward.1} parent=115 // pred_check_branch
          %819 = sbr.rel (%p817) target = $region124
        $region123: #{visn_lang_forward.1} parent=115 // pred_region
          %820 = dma.done [#allocation6], 8192
        $region124: #{visn_lang_forward.1} parent=115 // pred_fallthru
          _
        // Predicated region
        $region125: #{visn_lang_forward.1} parent=115 // pred_check
          %p821 = pneg %p281
        $region126: #{visn_lang_forward.1} parent=115 // pred_check_branch
          %823 = sbr.rel (%p821) target = $region128
        $region127: #{visn_lang_forward.1} parent=115 // pred_region
          %824 = dma.done [#allocation6], 8192
        $region128: #{visn_lang_forward.1} parent=115 // pred_fallthru
          _
        // Predicated region
        $region129: #{visn_lang_forward.1} parent=115 // pred_check
          %p825 = pneg %p491
        $region130: #{visn_lang_forward.1} parent=115 // pred_check_branch
          %827 = sbr.rel (%p825) target = $region132
        $region131: #{visn_lang_forward.1} parent=115 // pred_region
          %828 = dma.done [#allocation9], 16384
        $region132: #{visn_lang_forward.1} parent=115 // pred_fallthru
          _
        // Predicated region
        $region133: #{visn_lang_forward.1} parent=115 // pred_check
          %p829 = pneg %p533
        $region134: #{visn_lang_forward.1} parent=115 // pred_check_branch
          %831 = sbr.rel (%p829) target = $region136
        $region135: #{visn_lang_forward.1} parent=115 // pred_region
          %832 = dma.done [#allocation9], 16384
        $region136: #{visn_lang_forward.1} parent=115 // pred_fallthru
          _
        %p833 = scmp.lt.s32.totalorder %s45, 1
        %s834 = scalar_select %p833, %s45, 1
        %s835 = smul.addr %s834, 8
        %s836 = scalar_lea.vmem %s0, %s835
        %p837 = pneg %p66
        %p838 = pneg %p63
        %p839 = scmp.lt.s32.totalorder %s45, 1
        %s840 = scalar_select %p839, %s45, 1
        %s841 = scalar_lea.vmem %s1, %s840
        %p842 = pneg %p92
        %p843 = pneg %p89
        %p844 = pneg %p113
        %p845 = pneg %p110
        %p846 = pneg %p134
        %p847 = pneg %p131
        %p848 = pneg %p155
        %p849 = pneg %p152
        %p850 = pneg %p176
        %p851 = pneg %p173
        %p852 = pneg %p197
        %p853 = pneg %p194
        %p854 = pneg %p218
        %p855 = pneg %p215
        %p856 = pneg %p239
        %p857 = pneg %p236
        %p858 = pneg %p260
        %p859 = pneg %p257
        %p860 = pneg %p281
        %p861 = pneg %p278
        %p862 = pneg %p302
        %p863 = pneg %p299
        %p864 = pneg %p323
        %p865 = pneg %p320
        %p866 = pneg %p344
        %p867 = pneg %p341
        %p868 = pneg %p365
        %p869 = pneg %p362
        %p870 = pneg %p386
        %p871 = pneg %p383
        %p872 = pneg %p407
        %p873 = pneg %p404
        %p874 = pneg %p428
        %p875 = pneg %p425
        %p876 = pneg %p449
        %p877 = pneg %p446
        %p878 = pneg %p470
        %p879 = pneg %p467
        %p880 = pneg %p491
        %p881 = pneg %p488
        %p882 = pneg %p512
        %p883 = pneg %p509
        %p884 = pneg %p533
        %p885 = pneg %p530
        %p886 = pneg %p554
        %p887 = pneg %p551
        %p888 = pneg %p580
        %p889 = pneg %p577
        %s890 = sand.u32 %s567, 1
        %s891 = scalar_lea.sflag [#allocation4], %s890
        %s892 = sand.u32 %s567, 1
        %s893 = smul.addr %s892, 8
        %s894 = scalar_lea.vmem [#allocation11], %s893
        %p895 = pneg %p606
        %p896 = pneg %p603
        %s897 = sand.u32 %s593, 1
        %s898 = sand.u32 %s593, 1
        %s899 = smul.addr %s898, 16
        %s900 = scalar_lea.vmem [#allocation12], %s899
        %p901 = pneg %p632
        %p902 = pneg %p629
        %p903 = scmp.lt.s32.totalorder %s45, 1
        %s904 = scalar_select %p903, %s45, 1
        %s905 = scalar_lea.vmem %s26, %s904
        %p906 = pneg %p658
        %p907 = pneg %p655
        %p908 = scmp.lt.s32.totalorder %s45, 1
        %s909 = scalar_select %p908, %s45, 1
        %s910 = smul.addr %s909, 4
        %s911 = smul.addr %s910, 8
        %s912 = scalar_lea.vmem %s27, %s911
        %p913 = scmp.lt.s32.totalorder %s45, 1
        %s914 = scalar_select %p913, %s45, 1
        %s915 = smul.addr %s914, 8
        %s916 = scalar_lea.vmem %s0, %s915
        %p917 = scmp.lt.s32.totalorder %s45, 1
        %s918 = scalar_select %p917, %s45, 1
        %s919 = scalar_lea.vmem %s1, %s918
        %p920 = scmp.lt.s32.totalorder %s45, 1
        %s921 = scalar_select %p920, %s45, 1
        %s922 = scalar_lea.vmem %s26, %s921
        %p923 = scmp.lt.s32.totalorder %s45, 1
        %s924 = scalar_select %p923, %s45, 1
        %s925 = smul.addr %s924, 4
        %s926 = smul.addr %s925, 8
        %s927 = scalar_lea.vmem %s27, %s926
        %v929 = vld [vmem:[%s916] sm:$0xff]
        %v930 = vld [vmem:[%s2] sm:$0x1]
        %v931 = vld [vmem:[%s3] sm:$0x1]
        %932 = vadd.xlane.f32.xlu0 %v929
        %v933 = vpop.xlane.xlu0 %932
        %v934 = vrcp.pop 128.0
        %v935 = vmul.f32 %v933, %v934
        %v936 = vsub.f32 %v929, %v935
        %v937 = vmul.f32 %v936, %v936
        %938 = vadd.xlane.f32.xlu0 %v937
        %v939 = vpop.xlane.xlu0 %938
        %v940 = vmul.f32 %v939, %v934
        %v941 = vadd.f32 %v940, 1e-12
        %v942 = vrsqrt.pop %v941
        %v943 = vmul.f32 %v936, %v942
        %v945 = vlaneseq
        %v946 = vshrl.u32 %v945, 7
        %v947 = vsub.s32 0, %v946
        %v948 = vrot.slane %v930, %v947
        %v950 = vmul.f32 %v943, %v948
        %v952 = vlaneseq
        %v953 = vshrl.u32 %v952, 7
        %v954 = vsub.s32 0, %v953
        %v955 = vrot.slane %v931, %v954
        %v957 = vadd.f32 %v950, %v955
        %958 = vst [vmem:[%s894] sm:$0xff] %v957
        %v959 = vld [vmem:[%s919] sm:$0x1]
        loop: start=0, step=1, limit=2
        $region137: #{visn_lang_forward.1} parent=115 // loop_pre_header
          _
        $region138: #{visn_lang_forward.1} parent=115 // loop_header
          %s961 = sphi 0, %s965
          %p962 = scmp.ge.s32.totalorder %s961, 2
          %v966 = vphi %v957, %v2639
        $region139: #{visn_lang_forward.1} parent=115 // loop_header_branch
          %964 = sbr.rel (%p962) target = $region143
        $region140: #{visn_lang_forward.1} parent=115 // loop_body
          %v967 = vpack.c.bf16 %v966, %v966
          %s968 = smul.u32 %s961, 48
          %s969 = smul.addr %s968, 4
          %s970 = scalar_lea.vmem [#allocation2], %s969
          %v971 = vld [vmem:[%s970] sm:$0xff]
          %v972 = vld [vmem:[%s970 + $0x8] sm:$0xf]
          %v973 = vld [vmem:[%s970 + $0xc] sm:$0xff]
          %v974 = vld [vmem:[%s970 + $0x14] sm:$0xf]
          %v975 = vld [vmem:[%s970 + $0x18] sm:$0xff]
          %v976 = vld [vmem:[%s970 + $0x20] sm:$0xf]
          %v977 = vld [vmem:[%s970 + $0x24] sm:$0xff]
          %v978 = vld [vmem:[%s970 + $0x2c] sm:$0xf]
          %v979 = vld [vmem:[%s970 + $0x30] sm:$0xff]
          %v980 = vld [vmem:[%s970 + $0x38] sm:$0xf]
          %v981 = vld [vmem:[%s970 + $0x3c] sm:$0xff]
          %v982 = vld [vmem:[%s970 + $0x44] sm:$0xf]
          %v983 = vld [vmem:[%s970 + $0x48] sm:$0xff]
          %v984 = vld [vmem:[%s970 + $0x50] sm:$0xf]
          %v985 = vld [vmem:[%s970 + $0x54] sm:$0xff]
          %v986 = vld [vmem:[%s970 + $0x5c] sm:$0xf]
          %v987 = vld [vmem:[%s970 + $0x60] sm:$0xff]
          %v988 = vld [vmem:[%s970 + $0x68] sm:$0xf]
          %v989 = vld [vmem:[%s970 + $0x6c] sm:$0xff]
          %v990 = vld [vmem:[%s970 + $0x74] sm:$0xf]
          %v991 = vld [vmem:[%s970 + $0x78] sm:$0xff]
          %v992 = vld [vmem:[%s970 + $0x80] sm:$0xf]
          %v993 = vld [vmem:[%s970 + $0x84] sm:$0xff]
          %v994 = vld [vmem:[%s970 + $0x8c] sm:$0xf]
          %v995 = vld [vmem:[%s970 + $0x90] sm:$0xff]
          %v996 = vld [vmem:[%s970 + $0x98] sm:$0xf]
          %v997 = vld [vmem:[%s970 + $0x9c] sm:$0xff]
          %v998 = vld [vmem:[%s970 + $0xa4] sm:$0xf]
          %v999 = vld [vmem:[%s970 + $0xa8] sm:$0xff]
          %v1000 = vld [vmem:[%s970 + $0xb0] sm:$0xf]
          %v1001 = vld [vmem:[%s970 + $0xb4] sm:$0xff]
          %v1002 = vld [vmem:[%s970 + $0xbc] sm:$0xf]
          %s1003 = smul.u32 %s961, 3
          %s1004 = scalar_lea.vmem %s5, %s1003
          %v1005 = vld [vmem:[%s1004] sm:$0x7]
          %v1007 = vlaneseq
          %v1008 = vshrl.u32 %v1007, 7
          %v1009 = vsub.s32 0, %v1008
          %v1010 = vrot.slane %v1005, %v1009
          %v1011 = vlaneseq
          %v1012 = vshrl.u32 %v1011, 7
          %v1013 = vsub.s32 1, %v1012
          %v1014 = vrot.slane %v1005, %v1013
          %v1015 = vlaneseq
          %v1016 = vshrl.u32 %v1015, 7
          %v1017 = vsub.s32 2, %v1016
          %v1018 = vrot.slane %v1005, %v1017
          %v1054 = vunpack.c.l.b16 %v971
          %v1055 = vunpack.c.h.b16 %v971
          %v1056 = vunpack.c.l.b16 %v972
          %v1057 = vunpack.c.l.b16 %v973
          %v1058 = vunpack.c.h.b16 %v973
          %v1059 = vunpack.c.l.b16 %v974
          %v1060 = vunpack.c.l.b16 %v975
          %v1061 = vunpack.c.h.b16 %v975
          %v1062 = vunpack.c.l.b16 %v976
          %v1063 = vunpack.c.l.b16 %v977
          %v1064 = vunpack.c.h.b16 %v977
          %v1065 = vunpack.c.l.b16 %v978
          %v1066 = vunpack.c.l.b16 %v979
          %v1067 = vunpack.c.h.b16 %v979
          %v1068 = vunpack.c.l.b16 %v980
          %v1069 = vunpack.c.l.b16 %v981
          %v1070 = vunpack.c.h.b16 %v981
          %v1071 = vunpack.c.l.b16 %v982
          %v1072 = vunpack.c.l.b16 %v983
          %v1073 = vunpack.c.h.b16 %v983
          %v1074 = vunpack.c.l.b16 %v984
          %v1075 = vunpack.c.l.b16 %v985
          %v1076 = vunpack.c.h.b16 %v985
          %v1077 = vunpack.c.l.b16 %v986
          %v1078 = vunpack.c.l.b16 %v987
          %v1079 = vunpack.c.h.b16 %v987
          %v1080 = vunpack.c.l.b16 %v988
          %v1081 = vunpack.c.l.b16 %v989
          %v1082 = vunpack.c.h.b16 %v989
          %v1083 = vunpack.c.l.b16 %v990
          %v1084 = vunpack.c.l.b16 %v991
          %v1085 = vunpack.c.h.b16 %v991
          %v1086 = vunpack.c.l.b16 %v992
          %v1087 = vunpack.c.l.b16 %v993
          %v1088 = vunpack.c.h.b16 %v993
          %v1089 = vunpack.c.l.b16 %v994
          %v1090 = vunpack.c.l.b16 %v995
          %v1091 = vunpack.c.h.b16 %v995
          %v1092 = vunpack.c.l.b16 %v996
          %v1093 = vunpack.c.l.b16 %v997
          %v1094 = vunpack.c.h.b16 %v997
          %v1095 = vunpack.c.l.b16 %v998
          %v1096 = vunpack.c.l.b16 %v999
          %v1097 = vunpack.c.h.b16 %v999
          %v1098 = vunpack.c.l.b16 %v1000
          %v1099 = vunpack.c.l.b16 %v1001
          %v1100 = vunpack.c.h.b16 %v1001
          %v1101 = vunpack.c.l.b16 %v1002
          %v1102 = vpack.c.b16 %v1057, %v1054
          %v1103 = vpack.c.b16 %v1058, %v1055
          %v1104 = vpack.c.b16 %v1059, %v1056
          %v1105 = vpack.c.b16 %v1063, %v1060
          %v1106 = vpack.c.b16 %v1064, %v1061
          %v1107 = vpack.c.b16 %v1065, %v1062
          %v1108 = vpack.c.b16 %v1069, %v1066
          %v1109 = vpack.c.b16 %v1070, %v1067
          %v1110 = vpack.c.b16 %v1071, %v1068
          %v1111 = vpack.c.b16 %v1075, %v1072
          %v1112 = vpack.c.b16 %v1076, %v1073
          %v1113 = vpack.c.b16 %v1077, %v1074
          %v1114 = vpack.c.b16 %v1081, %v1078
          %v1115 = vpack.c.b16 %v1082, %v1079
          %v1116 = vpack.c.b16 %v1083, %v1080
          %v1117 = vpack.c.b16 %v1087, %v1084
          %v1118 = vpack.c.b16 %v1088, %v1085
          %v1119 = vpack.c.b16 %v1089, %v1086
          %v1120 = vpack.c.b16 %v1093, %v1090
          %v1121 = vpack.c.b16 %v1094, %v1091
          %v1122 = vpack.c.b16 %v1095, %v1092
          %v1123 = vpack.c.b16 %v1099, %v1096
          %v1124 = vpack.c.b16 %v1100, %v1097
          %v1125 = vpack.c.b16 %v1101, %v1098
          %1150 = vmatprep.subr.bf16.mxu0 %v1103
          %1151 = vmatpush1.bf16.msra.mxu0 %v1102
          %1152 = vmatprep.subr.bf16.mxu0 %v1106
          %1153 = vmatpush1.bf16.msra.mxu0 %v1105
          %1154 = vmatprep.subr.bf16.mxu0 %v1109
          %1155 = vmatpush1.bf16.msra.mxu0 %v1108
          %1156 = vmatprep.subr.bf16.mxu0 %v1112
          %1157 = vmatpush1.bf16.msra.mxu0 %v1111
          %1158 = vmatprep.subr.bf16.mxu0 %v1115
          %1159 = vmatpush1.bf16.msra.mxu0 %v1114
          %1160 = vmatprep.subr.bf16.mxu0 %v1118
          %1161 = vmatpush1.bf16.msra.mxu0 %v1117
          %1162 = vmatprep.subr.bf16.mxu0 %v1121
          %1163 = vmatpush1.bf16.msra.mxu0 %v1120
          %1164 = vmatprep.subr.bf16.mxu0 %v1124
          %1165 = vmatpush1.bf16.msra.mxu0 %v1123
          %1166 = vmatprep.subr.bf16.mxu0 0
          %1167 = vmatpush1.bf16.msra.mxu0 0
          %1168 = vmatprep.subr.bf16.mxu0 0
          %1169 = vmatpush1.bf16.msra.mxu0 0
          %1170 = vmatprep.subr.bf16.mxu0 0
          %1171 = vmatpush1.bf16.msra.mxu0 0
          %1172 = vmatprep.subr.bf16.mxu0 0
          %1173 = vmatpush1.bf16.msra.mxu0 0
          %1174 = vmatprep.subr.bf16.mxu0 0
          %1175 = vmatpush1.bf16.msra.mxu0 0
          %1176 = vmatprep.subr.bf16.mxu0 0
          %1177 = vmatpush1.bf16.msra.mxu0 0
          %1178 = vmatprep.subr.bf16.mxu0 0
          %1179 = vmatpush1.bf16.msra.mxu0 0
          %1180 = vmatprep.subr.bf16.mxu0 0
          %1181 = vmatpush1.bf16.msra.mxu0 0
          %1182 = vmatprep.mubr.bf16.mxu0 0
          %1183 = vmatmul.mubr.bf16.gmra.mrb[0].mxu0 %v967
          %v1184 = vpop.f32.mrb[0].mxu0
          %v1185 = vadd.f32 %v1010, %v1184
          %v1186 = vpop.f32.mrb[0].mxu0
          %v1187 = vadd.f32 %v1014, %v1186
          %v1188 = vpop.f32.mrb[0].mxu0
          %v1189 = vpop.f32.mrb[0].mxu0
          %1190 = vdwg.mxu0
          %1191 = vmatprep.subr.bf16.mxu0 0
          %1192 = vmatpush1.bf16.msra.mxu0 %v1104
          %1193 = vmatprep.subr.bf16.mxu0 0
          %1194 = vmatpush1.bf16.msra.mxu0 %v1107
          %1195 = vmatprep.subr.bf16.mxu0 0
          %1196 = vmatpush1.bf16.msra.mxu0 %v1110
          %1197 = vmatprep.subr.bf16.mxu0 0
          %1198 = vmatpush1.bf16.msra.mxu0 %v1113
          %1199 = vmatprep.subr.bf16.mxu0 0
          %1200 = vmatpush1.bf16.msra.mxu0 %v1116
          %1201 = vmatprep.subr.bf16.mxu0 0
          %1202 = vmatpush1.bf16.msra.mxu0 %v1119
          %1203 = vmatprep.subr.bf16.mxu0 0
          %1204 = vmatpush1.bf16.msra.mxu0 %v1122
          %1205 = vmatprep.subr.bf16.mxu0 0
          %1206 = vmatpush1.bf16.msra.mxu0 %v1125
          %1207 = vmatprep.subr.bf16.mxu0 0
          %1208 = vmatpush1.bf16.msra.mxu0 0
          %1209 = vmatprep.subr.bf16.mxu0 0
          %1210 = vmatpush1.bf16.msra.mxu0 0
          %1211 = vmatprep.subr.bf16.mxu0 0
          %1212 = vmatpush1.bf16.msra.mxu0 0
          %1213 = vmatprep.subr.bf16.mxu0 0
          %1214 = vmatpush1.bf16.msra.mxu0 0
          %1215 = vmatprep.subr.bf16.mxu0 0
          %1216 = vmatpush1.bf16.msra.mxu0 0
          %1217 = vmatprep.subr.bf16.mxu0 0
          %1218 = vmatpush1.bf16.msra.mxu0 0
          %1219 = vmatprep.subr.bf16.mxu0 0
          %1220 = vmatpush1.bf16.msra.mxu0 0
          %1221 = vmatprep.subr.bf16.mxu0 0
          %1222 = vmatpush1.bf16.msra.mxu0 0
          %1223 = vmatprep.mubr.bf16.mxu0 0
          %1224 = vmatmul.mubr.bf16.gmra.mrb[0].mxu0 %v967
          %v1225 = vpop.f32.mrb[0].mxu0
          %v1226 = vadd.f32 %v1018, %v1225
          %v1227 = vpop.f32.mrb[0].mxu0
          %v1228 = vpop.f32.mrb[0].mxu0
          %v1229 = vpop.f32.mrb[0].mxu0
          %1230 = vdwg.mxu0
          %v1231 = vpack.c.bf16 %v1185, %v1185
          %v1232 = vpack.c.bf16 %v1187, %v1187
          %v1233 = vpack.c.bf16 %v1226, %v1226
          %1235 = vrot.lane.b32.xlu0 %v1231, 64
          %v1236 = vpop.permute.xlu0 %1235
          %1238 = vrot.lane.b32.xlu0 %v1232, 64
          %v1239 = vpop.permute.xlu0 %1238
          %1242 = vrot.lane.b32.xlu0 %v1233, 64
          %v1243 = vpop.permute.xlu0 %1242
          %1245 = vxpose.xlu0.c.b16.start [1/8] %v1232, 128
          %1246 = vxpose.xlu0.c.b16.cont [2/8] 0, 128
          %1247 = vxpose.xlu0.c.b16.cont [3/8] 0, 128
          %1248 = vxpose.xlu0.c.b16.cont [4/8] 0, 128
          %1249 = vxpose.xlu0.c.b16.cont [5/8] 0, 128
          %1250 = vxpose.xlu0.c.b16.cont [6/8] 0, 128
          %1251 = vxpose.xlu0.c.b16.cont [7/8] 0, 128
          %1252 = vxpose.xlu0.c.b16.end [8/8] 0, 128
          %v1253 = vpop.trf.xlu0
          %v1254 = vpop.trf.xlu0
          %v1255 = vpop.trf.xlu0
          %v1256 = vpop.trf.xlu0
          %v1257 = vpop.trf.xlu0
          %v1258 = vpop.trf.xlu0
          %v1259 = vpop.trf.xlu0
          %v1260 = vpop.trf.xlu0
          %1261 = vxpose.xlu0.c.b16.start [1/8] %v1239, 128
          %1262 = vxpose.xlu0.c.b16.cont [2/8] 0, 128
          %1263 = vxpose.xlu0.c.b16.cont [3/8] 0, 128
          %1264 = vxpose.xlu0.c.b16.cont [4/8] 0, 128
          %1265 = vxpose.xlu0.c.b16.cont [5/8] 0, 128
          %1266 = vxpose.xlu0.c.b16.cont [6/8] 0, 128
          %1267 = vxpose.xlu0.c.b16.cont [7/8] 0, 128
          %1268 = vxpose.xlu0.c.b16.end [8/8] 0, 128
          %v1269 = vpop.trf.xlu0
          %v1270 = vpop.trf.xlu0
          %v1271 = vpop.trf.xlu0
          %v1272 = vpop.trf.xlu0
          %v1273 = vpop.trf.xlu0
          %v1274 = vpop.trf.xlu0
          %v1275 = vpop.trf.xlu0
          %v1276 = vpop.trf.xlu0
          %vm1277 = vcmask 523264
          %v1279 = vsel %vm1277, %v1231, 0
          %1281 = vmatprep.subr.bf16.mxu0 0
          %1282 = vmatpush1.bf16.msra.mxu0 %v1253
          %1283 = vmatprep.subr.bf16.mxu0 0
          %1284 = vmatpush1.bf16.msra.mxu0 %v1254
          %1285 = vmatprep.subr.bf16.mxu0 0
          %1286 = vmatpush1.bf16.msra.mxu0 %v1255
          %1287 = vmatprep.subr.bf16.mxu0 0
          %1288 = vmatpush1.bf16.msra.mxu0 %v1256
          %1289 = vmatprep.subr.bf16.mxu0 0
          %1290 = vmatpush1.bf16.msra.mxu0 0
          %1291 = vmatprep.subr.bf16.mxu0 0
          %1292 = vmatpush1.bf16.msra.mxu0 0
          %1293 = vmatprep.subr.bf16.mxu0 0
          %1294 = vmatpush1.bf16.msra.mxu0 0
          %1295 = vmatprep.subr.bf16.mxu0 0
          %1296 = vmatpush1.bf16.msra.mxu0 0
          %1297 = vmatprep.subr.bf16.mxu0 0
          %1298 = vmatpush1.bf16.msra.mxu0 0
          %1299 = vmatprep.subr.bf16.mxu0 0
          %1300 = vmatpush1.bf16.msra.mxu0 0
          %1301 = vmatprep.subr.bf16.mxu0 0
          %1302 = vmatpush1.bf16.msra.mxu0 0
          %1303 = vmatprep.subr.bf16.mxu0 0
          %1304 = vmatpush1.bf16.msra.mxu0 0
          %1305 = vmatprep.subr.bf16.mxu0 0
          %1306 = vmatpush1.bf16.msra.mxu0 0
          %1307 = vmatprep.subr.bf16.mxu0 0
          %1308 = vmatpush1.bf16.msra.mxu0 0
          %1309 = vmatprep.subr.bf16.mxu0 0
          %1310 = vmatpush1.bf16.msra.mxu0 0
          %1311 = vmatprep.subr.bf16.mxu0 0
          %1312 = vmatpush1.bf16.msra.mxu0 0
          %1313 = vmatprep.mubr.bf16.mxu0 0
          %1314 = vmatmul.mubr.bf16.gmra.mrb[0].mxu0 %v1279
          %v1315 = vpop.f32.mrb[0].mxu0
          %v1316 = vadd.f32 0.0, %v1315
          %v1317 = vpop.f32.mrb[0].mxu0
          %v1318 = vpop.f32.mrb[0].mxu0
          %v1319 = vpop.f32.mrb[0].mxu0
          %1320 = vdwg.mxu0
          %v1322 = vsel %vm1277, %v1236, 0
          %1324 = vmatprep.subr.bf16.mxu0 0
          %1325 = vmatpush1.bf16.msra.mxu0 %v1269
          %1326 = vmatprep.subr.bf16.mxu0 0
          %1327 = vmatpush1.bf16.msra.mxu0 %v1270
          %1328 = vmatprep.subr.bf16.mxu0 0
          %1329 = vmatpush1.bf16.msra.mxu0 %v1271
          %1330 = vmatprep.subr.bf16.mxu0 0
          %1331 = vmatpush1.bf16.msra.mxu0 %v1272
          %1332 = vmatprep.subr.bf16.mxu0 0
          %1333 = vmatpush1.bf16.msra.mxu0 0
          %1334 = vmatprep.subr.bf16.mxu0 0
          %1335 = vmatpush1.bf16.msra.mxu0 0
          %1336 = vmatprep.subr.bf16.mxu0 0
          %1337 = vmatpush1.bf16.msra.mxu0 0
          %1338 = vmatprep.subr.bf16.mxu0 0
          %1339 = vmatpush1.bf16.msra.mxu0 0
          %1340 = vmatprep.subr.bf16.mxu0 0
          %1341 = vmatpush1.bf16.msra.mxu0 0
          %1342 = vmatprep.subr.bf16.mxu0 0
          %1343 = vmatpush1.bf16.msra.mxu0 0
          %1344 = vmatprep.subr.bf16.mxu0 0
          %1345 = vmatpush1.bf16.msra.mxu0 0
          %1346 = vmatprep.subr.bf16.mxu0 0
          %1347 = vmatpush1.bf16.msra.mxu0 0
          %1348 = vmatprep.subr.bf16.mxu0 0
          %1349 = vmatpush1.bf16.msra.mxu0 0
          %1350 = vmatprep.subr.bf16.mxu0 0
          %1351 = vmatpush1.bf16.msra.mxu0 0
          %1352 = vmatprep.subr.bf16.mxu0 0
          %1353 = vmatpush1.bf16.msra.mxu0 0
          %1354 = vmatprep.subr.bf16.mxu0 0
          %1355 = vmatpush1.bf16.msra.mxu0 0
          %1356 = vmatprep.mubr.bf16.mxu0 0
          %1357 = vmatmul.mubr.bf16.gmra.mrb[0].mxu0 %v1322
          %v1358 = vpop.f32.mrb[0].mxu0
          %v1359 = vadd.f32 0.0, %v1358
          %v1360 = vpop.f32.mrb[0].mxu0
          %v1361 = vpop.f32.mrb[0].mxu0
          %v1362 = vpop.f32.mrb[0].mxu0
          %1363 = vdwg.mxu0
          %v1364 = vmul.f32 %v1316, 0.125
          %v1365 = vmul.f32 %v1359, 0.125
          %v1367 = vlaneseq
          %v1368 = vshrl.u32 %v1367, 7
          %v1369 = vsub.s32 0, %v1368
          %v1370 = vrot.slane %v959, %v1369
          %v1372 = vadd.f32 %v1364, %v1370
          %v1373 = vadd.f32 %v1365, %v1370
          %vm1374 = vcmask 64512
          %v1375 = vsel %vm1374, %v1372, -inf
          %1376 = vmax.xlane.f32.xlu0 %v1375
          %v1377 = vpop.xlane.xlu0 %1376
          %v1378 = vsel %vm1374, %v1373, -inf
          %1379 = vmax.xlane.f32.xlu0 %v1378
          %v1380 = vpop.xlane.xlu0 %1379
          %v1381 = vsub.f32 %v1372, %v1377
          %v1382 = vsub.f32 %v1373, %v1380
          %v1383 = vmul.f32 %v1381, 1.442695
          %v1384 = vpow.pop %v1383
          %v1385 = vmul.f32 %v1382, 1.442695
          %v1386 = vpow.pop %v1385
          %v1387 = vsel %vm1374, %v1384, 0.0
          %1388 = vadd.xlane.f32.xlu0 %v1387
          %v1389 = vpop.xlane.xlu0 %1388
          %v1390 = vsel %vm1374, %v1386, 0.0
          %1391 = vadd.xlane.f32.xlu0 %v1390
          %v1392 = vpop.xlane.xlu0 %1391
          %v1393 = vrcp.pop %v1389
          %v1394 = vrcp.pop %v1392
          %v1395 = vmul.f32 %v1384, %v1393
          %v1396 = vmul.f32 %v1386, %v1394
          %v1397 = vpack.c.bf16 %v1395, %v1395
          %v1398 = vpack.c.bf16 %v1396, %v1396
          %1399 = vxpose.xlu0.c.b16.start [1/8] %v1233, 128
          %1400 = vxpose.xlu0.c.b16.cont [2/8] 0, 128
          %1401 = vxpose.xlu0.c.b16.cont [3/8] 0, 128
          %1402 = vxpose.xlu0.c.b16.cont [4/8] 0, 128
          %1403 = vxpose.xlu0.c.b16.cont [5/8] 0, 128
          %1404 = vxpose.xlu0.c.b16.cont [6/8] 0, 128
          %1405 = vxpose.xlu0.c.b16.cont [7/8] 0, 128
          %1406 = vxpose.xlu0.c.b16.end [8/8] 0, 128
          %v1407 = vpop.trf.xlu0
          %v1408 = vpop.trf.xlu0
          %v1409 = vpop.trf.xlu0
          %v1410 = vpop.trf.xlu0
          %v1411 = vpop.trf.xlu0
          %v1412 = vpop.trf.xlu0
          %v1413 = vpop.trf.xlu0
          %v1414 = vpop.trf.xlu0
          %1415 = vxpose.xlu0.c.b16.start [1/8] %v1243, 128
          %1416 = vxpose.xlu0.c.b16.cont [2/8] 0, 128
          %1417 = vxpose.xlu0.c.b16.cont [3/8] 0, 128
          %1418 = vxpose.xlu0.c.b16.cont [4/8] 0, 128
          %1419 = vxpose.xlu0.c.b16.cont [5/8] 0, 128
          %1420 = vxpose.xlu0.c.b16.cont [6/8] 0, 128
          %1421 = vxpose.xlu0.c.b16.cont [7/8] 0, 128
          %1422 = vxpose.xlu0.c.b16.end [8/8] 0, 128
          %v1423 = vpop.trf.xlu0
          %v1424 = vpop.trf.xlu0
          %v1425 = vpop.trf.xlu0
          %v1426 = vpop.trf.xlu0
          %v1427 = vpop.trf.xlu0
          %v1428 = vpop.trf.xlu0
          %v1429 = vpop.trf.xlu0
          %v1430 = vpop.trf.xlu0
          %v1432 = vsel %vm1374, %v1407, 0
          %v1435 = vsel %vm1374, %v1408, 0
          %v1438 = vsel %vm1374, %v1409, 0
          %v1441 = vsel %vm1374, %v1410, 0
          %v1444 = vsel %vm1374, %v1397, 0
          %1446 = vmatprep.subr.bf16.mxu0 0
          %1447 = vmatpush1.bf16.xpose.msra.mxu0 %v1444
          %1448 = vmatprep.subr.bf16.mxu0 0
          %1449 = vmatpush1.bf16.xpose.msra.mxu0 0
          %1450 = vmatprep.subr.bf16.mxu0 0
          %1451 = vmatpush1.bf16.xpose.msra.mxu0 0
          %1452 = vmatprep.subr.bf16.mxu0 0
          %1453 = vmatpush1.bf16.xpose.msra.mxu0 0
          %1454 = vmatprep.subr.bf16.mxu0 0
          %1455 = vmatpush1.bf16.xpose.msra.mxu0 0
          %1456 = vmatprep.subr.bf16.mxu0 0
          %1457 = vmatpush1.bf16.xpose.msra.mxu0 0
          %1458 = vmatprep.subr.bf16.mxu0 0
          %1459 = vmatpush1.bf16.xpose.msra.mxu0 0
          %1460 = vmatprep.subr.bf16.mxu0 0
          %1461 = vmatpush1.bf16.xpose.msra.mxu0 0
          %1462 = vmatprep.subr.bf16.mxu0 0
          %1463 = vmatpush1.bf16.xpose.msra.mxu0 0
          %1464 = vmatprep.subr.bf16.mxu0 0
          %1465 = vmatpush1.bf16.xpose.msra.mxu0 0
          %1466 = vmatprep.subr.bf16.mxu0 0
          %1467 = vmatpush1.bf16.xpose.msra.mxu0 0
          %1468 = vmatprep.subr.bf16.mxu0 0
          %1469 = vmatpush1.bf16.xpose.msra.mxu0 0
          %1470 = vmatprep.subr.bf16.mxu0 0
          %1471 = vmatpush1.bf16.xpose.msra.mxu0 0
          %1472 = vmatprep.subr.bf16.mxu0 0
          %1473 = vmatpush1.bf16.xpose.msra.mxu0 0
          %1474 = vmatprep.subr.bf16.mxu0 0
          %1475 = vmatpush1.bf16.xpose.msra.mxu0 0
          %1476 = vmatprep.subr.bf16.mxu0 0
          %1477 = vmatpush1.bf16.xpose.msra.mxu0 0
          %1478 = vmatprep.mubr.bf16.mxu0 0
          %1479 = vmatmul.mubr.bf16.gmra.mrb[0].mxu0 %v1432
          %v1480 = vpop.f32.mrb[0].mxu0
          %v1481 = vadd.f32 0.0, %v1480
          %v1482 = vpop.f32.mrb[0].mxu0
          %v1483 = vpop.f32.mrb[0].mxu0
          %v1484 = vadd.f32 0.0, %v1483
          %v1485 = vpop.f32.mrb[0].mxu0
          %1486 = vmatprep.mubr.bf16.mxu0 0
          %1487 = vmatmul.mubr.bf16.gmra.mrb[0].mxu0 %v1435
          %v1488 = vpop.f32.mrb[0].mxu0
          %v1489 = vadd.f32 0.0, %v1488
          %v1490 = vpop.f32.mrb[0].mxu0
          %v1491 = vpop.f32.mrb[0].mxu0
          %v1492 = vadd.f32 0.0, %v1491
          %v1493 = vpop.f32.mrb[0].mxu0
          %1494 = vmatprep.mubr.bf16.mxu0 0
          %1495 = vmatmul.mubr.bf16.gmra.mrb[0].mxu0 %v1438
          %v1496 = vpop.f32.mrb[0].mxu0
          %v1497 = vadd.f32 0.0, %v1496
          %v1498 = vpop.f32.mrb[0].mxu0
          %v1499 = vpop.f32.mrb[0].mxu0
          %v1500 = vadd.f32 0.0, %v1499
          %v1501 = vpop.f32.mrb[0].mxu0
          %1502 = vmatprep.mubr.bf16.mxu0 0
          %1503 = vmatmul.mubr.bf16.gmra.mrb[0].mxu0 %v1441
          %v1504 = vpop.f32.mrb[0].mxu0
          %v1505 = vadd.f32 0.0, %v1504
          %v1506 = vpop.f32.mrb[0].mxu0
          %v1507 = vpop.f32.mrb[0].mxu0
          %v1508 = vadd.f32 0.0, %v1507
          %v1509 = vpop.f32.mrb[0].mxu0
          %1510 = vdwg.mxu0
          %v1512 = vsel %vm1374, %v1423, 0
          %v1515 = vsel %vm1374, %v1424, 0
          %v1518 = vsel %vm1374, %v1425, 0
          %v1521 = vsel %vm1374, %v1426, 0
          %v1524 = vsel %vm1374, %v1398, 0
          %1526 = vmatprep.subr.bf16.mxu0 0
          %1527 = vmatpush1.bf16.xpose.msra.mxu0 %v1524
          %1528 = vmatprep.subr.bf16.mxu0 0
          %1529 = vmatpush1.bf16.xpose.msra.mxu0 0
          %1530 = vmatprep.subr.bf16.mxu0 0
          %1531 = vmatpush1.bf16.xpose.msra.mxu0 0
          %1532 = vmatprep.subr.bf16.mxu0 0
          %1533 = vmatpush1.bf16.xpose.msra.mxu0 0
          %1534 = vmatprep.subr.bf16.mxu0 0
          %1535 = vmatpush1.bf16.xpose.msra.mxu0 0
          %1536 = vmatprep.subr.bf16.mxu0 0
          %1537 = vmatpush1.bf16.xpose.msra.mxu0 0
          %1538 = vmatprep.subr.bf16.mxu0 0
          %1539 = vmatpush1.bf16.xpose.msra.mxu0 0
          %1540 = vmatprep.subr.bf16.mxu0 0
          %1541 = vmatpush1.bf16.xpose.msra.mxu0 0
          %1542 = vmatprep.subr.bf16.mxu0 0
          %1543 = vmatpush1.bf16.xpose.msra.mxu0 0
          %1544 = vmatprep.subr.bf16.mxu0 0
          %1545 = vmatpush1.bf16.xpose.msra.mxu0 0
          %1546 = vmatprep.subr.bf16.mxu0 0
          %1547 = vmatpush1.bf16.xpose.msra.mxu0 0
          %1548 = vmatprep.subr.bf16.mxu0 0
          %1549 = vmatpush1.bf16.xpose.msra.mxu0 0
          %1550 = vmatprep.subr.bf16.mxu0 0
          %1551 = vmatpush1.bf16.xpose.msra.mxu0 0
          %1552 = vmatprep.subr.bf16.mxu0 0
          %1553 = vmatpush1.bf16.xpose.msra.mxu0 0
          %1554 = vmatprep.subr.bf16.mxu0 0
          %1555 = vmatpush1.bf16.xpose.msra.mxu0 0
          %1556 = vmatprep.subr.bf16.mxu0 0
          %1557 = vmatpush1.bf16.xpose.msra.mxu0 0
          %1558 = vmatprep.mubr.bf16.mxu0 0
          %1559 = vmatmul.mubr.bf16.gmra.mrb[0].mxu0 %v1512
          %v1560 = vpop.f32.mrb[0].mxu0
          %v1561 = vadd.f32 0.0, %v1560
          %v1562 = vpop.f32.mrb[0].mxu0
          %v1563 = vpop.f32.mrb[0].mxu0
          %v1564 = vadd.f32 0.0, %v1563
          %v1565 = vpop.f32.mrb[0].mxu0
          %1566 = vmatprep.mubr.bf16.mxu0 0
          %1567 = vmatmul.mubr.bf16.gmra.mrb[0].mxu0 %v1515
          %v1568 = vpop.f32.mrb[0].mxu0
          %v1569 = vadd.f32 0.0, %v1568
          %v1570 = vpop.f32.mrb[0].mxu0
          %v1571 = vpop.f32.mrb[0].mxu0
          %v1572 = vadd.f32 0.0, %v1571
          %v1573 = vpop.f32.mrb[0].mxu0
          %1574 = vmatprep.mubr.bf16.mxu0 0
          %1575 = vmatmul.mubr.bf16.gmra.mrb[0].mxu0 %v1518
          %v1576 = vpop.f32.mrb[0].mxu0
          %v1577 = vadd.f32 0.0, %v1576
          %v1578 = vpop.f32.mrb[0].mxu0
          %v1579 = vpop.f32.mrb[0].mxu0
          %v1580 = vadd.f32 0.0, %v1579
          %v1581 = vpop.f32.mrb[0].mxu0
          %1582 = vmatprep.mubr.bf16.mxu0 0
          %1583 = vmatmul.mubr.bf16.gmra.mrb[0].mxu0 %v1521
          %v1584 = vpop.f32.mrb[0].mxu0
          %v1585 = vadd.f32 0.0, %v1584
          %v1586 = vpop.f32.mrb[0].mxu0
          %v1587 = vpop.f32.mrb[0].mxu0
          %v1588 = vadd.f32 0.0, %v1587
          %v1589 = vpop.f32.mrb[0].mxu0
          %1590 = vdwg.mxu0
          %1591 = vxpose.xlu0.b32.start [1/16] %v1481, 128
          %1592 = vxpose.xlu0.b32.cont [2/16] %v1484, 128
          %1593 = vxpose.xlu0.b32.cont [3/16] %v1489, 128
          %1594 = vxpose.xlu0.b32.cont [4/16] %v1492, 128
          %1595 = vxpose.xlu0.b32.cont [5/16] %v1497, 128
          %1596 = vxpose.xlu0.b32.cont [6/16] %v1500, 128
          %1597 = vxpose.xlu0.b32.cont [7/16] %v1505, 128
          %1598 = vxpose.xlu0.b32.cont [8/16] %v1508, 128
          %1599 = vxpose.xlu0.b32.cont [9/16] 0.0, 128
          %1600 = vxpose.xlu0.b32.cont [10/16] 0.0, 128
          %1601 = vxpose.xlu0.b32.cont [11/16] 0.0, 128
          %1602 = vxpose.xlu0.b32.cont [12/16] 0.0, 128
          %1603 = vxpose.xlu0.b32.cont [13/16] 0.0, 128
          %1604 = vxpose.xlu0.b32.cont [14/16] 0.0, 128
          %1605 = vxpose.xlu0.b32.cont [15/16] 0.0, 128
          %1606 = vxpose.xlu0.b32.end [16/16] 0.0, 128
          %v1607 = vpop.trf.xlu0
          %v1608 = vpop.trf.xlu0
          %v1609 = vpop.trf.xlu0
          %v1610 = vpop.trf.xlu0
          %v1611 = vpop.trf.xlu0
          %v1612 = vpop.trf.xlu0
          %v1613 = vpop.trf.xlu0
          %v1614 = vpop.trf.xlu0
          %v1615 = vpop.trf.xlu0
          %v1616 = vpop.trf.xlu0
          %v1617 = vpop.trf.xlu0
          %v1618 = vpop.trf.xlu0
          %v1619 = vpop.trf.xlu0
          %v1620 = vpop.trf.xlu0
          %v1621 = vpop.trf.xlu0
          %v1622 = vpop.trf.xlu0
          %1623 = vxpose.xlu0.b32.start [1/16] %v1561, 128
          %1624 = vxpose.xlu0.b32.cont [2/16] %v1564, 128
          %1625 = vxpose.xlu0.b32.cont [3/16] %v1569, 128
          %1626 = vxpose.xlu0.b32.cont [4/16] %v1572, 128
          %1627 = vxpose.xlu0.b32.cont [5/16] %v1577, 128
          %1628 = vxpose.xlu0.b32.cont [6/16] %v1580, 128
          %1629 = vxpose.xlu0.b32.cont [7/16] %v1585, 128
          %1630 = vxpose.xlu0.b32.cont [8/16] %v1588, 128
          %1631 = vxpose.xlu0.b32.cont [9/16] 0.0, 128
          %1632 = vxpose.xlu0.b32.cont [10/16] 0.0, 128
          %1633 = vxpose.xlu0.b32.cont [11/16] 0.0, 128
          %1634 = vxpose.xlu0.b32.cont [12/16] 0.0, 128
          %1635 = vxpose.xlu0.b32.cont [13/16] 0.0, 128
          %1636 = vxpose.xlu0.b32.cont [14/16] 0.0, 128
          %1637 = vxpose.xlu0.b32.cont [15/16] 0.0, 128
          %1638 = vxpose.xlu0.b32.end [16/16] 0.0, 128
          %v1639 = vpop.trf.xlu0
          %v1640 = vpop.trf.xlu0
          %v1641 = vpop.trf.xlu0
          %v1642 = vpop.trf.xlu0
          %v1643 = vpop.trf.xlu0
          %v1644 = vpop.trf.xlu0
          %v1645 = vpop.trf.xlu0
          %v1646 = vpop.trf.xlu0
          %v1647 = vpop.trf.xlu0
          %v1648 = vpop.trf.xlu0
          %v1649 = vpop.trf.xlu0
          %v1650 = vpop.trf.xlu0
          %v1651 = vpop.trf.xlu0
          %v1652 = vpop.trf.xlu0
          %v1653 = vpop.trf.xlu0
          %v1654 = vpop.trf.xlu0
          %v1655 = vcombine.high %v1607, 0.0
          %v1657 = vunpack.c.l.s4 1983009808
          %v1658 = vunpack.c.0.s8 %v1657
          %v1659 = vlaneseq
          %v1660 = vshrl.u32 %v1659, 7
          %v1661 = vsub.s32 %v1658, %v1660
          %v1662 = vrot.slane %v1607, %v1661
          %v1664 = vunpack.c.l.s4 1983009808
          %v1665 = vunpack.c.0.s8 %v1664
          %v1666 = vlaneseq
          %v1667 = vshrl.u32 %v1666, 7
          %v1668 = vsub.s32 %v1665, %v1667
          %v1669 = vrot.slane %v1655, %v1668
          %v1670 = vcombine.high %v1639, 0.0
          %v1672 = vunpack.c.l.s4 1983009808
          %v1673 = vunpack.c.0.s8 %v1672
          %v1674 = vlaneseq
          %v1675 = vshrl.u32 %v1674, 7
          %v1676 = vsub.s32 %v1673, %v1675
          %v1677 = vrot.slane %v1639, %v1676
          %v1679 = vunpack.c.l.s4 1983009808
          %v1680 = vunpack.c.0.s8 %v1679
          %v1681 = vlaneseq
          %v1682 = vshrl.u32 %v1681, 7
          %v1683 = vsub.s32 %v1680, %v1682
          %v1684 = vrot.slane %v1670, %v1683
          %v1685 = vcombine.low %v1662, %v1677
          %v1686 = vcombine.high %v1662, %v1677
          %v1688 = vunpack.c.l.s4 1934713408
          %v1689 = vunpack.c.0.s8 %v1688
          %v1690 = vlaneseq
          %v1691 = vshrl.u32 %v1690, 7
          %v1692 = vsub.s32 %v1689, %v1691
          %v1693 = vrot.slane %v1685, %v1692
          %v1695 = vunpack.c.l.s4 1934713408
          %v1696 = vunpack.c.0.s8 %v1695
          %v1697 = vlaneseq
          %v1698 = vshrl.u32 %v1697, 7
          %v1699 = vsub.s32 %v1696, %v1698
          %v1700 = vrot.slane %v1686, %v1699
          %v1701 = vcombine.low %v1669, %v1684
          %v1702 = vcombine.high %v1669, %v1684
          %v1704 = vunpack.c.l.s4 1934713408
          %v1705 = vunpack.c.0.s8 %v1704
          %v1706 = vlaneseq
          %v1707 = vshrl.u32 %v1706, 7
          %v1708 = vsub.s32 %v1705, %v1707
          %v1709 = vrot.slane %v1701, %v1708
          %v1711 = vunpack.c.l.s4 1934713408
          %v1712 = vunpack.c.0.s8 %v1711
          %v1713 = vlaneseq
          %v1714 = vshrl.u32 %v1713, 7
          %v1715 = vsub.s32 %v1712, %v1714
          %v1716 = vrot.slane %v1702, %v1715
          %v1717 = vcombine.high %v1693, 0.0
          %v1718 = vcombine.high %v1700, 0.0
          %v1719 = vcombine.high %v1709, 0.0
          %v1720 = vcombine.high %v1716, 0.0
          %v1721 = vcombine.low %v1693, %v1700
          %v1723 = vunpack.c.l.s4 1983009808
          %v1724 = vunpack.c.0.s8 %v1723
          %v1725 = vlaneseq
          %v1726 = vshrl.u32 %v1725, 7
          %v1727 = vsub.s32 %v1724, %v1726
          %v1728 = vrot.slane %v1721, %v1727
          %v1729 = vcombine.low %v1717, %v1718
          %v1731 = vunpack.c.l.s4 1983009808
          %v1732 = vunpack.c.0.s8 %v1731
          %v1733 = vlaneseq
          %v1734 = vshrl.u32 %v1733, 7
          %v1735 = vsub.s32 %v1732, %v1734
          %v1736 = vrot.slane %v1729, %v1735
          %v1737 = vcombine.low %v1709, %v1716
          %v1739 = vunpack.c.l.s4 1983009808
          %v1740 = vunpack.c.0.s8 %v1739
          %v1741 = vlaneseq
          %v1742 = vshrl.u32 %v1741, 7
          %v1743 = vsub.s32 %v1740, %v1742
          %v1744 = vrot.slane %v1737, %v1743
          %v1745 = vcombine.low %v1719, %v1720
          %v1747 = vunpack.c.l.s4 1983009808
          %v1748 = vunpack.c.0.s8 %v1747
          %v1749 = vlaneseq
          %v1750 = vshrl.u32 %v1749, 7
          %v1751 = vsub.s32 %v1748, %v1750
          %v1752 = vrot.slane %v1745, %v1751
          %v1753 = vcombine.low %v1728, %v1736
          %v1755 = vunpack.c.l.s4 1934713408
          %v1756 = vunpack.c.0.s8 %v1755
          %v1757 = vlaneseq
          %v1758 = vshrl.u32 %v1757, 7
          %v1759 = vsub.s32 %v1756, %v1758
          %v1760 = vrot.slane %v1753, %v1759
          %v1761 = vcombine.low %v1744, %v1752
          %v1763 = vunpack.c.l.s4 1934713408
          %v1764 = vunpack.c.0.s8 %v1763
          %v1765 = vlaneseq
          %v1766 = vshrl.u32 %v1765, 7
          %v1767 = vsub.s32 %v1764, %v1766
          %v1768 = vrot.slane %v1761, %v1767
          %v1769 = vcombine.low %v1760, %v1768
          %v1770 = vcombine.high %v1760, %v1768
          %1772 = vrot.lane.b32.xlu0 %v1770, 64
          %v1773 = vpop.permute.xlu0 %1772
          %v1775 = vsel %vm1277, %v1769, %v1773
          %v1776 = vpack.c.bf16 %v1775, %v1775
          %s1777 = smul.u32 %s961, 16
          %s1778 = smul.addr %s1777, 4
          %s1779 = scalar_lea.vmem %s6, %s1778
          %v1780 = vld [vmem:[%s1779] sm:$0xf]
          %v1781 = vld [vmem:[%s1779 + $0x4] sm:$0xf]
          %v1782 = vld [vmem:[%s1779 + $0x8] sm:$0xf]
          %v1783 = vld [vmem:[%s1779 + $0xc] sm:$0xf]
          %v1784 = vld [vmem:[%s1779 + $0x10] sm:$0xf]
          %v1785 = vld [vmem:[%s1779 + $0x14] sm:$0xf]
          %v1786 = vld [vmem:[%s1779 + $0x18] sm:$0xf]
          %v1787 = vld [vmem:[%s1779 + $0x1c] sm:$0xf]
          %v1788 = vld [vmem:[%s1779 + $0x20] sm:$0xf]
          %v1789 = vld [vmem:[%s1779 + $0x24] sm:$0xf]
          %v1790 = vld [vmem:[%s1779 + $0x28] sm:$0xf]
          %v1791 = vld [vmem:[%s1779 + $0x2c] sm:$0xf]
          %v1792 = vld [vmem:[%s1779 + $0x30] sm:$0xf]
          %v1793 = vld [vmem:[%s1779 + $0x34] sm:$0xf]
          %v1794 = vld [vmem:[%s1779 + $0x38] sm:$0xf]
          %v1795 = vld [vmem:[%s1779 + $0x3c] sm:$0xf]
          %s1796 = scalar_lea.vmem %s7, %s961
          %v1797 = vld [vmem:[%s1796] sm:$0x1]
          %v1799 = vlaneseq
          %v1800 = vshrl.u32 %v1799, 7
          %v1801 = vsub.s32 0, %v1800
          %v1802 = vrot.slane %v1797, %v1801
          %v1820 = vunpack.c.l.b16 %v1780
          %v1821 = vunpack.c.l.b16 %v1781
          %v1822 = vunpack.c.l.b16 %v1782
          %v1823 = vunpack.c.l.b16 %v1783
          %v1824 = vunpack.c.l.b16 %v1784
          %v1825 = vunpack.c.l.b16 %v1785
          %v1826 = vunpack.c.l.b16 %v1786
          %v1827 = vunpack.c.l.b16 %v1787
          %v1828 = vunpack.c.l.b16 %v1788
          %v1829 = vunpack.c.l.b16 %v1789
          %v1830 = vunpack.c.l.b16 %v1790
          %v1831 = vunpack.c.l.b16 %v1791
          %v1832 = vunpack.c.l.b16 %v1792
          %v1833 = vunpack.c.l.b16 %v1793
          %v1834 = vunpack.c.l.b16 %v1794
          %v1835 = vunpack.c.l.b16 %v1795
          %v1836 = vpack.c.b16 %v1821, %v1820
          %v1837 = vpack.c.b16 %v1823, %v1822
          %v1838 = vpack.c.b16 %v1825, %v1824
          %v1839 = vpack.c.b16 %v1827, %v1826
          %v1840 = vpack.c.b16 %v1829, %v1828
          %v1841 = vpack.c.b16 %v1831, %v1830
          %v1842 = vpack.c.b16 %v1833, %v1832
          %v1843 = vpack.c.b16 %v1835, %v1834
          %1852 = vmatprep.subr.bf16.mxu0 0
          %1853 = vmatpush1.bf16.msra.mxu0 %v1836
          %1854 = vmatprep.subr.bf16.mxu0 0
          %1855 = vmatpush1.bf16.msra.mxu0 %v1837
          %1856 = vmatprep.subr.bf16.mxu0 0
          %1857 = vmatpush1.bf16.msra.mxu0 %v1838
          %1858 = vmatprep.subr.bf16.mxu0 0
          %1859 = vmatpush1.bf16.msra.mxu0 %v1839
          %1860 = vmatprep.subr.bf16.mxu0 0
          %1861 = vmatpush1.bf16.msra.mxu0 %v1840
          %1862 = vmatprep.subr.bf16.mxu0 0
          %1863 = vmatpush1.bf16.msra.mxu0 %v1841
          %1864 = vmatprep.subr.bf16.mxu0 0
          %1865 = vmatpush1.bf16.msra.mxu0 %v1842
          %1866 = vmatprep.subr.bf16.mxu0 0
          %1867 = vmatpush1.bf16.msra.mxu0 %v1843
          %1868 = vmatprep.subr.bf16.mxu0 0
          %1869 = vmatpush1.bf16.msra.mxu0 0
          %1870 = vmatprep.subr.bf16.mxu0 0
          %1871 = vmatpush1.bf16.msra.mxu0 0
          %1872 = vmatprep.subr.bf16.mxu0 0
          %1873 = vmatpush1.bf16.msra.mxu0 0
          %1874 = vmatprep.subr.bf16.mxu0 0
          %1875 = vmatpush1.bf16.msra.mxu0 0
          %1876 = vmatprep.subr.bf16.mxu0 0
          %1877 = vmatpush1.bf16.msra.mxu0 0
          %1878 = vmatprep.subr.bf16.mxu0 0
          %1879 = vmatpush1.bf16.msra.mxu0 0
          %1880 = vmatprep.subr.bf16.mxu0 0
          %1881 = vmatpush1.bf16.msra.mxu0 0
          %1882 = vmatprep.subr.bf16.mxu0 0
          %1883 = vmatpush1.bf16.msra.mxu0 0
          %1884 = vmatprep.mubr.bf16.mxu0 0
          %1885 = vmatmul.mubr.bf16.gmra.mrb[0].mxu0 %v1776
          %v1886 = vpop.f32.mrb[0].mxu0
          %v1887 = vadd.f32 %v1802, %v1886
          %v1888 = vpop.f32.mrb[0].mxu0
          %v1889 = vpop.f32.mrb[0].mxu0
          %v1890 = vpop.f32.mrb[0].mxu0
          %1891 = vdwg.mxu0
          %v1892 = vadd.f32 %v966, %v1887
          %s1893 = scalar_lea.vmem %s12, %s961
          %v1894 = vld [vmem:[%s1893] sm:$0x1]
          %s1895 = scalar_lea.vmem %s13, %s961
          %v1896 = vld [vmem:[%s1895] sm:$0x1]
          %1897 = vadd.xlane.f32.xlu0 %v1892
          %v1898 = vpop.xlane.xlu0 %1897
          %v1899 = vmul.f32 %v1898, %v934
          %v1900 = vsub.f32 %v1892, %v1899
          %v1901 = vmul.f32 %v1900, %v1900
          %1902 = vadd.xlane.f32.xlu0 %v1901
          %v1903 = vpop.xlane.xlu0 %1902
          %v1904 = vmul.f32 %v1903, %v934
          %v1905 = vadd.f32 %v1904, 1e-12
          %v1906 = vrsqrt.pop %v1905
          %v1907 = vmul.f32 %v1900, %v1906
          %v1909 = vlaneseq
          %v1910 = vshrl.u32 %v1909, 7
          %v1911 = vsub.s32 0, %v1910
          %v1912 = vrot.slane %v1894, %v1911
          %v1914 = vmul.f32 %v1907, %v1912
          %v1916 = vlaneseq
          %v1917 = vshrl.u32 %v1916, 7
          %v1918 = vsub.s32 0, %v1917
          %v1919 = vrot.slane %v1896, %v1918
          %v1921 = vadd.f32 %v1914, %v1919
          %v1922 = vpack.c.bf16 %v1921, %v1921
          %s1923 = smul.u32 %s961, 64
          %s1924 = smul.addr %s1923, 4
          %s1925 = scalar_lea.vmem [#allocation5], %s1924
          %v1926 = vld [vmem:[%s1925] sm:$0xff]
          %v1927 = vld [vmem:[%s1925 + $0x8] sm:$0xff]
          %v1928 = vld [vmem:[%s1925 + $0x10] sm:$0xff]
          %v1929 = vld [vmem:[%s1925 + $0x18] sm:$0xff]
          %v1930 = vld [vmem:[%s1925 + $0x20] sm:$0xff]
          %v1931 = vld [vmem:[%s1925 + $0x28] sm:$0xff]
          %v1932 = vld [vmem:[%s1925 + $0x30] sm:$0xff]
          %v1933 = vld [vmem:[%s1925 + $0x38] sm:$0xff]
          %v1934 = vld [vmem:[%s1925 + $0x40] sm:$0xff]
          %v1935 = vld [vmem:[%s1925 + $0x48] sm:$0xff]
          %v1936 = vld [vmem:[%s1925 + $0x50] sm:$0xff]
          %v1937 = vld [vmem:[%s1925 + $0x58] sm:$0xff]
          %v1938 = vld [vmem:[%s1925 + $0x60] sm:$0xff]
          %v1939 = vld [vmem:[%s1925 + $0x68] sm:$0xff]
          %v1940 = vld [vmem:[%s1925 + $0x70] sm:$0xff]
          %v1941 = vld [vmem:[%s1925 + $0x78] sm:$0xff]
          %v1942 = vld [vmem:[%s1925 + $0x80] sm:$0xff]
          %v1943 = vld [vmem:[%s1925 + $0x88] sm:$0xff]
          %v1944 = vld [vmem:[%s1925 + $0x90] sm:$0xff]
          %v1945 = vld [vmem:[%s1925 + $0x98] sm:$0xff]
          %v1946 = vld [vmem:[%s1925 + $0xa0] sm:$0xff]
          %v1947 = vld [vmem:[%s1925 + $0xa8] sm:$0xff]
          %v1948 = vld [vmem:[%s1925 + $0xb0] sm:$0xff]
          %v1949 = vld [vmem:[%s1925 + $0xb8] sm:$0xff]
          %v1950 = vld [vmem:[%s1925 + $0xc0] sm:$0xff]
          %v1951 = vld [vmem:[%s1925 + $0xc8] sm:$0xff]
          %v1952 = vld [vmem:[%s1925 + $0xd0] sm:$0xff]
          %v1953 = vld [vmem:[%s1925 + $0xd8] sm:$0xff]
          %v1954 = vld [vmem:[%s1925 + $0xe0] sm:$0xff]
          %v1955 = vld [vmem:[%s1925 + $0xe8] sm:$0xff]
          %v1956 = vld [vmem:[%s1925 + $0xf0] sm:$0xff]
          %v1957 = vld [vmem:[%s1925 + $0xf8] sm:$0xff]
          %s1958 = smul.u32 %s961, 4
          %s1959 = scalar_lea.vmem %s9, %s1958
          %v1960 = vld [vmem:[%s1959] sm:$0xf]
          %v1962 = vlaneseq
          %v1963 = vshrl.u32 %v1962, 7
          %v1964 = vsub.s32 0, %v1963
          %v1965 = vrot.slane %v1960, %v1964
          %v1966 = vlaneseq
          %v1967 = vshrl.u32 %v1966, 7
          %v1968 = vsub.s32 1, %v1967
          %v1969 = vrot.slane %v1960, %v1968
          %v1970 = vlaneseq
          %v1971 = vshrl.u32 %v1970, 7
          %v1972 = vsub.s32 2, %v1971
          %v1973 = vrot.slane %v1960, %v1972
          %v1974 = vlaneseq
          %v1975 = vshrl.u32 %v1974, 7
          %v1976 = vsub.s32 3, %v1975
          %v1977 = vrot.slane %v1960, %v1976
          %v2014 = vunpack.c.l.b16 %v1926
          %v2015 = vunpack.c.h.b16 %v1926
          %v2016 = vunpack.c.l.b16 %v1927
          %v2017 = vunpack.c.h.b16 %v1927
          %v2018 = vunpack.c.l.b16 %v1928
          %v2019 = vunpack.c.h.b16 %v1928
          %v2020 = vunpack.c.l.b16 %v1929
          %v2021 = vunpack.c.h.b16 %v1929
          %v2022 = vunpack.c.l.b16 %v1930
          %v2023 = vunpack.c.h.b16 %v1930
          %v2024 = vunpack.c.l.b16 %v1931
          %v2025 = vunpack.c.h.b16 %v1931
          %v2026 = vunpack.c.l.b16 %v1932
          %v2027 = vunpack.c.h.b16 %v1932
          %v2028 = vunpack.c.l.b16 %v1933
          %v2029 = vunpack.c.h.b16 %v1933
          %v2030 = vunpack.c.l.b16 %v1934
          %v2031 = vunpack.c.h.b16 %v1934
          %v2032 = vunpack.c.l.b16 %v1935
          %v2033 = vunpack.c.h.b16 %v1935
          %v2034 = vunpack.c.l.b16 %v1936
          %v2035 = vunpack.c.h.b16 %v1936
          %v2036 = vunpack.c.l.b16 %v1937
          %v2037 = vunpack.c.h.b16 %v1937
          %v2038 = vunpack.c.l.b16 %v1938
          %v2039 = vunpack.c.h.b16 %v1938
          %v2040 = vunpack.c.l.b16 %v1939
          %v2041 = vunpack.c.h.b16 %v1939
          %v2042 = vunpack.c.l.b16 %v1940
          %v2043 = vunpack.c.h.b16 %v1940
          %v2044 = vunpack.c.l.b16 %v1941
          %v2045 = vunpack.c.h.b16 %v1941
          %v2046 = vunpack.c.l.b16 %v1942
          %v2047 = vunpack.c.h.b16 %v1942
          %v2048 = vunpack.c.l.b16 %v1943
          %v2049 = vunpack.c.h.b16 %v1943
          %v2050 = vunpack.c.l.b16 %v1944
          %v2051 = vunpack.c.h.b16 %v1944
          %v2052 = vunpack.c.l.b16 %v1945
          %v2053 = vunpack.c.h.b16 %v1945
          %v2054 = vunpack.c.l.b16 %v1946
          %v2055 = vunpack.c.h.b16 %v1946
          %v2056 = vunpack.c.l.b16 %v1947
          %v2057 = vunpack.c.h.b16 %v1947
          %v2058 = vunpack.c.l.b16 %v1948
          %v2059 = vunpack.c.h.b16 %v1948
          %v2060 = vunpack.c.l.b16 %v1949
          %v2061 = vunpack.c.h.b16 %v1949
          %v2062 = vunpack.c.l.b16 %v1950
          %v2063 = vunpack.c.h.b16 %v1950
          %v2064 = vunpack.c.l.b16 %v1951
          %v2065 = vunpack.c.h.b16 %v1951
          %v2066 = vunpack.c.l.b16 %v1952
          %v2067 = vunpack.c.h.b16 %v1952
          %v2068 = vunpack.c.l.b16 %v1953
          %v2069 = vunpack.c.h.b16 %v1953
          %v2070 = vunpack.c.l.b16 %v1954
          %v2071 = vunpack.c.h.b16 %v1954
          %v2072 = vunpack.c.l.b16 %v1955
          %v2073 = vunpack.c.h.b16 %v1955
          %v2074 = vunpack.c.l.b16 %v1956
          %v2075 = vunpack.c.h.b16 %v1956
          %v2076 = vunpack.c.l.b16 %v1957
          %v2077 = vunpack.c.h.b16 %v1957
          %v2078 = vpack.c.b16 %v2018, %v2014
          %v2079 = vpack.c.b16 %v2019, %v2015
          %v2080 = vpack.c.b16 %v2020, %v2016
          %v2081 = vpack.c.b16 %v2021, %v2017
          %v2082 = vpack.c.b16 %v2026, %v2022
          %v2083 = vpack.c.b16 %v2027, %v2023
          %v2084 = vpack.c.b16 %v2028, %v2024
          %v2085 = vpack.c.b16 %v2029, %v2025
          %v2086 = vpack.c.b16 %v2034, %v2030
          %v2087 = vpack.c.b16 %v2035, %v2031
          %v2088 = vpack.c.b16 %v2036, %v2032
          %v2089 = vpack.c.b16 %v2037, %v2033
          %v2090 = vpack.c.b16 %v2042, %v2038
          %v2091 = vpack.c.b16 %v2043, %v2039
          %v2092 = vpack.c.b16 %v2044, %v2040
          %v2093 = vpack.c.b16 %v2045, %v2041
          %v2094 = vpack.c.b16 %v2050, %v2046
          %v2095 = vpack.c.b16 %v2051, %v2047
          %v2096 = vpack.c.b16 %v2052, %v2048
          %v2097 = vpack.c.b16 %v2053, %v2049
          %v2098 = vpack.c.b16 %v2058, %v2054
          %v2099 = vpack.c.b16 %v2059, %v2055
          %v2100 = vpack.c.b16 %v2060, %v2056
          %v2101 = vpack.c.b16 %v2061, %v2057
          %v2102 = vpack.c.b16 %v2066, %v2062
          %v2103 = vpack.c.b16 %v2067, %v2063
          %v2104 = vpack.c.b16 %v2068, %v2064
          %v2105 = vpack.c.b16 %v2069, %v2065
          %v2106 = vpack.c.b16 %v2074, %v2070
          %v2107 = vpack.c.b16 %v2075, %v2071
          %v2108 = vpack.c.b16 %v2076, %v2072
          %v2109 = vpack.c.b16 %v2077, %v2073
          %2142 = vmatprep.subr.bf16.mxu0 %v2079
          %2143 = vmatpush1.bf16.msra.mxu0 %v2078
          %2144 = vmatprep.subr.bf16.mxu0 %v2083
          %2145 = vmatpush1.bf16.msra.mxu0 %v2082
          %2146 = vmatprep.subr.bf16.mxu0 %v2087
          %2147 = vmatpush1.bf16.msra.mxu0 %v2086
          %2148 = vmatprep.subr.bf16.mxu0 %v2091
          %2149 = vmatpush1.bf16.msra.mxu0 %v2090
          %2150 = vmatprep.subr.bf16.mxu0 %v2095
          %2151 = vmatpush1.bf16.msra.mxu0 %v2094
          %2152 = vmatprep.subr.bf16.mxu0 %v2099
          %2153 = vmatpush1.bf16.msra.mxu0 %v2098
          %2154 = vmatprep.subr.bf16.mxu0 %v2103
          %2155 = vmatpush1.bf16.msra.mxu0 %v2102
          %2156 = vmatprep.subr.bf16.mxu0 %v2107
          %2157 = vmatpush1.bf16.msra.mxu0 %v2106
          %2158 = vmatprep.subr.bf16.mxu0 0
          %2159 = vmatpush1.bf16.msra.mxu0 0
          %2160 = vmatprep.subr.bf16.mxu0 0
          %2161 = vmatpush1.bf16.msra.mxu0 0
          %2162 = vmatprep.subr.bf16.mxu0 0
          %2163 = vmatpush1.bf16.msra.mxu0 0
          %2164 = vmatprep.subr.bf16.mxu0 0
          %2165 = vmatpush1.bf16.msra.mxu0 0
          %2166 = vmatprep.subr.bf16.mxu0 0
          %2167 = vmatpush1.bf16.msra.mxu0 0
          %2168 = vmatprep.subr.bf16.mxu0 0
          %2169 = vmatpush1.bf16.msra.mxu0 0
          %2170 = vmatprep.subr.bf16.mxu0 0
          %2171 = vmatpush1.bf16.msra.mxu0 0
          %2172 = vmatprep.subr.bf16.mxu0 0
          %2173 = vmatpush1.bf16.msra.mxu0 0
          %2174 = vmatprep.mubr.bf16.mxu0 0
          %2175 = vmatmul.mubr.bf16.gmra.mrb[0].mxu0 %v1922
          %v2176 = vpop.f32.mrb[0].mxu0
          %v2177 = vadd.f32 %v1965, %v2176
          %v2178 = vpop.f32.mrb[0].mxu0
          %v2179 = vadd.f32 %v1969, %v2178
          %v2180 = vpop.f32.mrb[0].mxu0
          %v2181 = vpop.f32.mrb[0].mxu0
          %2182 = vdwg.mxu0
          %2183 = vmatprep.subr.bf16.mxu0 %v2081
          %2184 = vmatpush1.bf16.msra.mxu0 %v2080
          %2185 = vmatprep.subr.bf16.mxu0 %v2085
          %2186 = vmatpush1.bf16.msra.mxu0 %v2084
          %2187 = vmatprep.subr.bf16.mxu0 %v2089
          %2188 = vmatpush1.bf16.msra.mxu0 %v2088
          %2189 = vmatprep.subr.bf16.mxu0 %v2093
          %2190 = vmatpush1.bf16.msra.mxu0 %v2092
          %2191 = vmatprep.subr.bf16.mxu0 %v2097
          %2192 = vmatpush1.bf16.msra.mxu0 %v2096
          %2193 = vmatprep.subr.bf16.mxu0 %v2101
          %2194 = vmatpush1.bf16.msra.mxu0 %v2100
          %2195 = vmatprep.subr.bf16.mxu0 %v2105
          %2196 = vmatpush1.bf16.msra.mxu0 %v2104
          %2197 = vmatprep.subr.bf16.mxu0 %v2109
          %2198 = vmatpush1.bf16.msra.mxu0 %v2108
          %2199 = vmatprep.subr.bf16.mxu0 0
          %2200 = vmatpush1.bf16.msra.mxu0 0
          %2201 = vmatprep.subr.bf16.mxu0 0
          %2202 = vmatpush1.bf16.msra.mxu0 0
          %2203 = vmatprep.subr.bf16.mxu0 0
          %2204 = vmatpush1.bf16.msra.mxu0 0
          %2205 = vmatprep.subr.bf16.mxu0 0
          %2206 = vmatpush1.bf16.msra.mxu0 0
          %2207 = vmatprep.subr.bf16.mxu0 0
          %2208 = vmatpush1.bf16.msra.mxu0 0
          %2209 = vmatprep.subr.bf16.mxu0 0
          %2210 = vmatpush1.bf16.msra.mxu0 0
          %2211 = vmatprep.subr.bf16.mxu0 0
          %2212 = vmatpush1.bf16.msra.mxu0 0
          %2213 = vmatprep.subr.bf16.mxu0 0
          %2214 = vmatpush1.bf16.msra.mxu0 0
          %2215 = vmatprep.mubr.bf16.mxu0 0
          %2216 = vmatmul.mubr.bf16.gmra.mrb[0].mxu0 %v1922
          %v2217 = vpop.f32.mrb[0].mxu0
          %v2218 = vadd.f32 %v1973, %v2217
          %v2219 = vpop.f32.mrb[0].mxu0
          %v2220 = vadd.f32 %v1977, %v2219
          %v2221 = vpop.f32.mrb[0].mxu0
          %v2222 = vpop.f32.mrb[0].mxu0
          %2223 = vdwg.mxu0
          %v2224 = vmul.f32 %v2177, %v2177
          %v2225 = vmul.f32 %v2179, %v2179
          %v2226 = vmul.f32 %v2218, %v2218
          %v2227 = vmul.f32 %v2220, %v2220
          %v2228 = vmul.f32 %v2177, %v2224
          %v2229 = vmul.f32 %v2179, %v2225
          %v2230 = vmul.f32 %v2218, %v2226
          %v2231 = vmul.f32 %v2220, %v2227
          %v2232 = vmul.f32 %v2228, 0.044715
          %v2233 = vmul.f32 %v2229, 0.044715
          %v2234 = vmul.f32 %v2230, 0.044715
          %v2235 = vmul.f32 %v2231, 0.044715
          %v2236 = vadd.f32 %v2177, %v2232
          %v2237 = vadd.f32 %v2179, %v2233
          %v2238 = vadd.f32 %v2218, %v2234
          %v2239 = vadd.f32 %v2220, %v2235
          %v2240 = vmul.f32 %v2236, 0.7978846
          %v2241 = vmul.f32 %v2237, 0.7978846
          %v2242 = vmul.f32 %v2238, 0.7978846
          %v2243 = vmul.f32 %v2239, 0.7978846
          %v2244 = vtanh.pop %v2240
          %v2245 = vtanh.pop %v2241
          %v2246 = vtanh.pop %v2242
          %v2247 = vtanh.pop %v2243
          %v2248 = vadd.f32 %v2244, 1.0
          %v2249 = vadd.f32 %v2245, 1.0
          %v2250 = vadd.f32 %v2246, 1.0
          %v2251 = vadd.f32 %v2247, 1.0
          %v2252 = vmul.f32 %v2248, 0.5
          %v2253 = vmul.f32 %v2249, 0.5
          %v2254 = vmul.f32 %v2250, 0.5
          %v2255 = vmul.f32 %v2251, 0.5
          %v2256 = vmul.f32 %v2177, %v2252
          %v2257 = vmul.f32 %v2179, %v2253
          %v2258 = vmul.f32 %v2218, %v2254
          %v2259 = vmul.f32 %v2220, %v2255
          %v2260 = vpack.c.bf16 %v2256, %v2256
          %v2261 = vpack.c.bf16 %v2257, %v2257
          %v2262 = vpack.c.bf16 %v2258, %v2258
          %v2263 = vpack.c.bf16 %v2259, %v2259
          %s2264 = smul.addr %s1923, 4
          %s2265 = scalar_lea.vmem [#allocation7], %s2264
          %v2266 = vld [vmem:[%s2265] sm:$0xf]
          %v2267 = vld [vmem:[%s2265 + $0x4] sm:$0xf]
          %v2268 = vld [vmem:[%s2265 + $0x8] sm:$0xf]
          %v2269 = vld [vmem:[%s2265 + $0xc] sm:$0xf]
          %v2270 = vld [vmem:[%s2265 + $0x10] sm:$0xf]
          %v2271 = vld [vmem:[%s2265 + $0x14] sm:$0xf]
          %v2272 = vld [vmem:[%s2265 + $0x18] sm:$0xf]
          %v2273 = vld [vmem:[%s2265 + $0x1c] sm:$0xf]
          %v2274 = vld [vmem:[%s2265 + $0x20] sm:$0xf]
          %v2275 = vld [vmem:[%s2265 + $0x24] sm:$0xf]
          %v2276 = vld [vmem:[%s2265 + $0x28] sm:$0xf]
          %v2277 = vld [vmem:[%s2265 + $0x2c] sm:$0xf]
          %v2278 = vld [vmem:[%s2265 + $0x30] sm:$0xf]
          %v2279 = vld [vmem:[%s2265 + $0x34] sm:$0xf]
          %v2280 = vld [vmem:[%s2265 + $0x38] sm:$0xf]
          %v2281 = vld [vmem:[%s2265 + $0x3c] sm:$0xf]
          %v2282 = vld [vmem:[%s2265 + $0x40] sm:$0xf]
          %v2283 = vld [vmem:[%s2265 + $0x44] sm:$0xf]
          %v2284 = vld [vmem:[%s2265 + $0x48] sm:$0xf]
          %v2285 = vld [vmem:[%s2265 + $0x4c] sm:$0xf]
          %v2286 = vld [vmem:[%s2265 + $0x50] sm:$0xf]
          %v2287 = vld [vmem:[%s2265 + $0x54] sm:$0xf]
          %v2288 = vld [vmem:[%s2265 + $0x58] sm:$0xf]
          %v2289 = vld [vmem:[%s2265 + $0x5c] sm:$0xf]
          %v2290 = vld [vmem:[%s2265 + $0x60] sm:$0xf]
          %v2291 = vld [vmem:[%s2265 + $0x64] sm:$0xf]
          %v2292 = vld [vmem:[%s2265 + $0x68] sm:$0xf]
          %v2293 = vld [vmem:[%s2265 + $0x6c] sm:$0xf]
          %v2294 = vld [vmem:[%s2265 + $0x70] sm:$0xf]
          %v2295 = vld [vmem:[%s2265 + $0x74] sm:$0xf]
          %v2296 = vld [vmem:[%s2265 + $0x78] sm:$0xf]
          %v2297 = vld [vmem:[%s2265 + $0x7c] sm:$0xf]
          %v2298 = vld [vmem:[%s2265 + $0x80] sm:$0xf]
          %v2299 = vld [vmem:[%s2265 + $0x84] sm:$0xf]
          %v2300 = vld [vmem:[%s2265 + $0x88] sm:$0xf]
          %v2301 = vld [vmem:[%s2265 + $0x8c] sm:$0xf]
          %v2302 = vld [vmem:[%s2265 + $0x90] sm:$0xf]
          %v2303 = vld [vmem:[%s2265 + $0x94] sm:$0xf]
          %v2304 = vld [vmem:[%s2265 + $0x98] sm:$0xf]
          %v2305 = vld [vmem:[%s2265 + $0x9c] sm:$0xf]
          %v2306 = vld [vmem:[%s2265 + $0xa0] sm:$0xf]
          %v2307 = vld [vmem:[%s2265 + $0xa4] sm:$0xf]
          %v2308 = vld [vmem:[%s2265 + $0xa8] sm:$0xf]
          %v2309 = vld [vmem:[%s2265 + $0xac] sm:$0xf]
          %v2310 = vld [vmem:[%s2265 + $0xb0] sm:$0xf]
          %v2311 = vld [vmem:[%s2265 + $0xb4] sm:$0xf]
          %v2312 = vld [vmem:[%s2265 + $0xb8] sm:$0xf]
          %v2313 = vld [vmem:[%s2265 + $0xbc] sm:$0xf]
          %v2314 = vld [vmem:[%s2265 + $0xc0] sm:$0xf]
          %v2315 = vld [vmem:[%s2265 + $0xc4] sm:$0xf]
          %v2316 = vld [vmem:[%s2265 + $0xc8] sm:$0xf]
          %v2317 = vld [vmem:[%s2265 + $0xcc] sm:$0xf]
          %v2318 = vld [vmem:[%s2265 + $0xd0] sm:$0xf]
          %v2319 = vld [vmem:[%s2265 + $0xd4] sm:$0xf]
          %v2320 = vld [vmem:[%s2265 + $0xd8] sm:$0xf]
          %v2321 = vld [vmem:[%s2265 + $0xdc] sm:$0xf]
          %v2322 = vld [vmem:[%s2265 + $0xe0] sm:$0xf]
          %v2323 = vld [vmem:[%s2265 + $0xe4] sm:$0xf]
          %v2324 = vld [vmem:[%s2265 + $0xe8] sm:$0xf]
          %v2325 = vld [vmem:[%s2265 + $0xec] sm:$0xf]
          %v2326 = vld [vmem:[%s2265 + $0xf0] sm:$0xf]
          %v2327 = vld [vmem:[%s2265 + $0xf4] sm:$0xf]
          %v2328 = vld [vmem:[%s2265 + $0xf8] sm:$0xf]
          %v2329 = vld [vmem:[%s2265 + $0xfc] sm:$0xf]
          %s2330 = scalar_lea.vmem %s11, %s961
          %v2331 = vld [vmem:[%s2330] sm:$0x1]
          %v2333 = vlaneseq
          %v2334 = vshrl.u32 %v2333, 7
          %v2335 = vsub.s32 0, %v2334
          %v2336 = vrot.slane %v2331, %v2335
          %v2402 = vunpack.c.l.b16 %v2266
          %v2403 = vunpack.c.l.b16 %v2267
          %v2404 = vunpack.c.l.b16 %v2268
          %v2405 = vunpack.c.l.b16 %v2269
          %v2406 = vunpack.c.l.b16 %v2270
          %v2407 = vunpack.c.l.b16 %v2271
          %v2408 = vunpack.c.l.b16 %v2272
          %v2409 = vunpack.c.l.b16 %v2273
          %v2410 = vunpack.c.l.b16 %v2274
          %v2411 = vunpack.c.l.b16 %v2275
          %v2412 = vunpack.c.l.b16 %v2276
          %v2413 = vunpack.c.l.b16 %v2277
          %v2414 = vunpack.c.l.b16 %v2278
          %v2415 = vunpack.c.l.b16 %v2279
          %v2416 = vunpack.c.l.b16 %v2280
          %v2417 = vunpack.c.l.b16 %v2281
          %v2418 = vunpack.c.l.b16 %v2282
          %v2419 = vunpack.c.l.b16 %v2283
          %v2420 = vunpack.c.l.b16 %v2284
          %v2421 = vunpack.c.l.b16 %v2285
          %v2422 = vunpack.c.l.b16 %v2286
          %v2423 = vunpack.c.l.b16 %v2287
          %v2424 = vunpack.c.l.b16 %v2288
          %v2425 = vunpack.c.l.b16 %v2289
          %v2426 = vunpack.c.l.b16 %v2290
          %v2427 = vunpack.c.l.b16 %v2291
          %v2428 = vunpack.c.l.b16 %v2292
          %v2429 = vunpack.c.l.b16 %v2293
          %v2430 = vunpack.c.l.b16 %v2294
          %v2431 = vunpack.c.l.b16 %v2295
          %v2432 = vunpack.c.l.b16 %v2296
          %v2433 = vunpack.c.l.b16 %v2297
          %v2434 = vunpack.c.l.b16 %v2298
          %v2435 = vunpack.c.l.b16 %v2299
          %v2436 = vunpack.c.l.b16 %v2300
          %v2437 = vunpack.c.l.b16 %v2301
          %v2438 = vunpack.c.l.b16 %v2302
          %v2439 = vunpack.c.l.b16 %v2303
          %v2440 = vunpack.c.l.b16 %v2304
          %v2441 = vunpack.c.l.b16 %v2305
          %v2442 = vunpack.c.l.b16 %v2306
          %v2443 = vunpack.c.l.b16 %v2307
          %v2444 = vunpack.c.l.b16 %v2308
          %v2445 = vunpack.c.l.b16 %v2309
          %v2446 = vunpack.c.l.b16 %v2310
          %v2447 = vunpack.c.l.b16 %v2311
          %v2448 = vunpack.c.l.b16 %v2312
          %v2449 = vunpack.c.l.b16 %v2313
          %v2450 = vunpack.c.l.b16 %v2314
          %v2451 = vunpack.c.l.b16 %v2315
          %v2452 = vunpack.c.l.b16 %v2316
          %v2453 = vunpack.c.l.b16 %v2317
          %v2454 = vunpack.c.l.b16 %v2318
          %v2455 = vunpack.c.l.b16 %v2319
          %v2456 = vunpack.c.l.b16 %v2320
          %v2457 = vunpack.c.l.b16 %v2321
          %v2458 = vunpack.c.l.b16 %v2322
          %v2459 = vunpack.c.l.b16 %v2323
          %v2460 = vunpack.c.l.b16 %v2324
          %v2461 = vunpack.c.l.b16 %v2325
          %v2462 = vunpack.c.l.b16 %v2326
          %v2463 = vunpack.c.l.b16 %v2327
          %v2464 = vunpack.c.l.b16 %v2328
          %v2465 = vunpack.c.l.b16 %v2329
          %v2466 = vpack.c.b16 %v2403, %v2402
          %v2467 = vpack.c.b16 %v2405, %v2404
          %v2468 = vpack.c.b16 %v2407, %v2406
          %v2469 = vpack.c.b16 %v2409, %v2408
          %v2470 = vpack.c.b16 %v2411, %v2410
          %v2471 = vpack.c.b16 %v2413, %v2412
          %v2472 = vpack.c.b16 %v2415, %v2414
          %v2473 = vpack.c.b16 %v2417, %v2416
          %v2474 = vpack.c.b16 %v2419, %v2418
          %v2475 = vpack.c.b16 %v2421, %v2420
          %v2476 = vpack.c.b16 %v2423, %v2422
          %v2477 = vpack.c.b16 %v2425, %v2424
          %v2478 = vpack.c.b16 %v2427, %v2426
          %v2479 = vpack.c.b16 %v2429, %v2428
          %v2480 = vpack.c.b16 %v2431, %v2430
          %v2481 = vpack.c.b16 %v2433, %v2432
          %v2482 = vpack.c.b16 %v2435, %v2434
          %v2483 = vpack.c.b16 %v2437, %v2436
          %v2484 = vpack.c.b16 %v2439, %v2438
          %v2485 = vpack.c.b16 %v2441, %v2440
          %v2486 = vpack.c.b16 %v2443, %v2442
          %v2487 = vpack.c.b16 %v2445, %v2444
          %v2488 = vpack.c.b16 %v2447, %v2446
          %v2489 = vpack.c.b16 %v2449, %v2448
          %v2490 = vpack.c.b16 %v2451, %v2450
          %v2491 = vpack.c.b16 %v2453, %v2452
          %v2492 = vpack.c.b16 %v2455, %v2454
          %v2493 = vpack.c.b16 %v2457, %v2456
          %v2494 = vpack.c.b16 %v2459, %v2458
          %v2495 = vpack.c.b16 %v2461, %v2460
          %v2496 = vpack.c.b16 %v2463, %v2462
          %v2497 = vpack.c.b16 %v2465, %v2464
          %2530 = vmatprep.subr.bf16.mxu0 0
          %2531 = vmatpush1.bf16.msra.mxu0 %v2466
          %2532 = vmatprep.subr.bf16.mxu0 0
          %2533 = vmatpush1.bf16.msra.mxu0 %v2467
          %2534 = vmatprep.subr.bf16.mxu0 0
          %2535 = vmatpush1.bf16.msra.mxu0 %v2468
          %2536 = vmatprep.subr.bf16.mxu0 0
          %2537 = vmatpush1.bf16.msra.mxu0 %v2469
          %2538 = vmatprep.subr.bf16.mxu0 0
          %2539 = vmatpush1.bf16.msra.mxu0 %v2470
          %2540 = vmatprep.subr.bf16.mxu0 0
          %2541 = vmatpush1.bf16.msra.mxu0 %v2471
          %2542 = vmatprep.subr.bf16.mxu0 0
          %2543 = vmatpush1.bf16.msra.mxu0 %v2472
          %2544 = vmatprep.subr.bf16.mxu0 0
          %2545 = vmatpush1.bf16.msra.mxu0 %v2473
          %2546 = vmatprep.subr.bf16.mxu0 0
          %2547 = vmatpush1.bf16.msra.mxu0 %v2474
          %2548 = vmatprep.subr.bf16.mxu0 0
          %2549 = vmatpush1.bf16.msra.mxu0 %v2475
          %2550 = vmatprep.subr.bf16.mxu0 0
          %2551 = vmatpush1.bf16.msra.mxu0 %v2476
          %2552 = vmatprep.subr.bf16.mxu0 0
          %2553 = vmatpush1.bf16.msra.mxu0 %v2477
          %2554 = vmatprep.subr.bf16.mxu0 0
          %2555 = vmatpush1.bf16.msra.mxu0 %v2478
          %2556 = vmatprep.subr.bf16.mxu0 0
          %2557 = vmatpush1.bf16.msra.mxu0 %v2479
          %2558 = vmatprep.subr.bf16.mxu0 0
          %2559 = vmatpush1.bf16.msra.mxu0 %v2480
          %2560 = vmatprep.subr.bf16.mxu0 0
          %2561 = vmatpush1.bf16.msra.mxu0 %v2481
          %2562 = vmatprep.mubr.bf16.mxu0 %v2261
          %2563 = vmatmul.mubr.bf16.gmra.mrb[0].mxu0 %v2260
          %v2564 = vpop.f32.mrb[0].mxu0
          %v2565 = vadd.f32 %v2336, %v2564
          %v2566 = vpop.f32.mrb[0].mxu0
          %v2567 = vpop.f32.mrb[0].mxu0
          %v2568 = vpop.f32.mrb[0].mxu0
          %2569 = vdwg.mxu0
          %2570 = vmatprep.subr.bf16.mxu0 0
          %2571 = vmatpush1.bf16.msra.mxu0 %v2482
          %2572 = vmatprep.subr.bf16.mxu0 0
          %2573 = vmatpush1.bf16.msra.mxu0 %v2483
          %2574 = vmatprep.subr.bf16.mxu0 0
          %2575 = vmatpush1.bf16.msra.mxu0 %v2484
          %2576 = vmatprep.subr.bf16.mxu0 0
          %2577 = vmatpush1.bf16.msra.mxu0 %v2485
          %2578 = vmatprep.subr.bf16.mxu0 0
          %2579 = vmatpush1.bf16.msra.mxu0 %v2486
          %2580 = vmatprep.subr.bf16.mxu0 0
          %2581 = vmatpush1.bf16.msra.mxu0 %v2487
          %2582 = vmatprep.subr.bf16.mxu0 0
          %2583 = vmatpush1.bf16.msra.mxu0 %v2488
          %2584 = vmatprep.subr.bf16.mxu0 0
          %2585 = vmatpush1.bf16.msra.mxu0 %v2489
          %2586 = vmatprep.subr.bf16.mxu0 0
          %2587 = vmatpush1.bf16.msra.mxu0 %v2490
          %2588 = vmatprep.subr.bf16.mxu0 0
          %2589 = vmatpush1.bf16.msra.mxu0 %v2491
          %2590 = vmatprep.subr.bf16.mxu0 0
          %2591 = vmatpush1.bf16.msra.mxu0 %v2492
          %2592 = vmatprep.subr.bf16.mxu0 0
          %2593 = vmatpush1.bf16.msra.mxu0 %v2493
          %2594 = vmatprep.subr.bf16.mxu0 0
          %2595 = vmatpush1.bf16.msra.mxu0 %v2494
          %2596 = vmatprep.subr.bf16.mxu0 0
          %2597 = vmatpush1.bf16.msra.mxu0 %v2495
          %2598 = vmatprep.subr.bf16.mxu0 0
          %2599 = vmatpush1.bf16.msra.mxu0 %v2496
          %2600 = vmatprep.subr.bf16.mxu0 0
          %2601 = vmatpush1.bf16.msra.mxu0 %v2497
          %2602 = vmatprep.mubr.bf16.mxu0 %v2263
          %2603 = vmatmul.mubr.bf16.gmra.mrb[0].mxu0 %v2262
          %v2604 = vpop.f32.mrb[0].mxu0
          %v2605 = vadd.f32 %v2565, %v2604
          %v2606 = vpop.f32.mrb[0].mxu0
          %v2607 = vpop.f32.mrb[0].mxu0
          %v2608 = vpop.f32.mrb[0].mxu0
          %2609 = vdwg.mxu0
          %v2610 = vadd.f32 %v1921, %v2605
          %s2611 = scalar_lea.vmem %s14, %s961
          %v2612 = vld [vmem:[%s2611] sm:$0x1]
          %s2613 = scalar_lea.vmem %s15, %s961
          %v2614 = vld [vmem:[%s2613] sm:$0x1]
          %2615 = vadd.xlane.f32.xlu0 %v2610
          %v2616 = vpop.xlane.xlu0 %2615
          %v2617 = vmul.f32 %v2616, %v934
          %v2618 = vsub.f32 %v2610, %v2617
          %v2619 = vmul.f32 %v2618, %v2618
          %2620 = vadd.xlane.f32.xlu0 %v2619
          %v2621 = vpop.xlane.xlu0 %2620
          %v2622 = vmul.f32 %v2621, %v934
          %v2623 = vadd.f32 %v2622, 1e-12
          %v2624 = vrsqrt.pop %v2623
          %v2625 = vmul.f32 %v2618, %v2624
          %v2627 = vlaneseq
          %v2628 = vshrl.u32 %v2627, 7
          %v2629 = vsub.s32 0, %v2628
          %v2630 = vrot.slane %v2612, %v2629
          %v2632 = vmul.f32 %v2625, %v2630
          %v2634 = vlaneseq
          %v2635 = vshrl.u32 %v2634, 7
          %v2636 = vsub.s32 0, %v2635
          %v2637 = vrot.slane %v2614, %v2636
          %v2639 = vadd.f32 %v2632, %v2637
          %s2640 = smul.u32 %s961, 8
          %s2641 = scalar_lea.vmem %s900, %s2640 [#allocation12]
          %2642 = vst [vmem:[%s2641] sm:$0xff] %v2639
        $region141: #{visn_lang_forward.1} parent=115 // loop_footer
          %s965 = sadd.s32 1, %s961
        $region142: #{visn_lang_forward.1} parent=115 // loop_footer_branch
          %960 = sbr.rel target = $region138
        $region143: #{visn_lang_forward.1} parent=115 // loop_exit
          _
        %v2643 = vpack.c.bf16 %v966, %v966
        %v2644 = vld [vmem:[%s16] sm:$0xf]
        %v2645 = vld [vmem:[%s16 + $0x4] sm:$0xf]
        %v2646 = vld [vmem:[%s16 + $0x8] sm:$0xf]
        %v2647 = vld [vmem:[%s16 + $0xc] sm:$0xf]
        %v2648 = vld [vmem:[%s16 + $0x10] sm:$0xf]
        %v2649 = vld [vmem:[%s16 + $0x14] sm:$0xf]
        %v2650 = vld [vmem:[%s16 + $0x18] sm:$0xf]
        %v2651 = vld [vmem:[%s16 + $0x1c] sm:$0xf]
        %v2652 = vld [vmem:[%s16 + $0x20] sm:$0xf]
        %v2653 = vld [vmem:[%s16 + $0x24] sm:$0xf]
        %v2654 = vld [vmem:[%s16 + $0x28] sm:$0xf]
        %v2655 = vld [vmem:[%s16 + $0x2c] sm:$0xf]
        %v2656 = vld [vmem:[%s16 + $0x30] sm:$0xf]
        %v2657 = vld [vmem:[%s16 + $0x34] sm:$0xf]
        %v2658 = vld [vmem:[%s16 + $0x38] sm:$0xf]
        %v2659 = vld [vmem:[%s16 + $0x3c] sm:$0xf]
        %v2660 = vld [vmem:[%s17] sm:$0x1]
        %v2677 = vunpack.c.l.b16 %v2644
        %v2678 = vunpack.c.l.b16 %v2645
        %v2679 = vunpack.c.l.b16 %v2646
        %v2680 = vunpack.c.l.b16 %v2647
        %v2681 = vunpack.c.l.b16 %v2648
        %v2682 = vunpack.c.l.b16 %v2649
        %v2683 = vunpack.c.l.b16 %v2650
        %v2684 = vunpack.c.l.b16 %v2651
        %v2685 = vunpack.c.l.b16 %v2652
        %v2686 = vunpack.c.l.b16 %v2653
        %v2687 = vunpack.c.l.b16 %v2654
        %v2688 = vunpack.c.l.b16 %v2655
        %v2689 = vunpack.c.l.b16 %v2656
        %v2690 = vunpack.c.l.b16 %v2657
        %v2691 = vunpack.c.l.b16 %v2658
        %v2692 = vunpack.c.l.b16 %v2659
        %v2693 = vpack.c.b16 %v2678, %v2677
        %v2694 = vpack.c.b16 %v2680, %v2679
        %v2695 = vpack.c.b16 %v2682, %v2681
        %v2696 = vpack.c.b16 %v2684, %v2683
        %v2697 = vpack.c.b16 %v2686, %v2685
        %v2698 = vpack.c.b16 %v2688, %v2687
        %v2699 = vpack.c.b16 %v2690, %v2689
        %v2700 = vpack.c.b16 %v2692, %v2691
        %2709 = vmatprep.subr.bf16.mxu0 0
        %2710 = vmatpush1.bf16.msra.mxu0 %v2693
        %2711 = vmatprep.subr.bf16.mxu0 0
        %2712 = vmatpush1.bf16.msra.mxu0 %v2694
        %2713 = vmatprep.subr.bf16.mxu0 0
        %2714 = vmatpush1.bf16.msra.mxu0 %v2695
        %2715 = vmatprep.subr.bf16.mxu0 0
        %2716 = vmatpush1.bf16.msra.mxu0 %v2696
        %2717 = vmatprep.subr.bf16.mxu0 0
        %2718 = vmatpush1.bf16.msra.mxu0 %v2697
        %2719 = vmatprep.subr.bf16.mxu0 0
        %2720 = vmatpush1.bf16.msra.mxu0 %v2698
        %2721 = vmatprep.subr.bf16.mxu0 0
        %2722 = vmatpush1.bf16.msra.mxu0 %v2699
        %2723 = vmatprep.subr.bf16.mxu0 0
        %2724 = vmatpush1.bf16.msra.mxu0 %v2700
        %2725 = vmatprep.subr.bf16.mxu0 0
        %2726 = vmatpush1.bf16.msra.mxu0 0
        %2727 = vmatprep.subr.bf16.mxu0 0
        %2728 = vmatpush1.bf16.msra.mxu0 0
        %2729 = vmatprep.subr.bf16.mxu0 0
        %2730 = vmatpush1.bf16.msra.mxu0 0
        %2731 = vmatprep.subr.bf16.mxu0 0
        %2732 = vmatpush1.bf16.msra.mxu0 0
        %2733 = vmatprep.subr.bf16.mxu0 0
        %2734 = vmatpush1.bf16.msra.mxu0 0
        %2735 = vmatprep.subr.bf16.mxu0 0
        %2736 = vmatpush1.bf16.msra.mxu0 0
        %2737 = vmatprep.subr.bf16.mxu0 0
        %2738 = vmatpush1.bf16.msra.mxu0 0
        %2739 = vmatprep.subr.bf16.mxu0 0
        %2740 = vmatpush1.bf16.msra.mxu0 0
        %2741 = vmatprep.mubr.bf16.mxu0 0
        %2742 = vmatmul.mubr.bf16.gmra.mrb[0].mxu0 %v2643
        %v2743 = vpop.f32.mrb[0].mxu0
        %v2744 = vadd.f32 %v2660, %v2743
        %v2745 = vpop.f32.mrb[0].mxu0
        %v2746 = vpop.f32.mrb[0].mxu0
        %v2747 = vpop.f32.mrb[0].mxu0
        %2748 = vdwg.mxu0
        %v2749 = vtanh.pop %v2744
        %2750 = vst [vmem:[%s922] sm:$0x1] %v2749
        %v2751 = vld [vmem:[%s18] sm:$0xff]
        %v2752 = vld [vmem:[%s18 + $0x8] sm:$0xff]
        %v2753 = vld [vmem:[%s18 + $0x10] sm:$0xff]
        %v2754 = vld [vmem:[%s18 + $0x18] sm:$0xff]
        %v2755 = vld [vmem:[%s18 + $0x20] sm:$0xff]
        %v2756 = vld [vmem:[%s18 + $0x28] sm:$0xff]
        %v2757 = vld [vmem:[%s18 + $0x30] sm:$0xff]
        %v2758 = vld [vmem:[%s18 + $0x38] sm:$0xff]
        %v2759 = vld [vmem:[%s18 + $0x40] sm:$0xff]
        %v2760 = vld [vmem:[%s18 + $0x48] sm:$0xff]
        %v2761 = vld [vmem:[%s18 + $0x50] sm:$0xff]
        %v2762 = vld [vmem:[%s18 + $0x58] sm:$0xff]
        %v2763 = vld [vmem:[%s18 + $0x60] sm:$0xff]
        %v2764 = vld [vmem:[%s18 + $0x68] sm:$0xff]
        %v2765 = vld [vmem:[%s18 + $0x70] sm:$0xff]
        %v2766 = vld [vmem:[%s18 + $0x78] sm:$0xff]
        %v2767 = vld [vmem:[%s18 + $0x80] sm:$0xff]
        %v2768 = vld [vmem:[%s18 + $0x88] sm:$0xff]
        %v2769 = vld [vmem:[%s18 + $0x90] sm:$0xff]
        %v2770 = vld [vmem:[%s18 + $0x98] sm:$0xff]
        %v2771 = vld [vmem:[%s18 + $0xa0] sm:$0xff]
        %v2772 = vld [vmem:[%s18 + $0xa8] sm:$0xff]
        %v2773 = vld [vmem:[%s18 + $0xb0] sm:$0xff]
        %v2774 = vld [vmem:[%s18 + $0xb8] sm:$0xff]
        %v2775 = vld [vmem:[%s18 + $0xc0] sm:$0xff]
        %v2776 = vld [vmem:[%s18 + $0xc8] sm:$0xff]
        %v2777 = vld [vmem:[%s18 + $0xd0] sm:$0xff]
        %v2778 = vld [vmem:[%s18 + $0xd8] sm:$0xff]
        %v2779 = vld [vmem:[%s18 + $0xe0] sm:$0xff]
        %v2780 = vld [vmem:[%s18 + $0xe8] sm:$0xff]
        %v2781 = vld [vmem:[%s18 + $0xf0] sm:$0xff]
        %v2782 = vld [vmem:[%s18 + $0xf8] sm:$0xff]
        %v2783 = vld [vmem:[%s19] sm:$0xf]
        %v2785 = vlaneseq
        %v2786 = vshrl.u32 %v2785, 7
        %v2787 = vsub.s32 0, %v2786
        %v2788 = vrot.slane %v2783, %v2787
        %v2789 = vlaneseq
        %v2790 = vshrl.u32 %v2789, 7
        %v2791 = vsub.s32 1, %v2790
        %v2792 = vrot.slane %v2783, %v2791
        %v2793 = vlaneseq
        %v2794 = vshrl.u32 %v2793, 7
        %v2795 = vsub.s32 2, %v2794
        %v2796 = vrot.slane %v2783, %v2795
        %v2797 = vlaneseq
        %v2798 = vshrl.u32 %v2797, 7
        %v2799 = vsub.s32 3, %v2798
        %v2800 = vrot.slane %v2783, %v2799
        %v2837 = vunpack.c.l.b16 %v2751
        %v2838 = vunpack.c.h.b16 %v2751
        %v2839 = vunpack.c.l.b16 %v2752
        %v2840 = vunpack.c.h.b16 %v2752
        %v2841 = vunpack.c.l.b16 %v2753
        %v2842 = vunpack.c.h.b16 %v2753
        %v2843 = vunpack.c.l.b16 %v2754
        %v2844 = vunpack.c.h.b16 %v2754
        %v2845 = vunpack.c.l.b16 %v2755
        %v2846 = vunpack.c.h.b16 %v2755
        %v2847 = vunpack.c.l.b16 %v2756
        %v2848 = vunpack.c.h.b16 %v2756
        %v2849 = vunpack.c.l.b16 %v2757
        %v2850 = vunpack.c.h.b16 %v2757
        %v2851 = vunpack.c.l.b16 %v2758
        %v2852 = vunpack.c.h.b16 %v2758
        %v2853 = vunpack.c.l.b16 %v2759
        %v2854 = vunpack.c.h.b16 %v2759
        %v2855 = vunpack.c.l.b16 %v2760
        %v2856 = vunpack.c.h.b16 %v2760
        %v2857 = vunpack.c.l.b16 %v2761
        %v2858 = vunpack.c.h.b16 %v2761
        %v2859 = vunpack.c.l.b16 %v2762
        %v2860 = vunpack.c.h.b16 %v2762
        %v2861 = vunpack.c.l.b16 %v2763
        %v2862 = vunpack.c.h.b16 %v2763
        %v2863 = vunpack.c.l.b16 %v2764
        %v2864 = vunpack.c.h.b16 %v2764
        %v2865 = vunpack.c.l.b16 %v2765
        %v2866 = vunpack.c.h.b16 %v2765
        %v2867 = vunpack.c.l.b16 %v2766
        %v2868 = vunpack.c.h.b16 %v2766
        %v2869 = vunpack.c.l.b16 %v2767
        %v2870 = vunpack.c.h.b16 %v2767
        %v2871 = vunpack.c.l.b16 %v2768
        %v2872 = vunpack.c.h.b16 %v2768
        %v2873 = vunpack.c.l.b16 %v2769
        %v2874 = vunpack.c.h.b16 %v2769
        %v2875 = vunpack.c.l.b16 %v2770
        %v2876 = vunpack.c.h.b16 %v2770
        %v2877 = vunpack.c.l.b16 %v2771
        %v2878 = vunpack.c.h.b16 %v2771
        %v2879 = vunpack.c.l.b16 %v2772
        %v2880 = vunpack.c.h.b16 %v2772
        %v2881 = vunpack.c.l.b16 %v2773
        %v2882 = vunpack.c.h.b16 %v2773
        %v2883 = vunpack.c.l.b16 %v2774
        %v2884 = vunpack.c.h.b16 %v2774
        %v2885 = vunpack.c.l.b16 %v2775
        %v2886 = vunpack.c.h.b16 %v2775
        %v2887 = vunpack.c.l.b16 %v2776
        %v2888 = vunpack.c.h.b16 %v2776
        %v2889 = vunpack.c.l.b16 %v2777
        %v2890 = vunpack.c.h.b16 %v2777
        %v2891 = vunpack.c.l.b16 %v2778
        %v2892 = vunpack.c.h.b16 %v2778
        %v2893 = vunpack.c.l.b16 %v2779
        %v2894 = vunpack.c.h.b16 %v2779
        %v2895 = vunpack.c.l.b16 %v2780
        %v2896 = vunpack.c.h.b16 %v2780
        %v2897 = vunpack.c.l.b16 %v2781
        %v2898 = vunpack.c.h.b16 %v2781
        %v2899 = vunpack.c.l.b16 %v2782
        %v2900 = vunpack.c.h.b16 %v2782
        %v2901 = vpack.c.b16 %v2841, %v2837
        %v2902 = vpack.c.b16 %v2842, %v2838
        %v2903 = vpack.c.b16 %v2843, %v2839
        %v2904 = vpack.c.b16 %v2844, %v2840
        %v2905 = vpack.c.b16 %v2849, %v2845
        %v2906 = vpack.c.b16 %v2850, %v2846
        %v2907 = vpack.c.b16 %v2851, %v2847
        %v2908 = vpack.c.b16 %v2852, %v2848
        %v2909 = vpack.c.b16 %v2857, %v2853
        %v2910 = vpack.c.b16 %v2858, %v2854
        %v2911 = vpack.c.b16 %v2859, %v2855
        %v2912 = vpack.c.b16 %v2860, %v2856
        %v2913 = vpack.c.b16 %v2865, %v2861
        %v2914 = vpack.c.b16 %v2866, %v2862
        %v2915 = vpack.c.b16 %v2867, %v2863
        %v2916 = vpack.c.b16 %v2868, %v2864
        %v2917 = vpack.c.b16 %v2873, %v2869
        %v2918 = vpack.c.b16 %v2874, %v2870
        %v2919 = vpack.c.b16 %v2875, %v2871
        %v2920 = vpack.c.b16 %v2876, %v2872
        %v2921 = vpack.c.b16 %v2881, %v2877
        %v2922 = vpack.c.b16 %v2882, %v2878
        %v2923 = vpack.c.b16 %v2883, %v2879
        %v2924 = vpack.c.b16 %v2884, %v2880
        %v2925 = vpack.c.b16 %v2889, %v2885
        %v2926 = vpack.c.b16 %v2890, %v2886
        %v2927 = vpack.c.b16 %v2891, %v2887
        %v2928 = vpack.c.b16 %v2892, %v2888
        %v2929 = vpack.c.b16 %v2897, %v2893
        %v2930 = vpack.c.b16 %v2898, %v2894
        %v2931 = vpack.c.b16 %v2899, %v2895
        %v2932 = vpack.c.b16 %v2900, %v2896
        %2965 = vmatprep.subr.bf16.mxu0 %v2902
        %2966 = vmatpush1.bf16.msra.mxu0 %v2901
        %2967 = vmatprep.subr.bf16.mxu0 %v2906
        %2968 = vmatpush1.bf16.msra.mxu0 %v2905
        %2969 = vmatprep.subr.bf16.mxu0 %v2910
        %2970 = vmatpush1.bf16.msra.mxu0 %v2909
        %2971 = vmatprep.subr.bf16.mxu0 %v2914
        %2972 = vmatpush1.bf16.msra.mxu0 %v2913
        %2973 = vmatprep.subr.bf16.mxu0 %v2918
        %2974 = vmatpush1.bf16.msra.mxu0 %v2917
        %2975 = vmatprep.subr.bf16.mxu0 %v2922
        %2976 = vmatpush1.bf16.msra.mxu0 %v2921
        %2977 = vmatprep.subr.bf16.mxu0 %v2926
        %2978 = vmatpush1.bf16.msra.mxu0 %v2925
        %2979 = vmatprep.subr.bf16.mxu0 %v2930
        %2980 = vmatpush1.bf16.msra.mxu0 %v2929
        %2981 = vmatprep.subr.bf16.mxu0 0
        %2982 = vmatpush1.bf16.msra.mxu0 0
        %2983 = vmatprep.subr.bf16.mxu0 0
        %2984 = vmatpush1.bf16.msra.mxu0 0
        %2985 = vmatprep.subr.bf16.mxu0 0
        %2986 = vmatpush1.bf16.msra.mxu0 0
        %2987 = vmatprep.subr.bf16.mxu0 0
        %2988 = vmatpush1.bf16.msra.mxu0 0
        %2989 = vmatprep.subr.bf16.mxu0 0
        %2990 = vmatpush1.bf16.msra.mxu0 0
        %2991 = vmatprep.subr.bf16.mxu0 0
        %2992 = vmatpush1.bf16.msra.mxu0 0
        %2993 = vmatprep.subr.bf16.mxu0 0
        %2994 = vmatpush1.bf16.msra.mxu0 0
        %2995 = vmatprep.subr.bf16.mxu0 0
        %2996 = vmatpush1.bf16.msra.mxu0 0
        %2997 = vmatprep.mubr.bf16.mxu0 0
        %2998 = vmatmul.mubr.bf16.gmra.mrb[0].mxu0 %v2643
        %v2999 = vpop.f32.mrb[0].mxu0
        %v3000 = vadd.f32 %v2788, %v2999
        %v3001 = vpop.f32.mrb[0].mxu0
        %v3002 = vadd.f32 %v2792, %v3001
        %v3003 = vpop.f32.mrb[0].mxu0
        %v3004 = vpop.f32.mrb[0].mxu0
        %3005 = vdwg.mxu0
        %3006 = vmatprep.subr.bf16.mxu0 %v2904
        %3007 = vmatpush1.bf16.msra.mxu0 %v2903
        %3008 = vmatprep.subr.bf16.mxu0 %v2908
        %3009 = vmatpush1.bf16.msra.mxu0 %v2907
        %3010 = vmatprep.subr.bf16.mxu0 %v2912
        %3011 = vmatpush1.bf16.msra.mxu0 %v2911
        %3012 = vmatprep.subr.bf16.mxu0 %v2916
        %3013 = vmatpush1.bf16.msra.mxu0 %v2915
        %3014 = vmatprep.subr.bf16.mxu0 %v2920
        %3015 = vmatpush1.bf16.msra.mxu0 %v2919
        %3016 = vmatprep.subr.bf16.mxu0 %v2924
        %3017 = vmatpush1.bf16.msra.mxu0 %v2923
        %3018 = vmatprep.subr.bf16.mxu0 %v2928
        %3019 = vmatpush1.bf16.msra.mxu0 %v2927
        %3020 = vmatprep.subr.bf16.mxu0 %v2932
        %3021 = vmatpush1.bf16.msra.mxu0 %v2931
        %3022 = vmatprep.subr.bf16.mxu0 0
        %3023 = vmatpush1.bf16.msra.mxu0 0
        %3024 = vmatprep.subr.bf16.mxu0 0
        %3025 = vmatpush1.bf16.msra.mxu0 0
        %3026 = vmatprep.subr.bf16.mxu0 0
        %3027 = vmatpush1.bf16.msra.mxu0 0
        %3028 = vmatprep.subr.bf16.mxu0 0
        %3029 = vmatpush1.bf16.msra.mxu0 0
        %3030 = vmatprep.subr.bf16.mxu0 0
        %3031 = vmatpush1.bf16.msra.mxu0 0
        %3032 = vmatprep.subr.bf16.mxu0 0
        %3033 = vmatpush1.bf16.msra.mxu0 0
        %3034 = vmatprep.subr.bf16.mxu0 0
        %3035 = vmatpush1.bf16.msra.mxu0 0
        %3036 = vmatprep.subr.bf16.mxu0 0
        %3037 = vmatpush1.bf16.msra.mxu0 0
        %3038 = vmatprep.mubr.bf16.mxu0 0
        %3039 = vmatmul.mubr.bf16.gmra.mrb[0].mxu0 %v2643
        %v3040 = vpop.f32.mrb[0].mxu0
        %v3041 = vadd.f32 %v2796, %v3040
        %v3042 = vpop.f32.mrb[0].mxu0
        %v3043 = vadd.f32 %v2800, %v3042
        %v3044 = vpop.f32.mrb[0].mxu0
        %v3045 = vpop.f32.mrb[0].mxu0
        %3046 = vdwg.mxu0
        %v3047 = vmax.f32 %v3000, 0.0
        %v3048 = vmax.f32 %v3002, 0.0
        %v3049 = vmax.f32 %v3041, 0.0
        %v3050 = vmax.f32 %v3043, 0.0
        %v3051 = vpack.c.bf16 %v3047, %v3047
        %v3052 = vpack.c.bf16 %v3048, %v3048
        %v3053 = vpack.c.bf16 %v3049, %v3049
        %v3054 = vpack.c.bf16 %v3050, %v3050
        %v3055 = vld [vmem:[#allocation8] sm:$0xff]
        %v3056 = vld [vmem:[#allocation8 + $0x8] sm:$0xff]
        %v3057 = vld [vmem:[#allocation8 + $0x10] sm:$0xff]
        %v3058 = vld [vmem:[#allocation8 + $0x18] sm:$0xff]
        %v3059 = vld [vmem:[#allocation8 + $0x20] sm:$0xff]
        %v3060 = vld [vmem:[#allocation8 + $0x28] sm:$0xff]
        %v3061 = vld [vmem:[#allocation8 + $0x30] sm:$0xff]
        %v3062 = vld [vmem:[#allocation8 + $0x38] sm:$0xff]
        %v3063 = vld [vmem:[#allocation8 + $0x40] sm:$0xff]
        %v3064 = vld [vmem:[#allocation8 + $0x48] sm:$0xff]
        %v3065 = vld [vmem:[#allocation8 + $0x50] sm:$0xff]
        %v3066 = vld [vmem:[#allocation8 + $0x58] sm:$0xff]
        %v3067 = vld [vmem:[#allocation8 + $0x60] sm:$0xff]
        %v3068 = vld [vmem:[#allocation8 + $0x68] sm:$0xff]
        %v3069 = vld [vmem:[#allocation8 + $0x70] sm:$0xff]
        %v3070 = vld [vmem:[#allocation8 + $0x78] sm:$0xff]
        %v3071 = vld [vmem:[#allocation8 + $0x80] sm:$0xff]
        %v3072 = vld [vmem:[#allocation8 + $0x88] sm:$0xff]
        %v3073 = vld [vmem:[#allocation8 + $0x90] sm:$0xff]
        %v3074 = vld [vmem:[#allocation8 + $0x98] sm:$0xff]
        %v3075 = vld [vmem:[#allocation8 + $0xa0] sm:$0xff]
        %v3076 = vld [vmem:[#allocation8 + $0xa8] sm:$0xff]
        %v3077 = vld [vmem:[#allocation8 + $0xb0] sm:$0xff]
        %v3078 = vld [vmem:[#allocation8 + $0xb8] sm:$0xff]
        %v3079 = vld [vmem:[#allocation8 + $0xc0] sm:$0xff]
        %v3080 = vld [vmem:[#allocation8 + $0xc8] sm:$0xff]
        %v3081 = vld [vmem:[#allocation8 + $0xd0] sm:$0xff]
        %v3082 = vld [vmem:[#allocation8 + $0xd8] sm:$0xff]
        %v3083 = vld [vmem:[#allocation8 + $0xe0] sm:$0xff]
        %v3084 = vld [vmem:[#allocation8 + $0xe8] sm:$0xff]
        %v3085 = vld [vmem:[#allocation8 + $0xf0] sm:$0xff]
        %v3086 = vld [vmem:[#allocation8 + $0xf8] sm:$0xff]
        %v3087 = vld [vmem:[#allocation8 + $0x100] sm:$0xff]
        %v3088 = vld [vmem:[#allocation8 + $0x108] sm:$0xff]
        %v3089 = vld [vmem:[#allocation8 + $0x110] sm:$0xff]
        %v3090 = vld [vmem:[#allocation8 + $0x118] sm:$0xff]
        %v3091 = vld [vmem:[#allocation8 + $0x120] sm:$0xff]
        %v3092 = vld [vmem:[#allocation8 + $0x128] sm:$0xff]
        %v3093 = vld [vmem:[#allocation8 + $0x130] sm:$0xff]
        %v3094 = vld [vmem:[#allocation8 + $0x138] sm:$0xff]
        %v3095 = vld [vmem:[#allocation8 + $0x140] sm:$0xff]
        %v3096 = vld [vmem:[#allocation8 + $0x148] sm:$0xff]
        %v3097 = vld [vmem:[#allocation8 + $0x150] sm:$0xff]
        %v3098 = vld [vmem:[#allocation8 + $0x158] sm:$0xff]
        %v3099 = vld [vmem:[#allocation8 + $0x160] sm:$0xff]
        %v3100 = vld [vmem:[#allocation8 + $0x168] sm:$0xff]
        %v3101 = vld [vmem:[#allocation8 + $0x170] sm:$0xff]
        %v3102 = vld [vmem:[#allocation8 + $0x178] sm:$0xff]
        %v3103 = vld [vmem:[#allocation8 + $0x180] sm:$0xff]
        %v3104 = vld [vmem:[#allocation8 + $0x188] sm:$0xff]
        %v3105 = vld [vmem:[#allocation8 + $0x190] sm:$0xff]
        %v3106 = vld [vmem:[#allocation8 + $0x198] sm:$0xff]
        %v3107 = vld [vmem:[#allocation8 + $0x1a0] sm:$0xff]
        %v3108 = vld [vmem:[#allocation8 + $0x1a8] sm:$0xff]
        %v3109 = vld [vmem:[#allocation8 + $0x1b0] sm:$0xff]
        %v3110 = vld [vmem:[#allocation8 + $0x1b8] sm:$0xff]
        %v3111 = vld [vmem:[#allocation8 + $0x1c0] sm:$0xff]
        %v3112 = vld [vmem:[#allocation8 + $0x1c8] sm:$0xff]
        %v3113 = vld [vmem:[#allocation8 + $0x1d0] sm:$0xff]
        %v3114 = vld [vmem:[#allocation8 + $0x1d8] sm:$0xff]
        %v3115 = vld [vmem:[#allocation8 + $0x1e0] sm:$0xff]
        %v3116 = vld [vmem:[#allocation8 + $0x1e8] sm:$0xff]
        %v3117 = vld [vmem:[#allocation8 + $0x1f0] sm:$0xff]
        %v3118 = vld [vmem:[#allocation8 + $0x1f8] sm:$0xff]
        %v3119 = vld [vmem:[#allocation8 + $0x200] sm:$0xff]
        %v3120 = vld [vmem:[#allocation8 + $0x208] sm:$0xff]
        %v3121 = vld [vmem:[#allocation8 + $0x210] sm:$0xff]
        %v3122 = vld [vmem:[#allocation8 + $0x218] sm:$0xff]
        %v3123 = vld [vmem:[#allocation8 + $0x220] sm:$0xff]
        %v3124 = vld [vmem:[#allocation8 + $0x228] sm:$0xff]
        %v3125 = vld [vmem:[#allocation8 + $0x230] sm:$0xff]
        %v3126 = vld [vmem:[#allocation8 + $0x238] sm:$0xff]
        %v3127 = vld [vmem:[#allocation8 + $0x240] sm:$0xff]
        %v3128 = vld [vmem:[#allocation8 + $0x248] sm:$0xff]
        %v3129 = vld [vmem:[#allocation8 + $0x250] sm:$0xff]
        %v3130 = vld [vmem:[#allocation8 + $0x258] sm:$0xff]
        %v3131 = vld [vmem:[#allocation8 + $0x260] sm:$0xff]
        %v3132 = vld [vmem:[#allocation8 + $0x268] sm:$0xff]
        %v3133 = vld [vmem:[#allocation8 + $0x270] sm:$0xff]
        %v3134 = vld [vmem:[#allocation8 + $0x278] sm:$0xff]
        %v3135 = vld [vmem:[#allocation8 + $0x280] sm:$0xff]
        %v3136 = vld [vmem:[#allocation8 + $0x288] sm:$0xff]
        %v3137 = vld [vmem:[#allocation8 + $0x290] sm:$0xff]
        %v3138 = vld [vmem:[#allocation8 + $0x298] sm:$0xff]
        %v3139 = vld [vmem:[#allocation8 + $0x2a0] sm:$0xff]
        %v3140 = vld [vmem:[#allocation8 + $0x2a8] sm:$0xff]
        %v3141 = vld [vmem:[#allocation8 + $0x2b0] sm:$0xff]
        %v3142 = vld [vmem:[#allocation8 + $0x2b8] sm:$0xff]
        %v3143 = vld [vmem:[#allocation8 + $0x2c0] sm:$0xff]
        %v3144 = vld [vmem:[#allocation8 + $0x2c8] sm:$0xff]
        %v3145 = vld [vmem:[#allocation8 + $0x2d0] sm:$0xff]
        %v3146 = vld [vmem:[#allocation8 + $0x2d8] sm:$0xff]
        %v3147 = vld [vmem:[#allocation8 + $0x2e0] sm:$0xff]
        %v3148 = vld [vmem:[#allocation8 + $0x2e8] sm:$0xff]
        %v3149 = vld [vmem:[#allocation8 + $0x2f0] sm:$0xff]
        %v3150 = vld [vmem:[#allocation8 + $0x2f8] sm:$0xff]
        %v3151 = vld [vmem:[#allocation8 + $0x300] sm:$0xff]
        %v3152 = vld [vmem:[#allocation8 + $0x308] sm:$0xff]
        %v3153 = vld [vmem:[#allocation8 + $0x310] sm:$0xff]
        %v3154 = vld [vmem:[#allocation8 + $0x318] sm:$0xff]
        %v3155 = vld [vmem:[#allocation8 + $0x320] sm:$0xff]
        %v3156 = vld [vmem:[#allocation8 + $0x328] sm:$0xff]
        %v3157 = vld [vmem:[#allocation8 + $0x330] sm:$0xff]
        %v3158 = vld [vmem:[#allocation8 + $0x338] sm:$0xff]
        %v3159 = vld [vmem:[#allocation8 + $0x340] sm:$0xff]
        %v3160 = vld [vmem:[#allocation8 + $0x348] sm:$0xff]
        %v3161 = vld [vmem:[#allocation8 + $0x350] sm:$0xff]
        %v3162 = vld [vmem:[#allocation8 + $0x358] sm:$0xff]
        %v3163 = vld [vmem:[#allocation8 + $0x360] sm:$0xff]
        %v3164 = vld [vmem:[#allocation8 + $0x368] sm:$0xff]
        %v3165 = vld [vmem:[#allocation8 + $0x370] sm:$0xff]
        %v3166 = vld [vmem:[#allocation8 + $0x378] sm:$0xff]
        %v3167 = vld [vmem:[#allocation8 + $0x380] sm:$0xff]
        %v3168 = vld [vmem:[#allocation8 + $0x388] sm:$0xff]
        %v3169 = vld [vmem:[#allocation8 + $0x390] sm:$0xff]
        %v3170 = vld [vmem:[#allocation8 + $0x398] sm:$0xff]
        %v3171 = vld [vmem:[#allocation8 + $0x3a0] sm:$0xff]
        %v3172 = vld [vmem:[#allocation8 + $0x3a8] sm:$0xff]
        %v3173 = vld [vmem:[#allocation8 + $0x3b0] sm:$0xff]
        %v3174 = vld [vmem:[#allocation8 + $0x3b8] sm:$0xff]
        %v3175 = vld [vmem:[#allocation8 + $0x3c0] sm:$0xff]
        %v3176 = vld [vmem:[#allocation8 + $0x3c8] sm:$0xff]
        %v3177 = vld [vmem:[#allocation8 + $0x3d0] sm:$0xff]
        %v3178 = vld [vmem:[#allocation8 + $0x3d8] sm:$0xff]
        %v3179 = vld [vmem:[#allocation8 + $0x3e0] sm:$0xff]
        %v3180 = vld [vmem:[#allocation8 + $0x3e8] sm:$0xff]
        %v3181 = vld [vmem:[#allocation8 + $0x3f0] sm:$0xff]
        %v3182 = vld [vmem:[#allocation8 + $0x3f8] sm:$0xff]
        %v3183 = vld [vmem:[%s21] sm:$0xf]
        %v3185 = vlaneseq
        %v3186 = vshrl.u32 %v3185, 7
        %v3187 = vsub.s32 0, %v3186
        %v3188 = vrot.slane %v3183, %v3187
        %v3189 = vlaneseq
        %v3190 = vshrl.u32 %v3189, 7
        %v3191 = vsub.s32 1, %v3190
        %v3192 = vrot.slane %v3183, %v3191
        %v3193 = vlaneseq
        %v3194 = vshrl.u32 %v3193, 7
        %v3195 = vsub.s32 2, %v3194
        %v3196 = vrot.slane %v3183, %v3195
        %v3197 = vlaneseq
        %v3198 = vshrl.u32 %v3197, 7
        %v3199 = vsub.s32 3, %v3198
        %v3200 = vrot.slane %v3183, %v3199
        %v3333 = vunpack.c.l.b16 %v3055
        %v3334 = vunpack.c.h.b16 %v3055
        %v3335 = vunpack.c.l.b16 %v3056
        %v3336 = vunpack.c.h.b16 %v3056
        %v3337 = vunpack.c.l.b16 %v3057
        %v3338 = vunpack.c.h.b16 %v3057
        %v3339 = vunpack.c.l.b16 %v3058
        %v3340 = vunpack.c.h.b16 %v3058
        %v3341 = vunpack.c.l.b16 %v3059
        %v3342 = vunpack.c.h.b16 %v3059
        %v3343 = vunpack.c.l.b16 %v3060
        %v3344 = vunpack.c.h.b16 %v3060
        %v3345 = vunpack.c.l.b16 %v3061
        %v3346 = vunpack.c.h.b16 %v3061
        %v3347 = vunpack.c.l.b16 %v3062
        %v3348 = vunpack.c.h.b16 %v3062
        %v3349 = vunpack.c.l.b16 %v3063
        %v3350 = vunpack.c.h.b16 %v3063
        %v3351 = vunpack.c.l.b16 %v3064
        %v3352 = vunpack.c.h.b16 %v3064
        %v3353 = vunpack.c.l.b16 %v3065
        %v3354 = vunpack.c.h.b16 %v3065
        %v3355 = vunpack.c.l.b16 %v3066
        %v3356 = vunpack.c.h.b16 %v3066
        %v3357 = vunpack.c.l.b16 %v3067
        %v3358 = vunpack.c.h.b16 %v3067
        %v3359 = vunpack.c.l.b16 %v3068
        %v3360 = vunpack.c.h.b16 %v3068
        %v3361 = vunpack.c.l.b16 %v3069
        %v3362 = vunpack.c.h.b16 %v3069
        %v3363 = vunpack.c.l.b16 %v3070
        %v3364 = vunpack.c.h.b16 %v3070
        %v3365 = vunpack.c.l.b16 %v3071
        %v3366 = vunpack.c.h.b16 %v3071
        %v3367 = vunpack.c.l.b16 %v3072
        %v3368 = vunpack.c.h.b16 %v3072
        %v3369 = vunpack.c.l.b16 %v3073
        %v3370 = vunpack.c.h.b16 %v3073
        %v3371 = vunpack.c.l.b16 %v3074
        %v3372 = vunpack.c.h.b16 %v3074
        %v3373 = vunpack.c.l.b16 %v3075
        %v3374 = vunpack.c.h.b16 %v3075
        %v3375 = vunpack.c.l.b16 %v3076
        %v3376 = vunpack.c.h.b16 %v3076
        %v3377 = vunpack.c.l.b16 %v3077
        %v3378 = vunpack.c.h.b16 %v3077
        %v3379 = vunpack.c.l.b16 %v3078
        %v3380 = vunpack.c.h.b16 %v3078
        %v3381 = vunpack.c.l.b16 %v3079
        %v3382 = vunpack.c.h.b16 %v3079
        %v3383 = vunpack.c.l.b16 %v3080
        %v3384 = vunpack.c.h.b16 %v3080
        %v3385 = vunpack.c.l.b16 %v3081
        %v3386 = vunpack.c.h.b16 %v3081
        %v3387 = vunpack.c.l.b16 %v3082
        %v3388 = vunpack.c.h.b16 %v3082
        %v3389 = vunpack.c.l.b16 %v3083
        %v3390 = vunpack.c.h.b16 %v3083
        %v3391 = vunpack.c.l.b16 %v3084
        %v3392 = vunpack.c.h.b16 %v3084
        %v3393 = vunpack.c.l.b16 %v3085
        %v3394 = vunpack.c.h.b16 %v3085
        %v3395 = vunpack.c.l.b16 %v3086
        %v3396 = vunpack.c.h.b16 %v3086
        %v3397 = vunpack.c.l.b16 %v3087
        %v3398 = vunpack.c.h.b16 %v3087
        %v3399 = vunpack.c.l.b16 %v3088
        %v3400 = vunpack.c.h.b16 %v3088
        %v3401 = vunpack.c.l.b16 %v3089
        %v3402 = vunpack.c.h.b16 %v3089
        %v3403 = vunpack.c.l.b16 %v3090
        %v3404 = vunpack.c.h.b16 %v3090
        %v3405 = vunpack.c.l.b16 %v3091
        %v3406 = vunpack.c.h.b16 %v3091
        %v3407 = vunpack.c.l.b16 %v3092
        %v3408 = vunpack.c.h.b16 %v3092
        %v3409 = vunpack.c.l.b16 %v3093
        %v3410 = vunpack.c.h.b16 %v3093
        %v3411 = vunpack.c.l.b16 %v3094
        %v3412 = vunpack.c.h.b16 %v3094
        %v3413 = vunpack.c.l.b16 %v3095
        %v3414 = vunpack.c.h.b16 %v3095
        %v3415 = vunpack.c.l.b16 %v3096
        %v3416 = vunpack.c.h.b16 %v3096
        %v3417 = vunpack.c.l.b16 %v3097
        %v3418 = vunpack.c.h.b16 %v3097
        %v3419 = vunpack.c.l.b16 %v3098
        %v3420 = vunpack.c.h.b16 %v3098
        %v3421 = vunpack.c.l.b16 %v3099
        %v3422 = vunpack.c.h.b16 %v3099
        %v3423 = vunpack.c.l.b16 %v3100
        %v3424 = vunpack.c.h.b16 %v3100
        %v3425 = vunpack.c.l.b16 %v3101
        %v3426 = vunpack.c.h.b16 %v3101
        %v3427 = vunpack.c.l.b16 %v3102
        %v3428 = vunpack.c.h.b16 %v3102
        %v3429 = vunpack.c.l.b16 %v3103
        %v3430 = vunpack.c.h.b16 %v3103
        %v3431 = vunpack.c.l.b16 %v3104
        %v3432 = vunpack.c.h.b16 %v3104
        %v3433 = vunpack.c.l.b16 %v3105
        %v3434 = vunpack.c.h.b16 %v3105
        %v3435 = vunpack.c.l.b16 %v3106
        %v3436 = vunpack.c.h.b16 %v3106
        %v3437 = vunpack.c.l.b16 %v3107
        %v3438 = vunpack.c.h.b16 %v3107
        %v3439 = vunpack.c.l.b16 %v3108
        %v3440 = vunpack.c.h.b16 %v3108
        %v3441 = vunpack.c.l.b16 %v3109
        %v3442 = vunpack.c.h.b16 %v3109
        %v3443 = vunpack.c.l.b16 %v3110
        %v3444 = vunpack.c.h.b16 %v3110
        %v3445 = vunpack.c.l.b16 %v3111
        %v3446 = vunpack.c.h.b16 %v3111
        %v3447 = vunpack.c.l.b16 %v3112
        %v3448 = vunpack.c.h.b16 %v3112
        %v3449 = vunpack.c.l.b16 %v3113
        %v3450 = vunpack.c.h.b16 %v3113
        %v3451 = vunpack.c.l.b16 %v3114
        %v3452 = vunpack.c.h.b16 %v3114
        %v3453 = vunpack.c.l.b16 %v3115
        %v3454 = vunpack.c.h.b16 %v3115
        %v3455 = vunpack.c.l.b16 %v3116
        %v3456 = vunpack.c.h.b16 %v3116
        %v3457 = vunpack.c.l.b16 %v3117
        %v3458 = vunpack.c.h.b16 %v3117
        %v3459 = vunpack.c.l.b16 %v3118
        %v3460 = vunpack.c.h.b16 %v3118
        %v3461 = vunpack.c.l.b16 %v3119
        %v3462 = vunpack.c.h.b16 %v3119
        %v3463 = vunpack.c.l.b16 %v3120
        %v3464 = vunpack.c.h.b16 %v3120
        %v3465 = vunpack.c.l.b16 %v3121
        %v3466 = vunpack.c.h.b16 %v3121
        %v3467 = vunpack.c.l.b16 %v3122
        %v3468 = vunpack.c.h.b16 %v3122
        %v3469 = vunpack.c.l.b16 %v3123
        %v3470 = vunpack.c.h.b16 %v3123
        %v3471 = vunpack.c.l.b16 %v3124
        %v3472 = vunpack.c.h.b16 %v3124
        %v3473 = vunpack.c.l.b16 %v3125
        %v3474 = vunpack.c.h.b16 %v3125
        %v3475 = vunpack.c.l.b16 %v3126
        %v3476 = vunpack.c.h.b16 %v3126
        %v3477 = vunpack.c.l.b16 %v3127
        %v3478 = vunpack.c.h.b16 %v3127
        %v3479 = vunpack.c.l.b16 %v3128
        %v3480 = vunpack.c.h.b16 %v3128
        %v3481 = vunpack.c.l.b16 %v3129
        %v3482 = vunpack.c.h.b16 %v3129
        %v3483 = vunpack.c.l.b16 %v3130
        %v3484 = vunpack.c.h.b16 %v3130
        %v3485 = vunpack.c.l.b16 %v3131
        %v3486 = vunpack.c.h.b16 %v3131
        %v3487 = vunpack.c.l.b16 %v3132
        %v3488 = vunpack.c.h.b16 %v3132
        %v3489 = vunpack.c.l.b16 %v3133
        %v3490 = vunpack.c.h.b16 %v3133
        %v3491 = vunpack.c.l.b16 %v3134
        %v3492 = vunpack.c.h.b16 %v3134
        %v3493 = vunpack.c.l.b16 %v3135
        %v3494 = vunpack.c.h.b16 %v3135
        %v3495 = vunpack.c.l.b16 %v3136
        %v3496 = vunpack.c.h.b16 %v3136
        %v3497 = vunpack.c.l.b16 %v3137
        %v3498 = vunpack.c.h.b16 %v3137
        %v3499 = vunpack.c.l.b16 %v3138
        %v3500 = vunpack.c.h.b16 %v3138
        %v3501 = vunpack.c.l.b16 %v3139
        %v3502 = vunpack.c.h.b16 %v3139
        %v3503 = vunpack.c.l.b16 %v3140
        %v3504 = vunpack.c.h.b16 %v3140
        %v3505 = vunpack.c.l.b16 %v3141
        %v3506 = vunpack.c.h.b16 %v3141
        %v3507 = vunpack.c.l.b16 %v3142
        %v3508 = vunpack.c.h.b16 %v3142
        %v3509 = vunpack.c.l.b16 %v3143
        %v3510 = vunpack.c.h.b16 %v3143
        %v3511 = vunpack.c.l.b16 %v3144
        %v3512 = vunpack.c.h.b16 %v3144
        %v3513 = vunpack.c.l.b16 %v3145
        %v3514 = vunpack.c.h.b16 %v3145
        %v3515 = vunpack.c.l.b16 %v3146
        %v3516 = vunpack.c.h.b16 %v3146
        %v3517 = vunpack.c.l.b16 %v3147
        %v3518 = vunpack.c.h.b16 %v3147
        %v3519 = vunpack.c.l.b16 %v3148
        %v3520 = vunpack.c.h.b16 %v3148
        %v3521 = vunpack.c.l.b16 %v3149
        %v3522 = vunpack.c.h.b16 %v3149
        %v3523 = vunpack.c.l.b16 %v3150
        %v3524 = vunpack.c.h.b16 %v3150
        %v3525 = vunpack.c.l.b16 %v3151
        %v3526 = vunpack.c.h.b16 %v3151
        %v3527 = vunpack.c.l.b16 %v3152
        %v3528 = vunpack.c.h.b16 %v3152
        %v3529 = vunpack.c.l.b16 %v3153
        %v3530 = vunpack.c.h.b16 %v3153
        %v3531 = vunpack.c.l.b16 %v3154
        %v3532 = vunpack.c.h.b16 %v3154
        %v3533 = vunpack.c.l.b16 %v3155
        %v3534 = vunpack.c.h.b16 %v3155
        %v3535 = vunpack.c.l.b16 %v3156
        %v3536 = vunpack.c.h.b16 %v3156
        %v3537 = vunpack.c.l.b16 %v3157
        %v3538 = vunpack.c.h.b16 %v3157
        %v3539 = vunpack.c.l.b16 %v3158
        %v3540 = vunpack.c.h.b16 %v3158
        %v3541 = vunpack.c.l.b16 %v3159
        %v3542 = vunpack.c.h.b16 %v3159
        %v3543 = vunpack.c.l.b16 %v3160
        %v3544 = vunpack.c.h.b16 %v3160
        %v3545 = vunpack.c.l.b16 %v3161
        %v3546 = vunpack.c.h.b16 %v3161
        %v3547 = vunpack.c.l.b16 %v3162
        %v3548 = vunpack.c.h.b16 %v3162
        %v3549 = vunpack.c.l.b16 %v3163
        %v3550 = vunpack.c.h.b16 %v3163
        %v3551 = vunpack.c.l.b16 %v3164
        %v3552 = vunpack.c.h.b16 %v3164
        %v3553 = vunpack.c.l.b16 %v3165
        %v3554 = vunpack.c.h.b16 %v3165
        %v3555 = vunpack.c.l.b16 %v3166
        %v3556 = vunpack.c.h.b16 %v3166
        %v3557 = vunpack.c.l.b16 %v3167
        %v3558 = vunpack.c.h.b16 %v3167
        %v3559 = vunpack.c.l.b16 %v3168
        %v3560 = vunpack.c.h.b16 %v3168
        %v3561 = vunpack.c.l.b16 %v3169
        %v3562 = vunpack.c.h.b16 %v3169
        %v3563 = vunpack.c.l.b16 %v3170
        %v3564 = vunpack.c.h.b16 %v3170
        %v3565 = vunpack.c.l.b16 %v3171
        %v3566 = vunpack.c.h.b16 %v3171
        %v3567 = vunpack.c.l.b16 %v3172
        %v3568 = vunpack.c.h.b16 %v3172
        %v3569 = vunpack.c.l.b16 %v3173
        %v3570 = vunpack.c.h.b16 %v3173
        %v3571 = vunpack.c.l.b16 %v3174
        %v3572 = vunpack.c.h.b16 %v3174
        %v3573 = vunpack.c.l.b16 %v3175
        %v3574 = vunpack.c.h.b16 %v3175
        %v3575 = vunpack.c.l.b16 %v3176
        %v3576 = vunpack.c.h.b16 %v3176
        %v3577 = vunpack.c.l.b16 %v3177
        %v3578 = vunpack.c.h.b16 %v3177
        %v3579 = vunpack.c.l.b16 %v3178
        %v3580 = vunpack.c.h.b16 %v3178
        %v3581 = vunpack.c.l.b16 %v3179
        %v3582 = vunpack.c.h.b16 %v3179
        %v3583 = vunpack.c.l.b16 %v3180
        %v3584 = vunpack.c.h.b16 %v3180
        %v3585 = vunpack.c.l.b16 %v3181
        %v3586 = vunpack.c.h.b16 %v3181
        %v3587 = vunpack.c.l.b16 %v3182
        %v3588 = vunpack.c.h.b16 %v3182
        %v3589 = vpack.c.b16 %v3337, %v3333
        %v3590 = vpack.c.b16 %v3338, %v3334
        %v3591 = vpack.c.b16 %v3339, %v3335
        %v3592 = vpack.c.b16 %v3340, %v3336
        %v3593 = vpack.c.b16 %v3345, %v3341
        %v3594 = vpack.c.b16 %v3346, %v3342
        %v3595 = vpack.c.b16 %v3347, %v3343
        %v3596 = vpack.c.b16 %v3348, %v3344
        %v3597 = vpack.c.b16 %v3353, %v3349
        %v3598 = vpack.c.b16 %v3354, %v3350
        %v3599 = vpack.c.b16 %v3355, %v3351
        %v3600 = vpack.c.b16 %v3356, %v3352
        %v3601 = vpack.c.b16 %v3361, %v3357
        %v3602 = vpack.c.b16 %v3362, %v3358
        %v3603 = vpack.c.b16 %v3363, %v3359
        %v3604 = vpack.c.b16 %v3364, %v3360
        %v3605 = vpack.c.b16 %v3369, %v3365
        %v3606 = vpack.c.b16 %v3370, %v3366
        %v3607 = vpack.c.b16 %v3371, %v3367
        %v3608 = vpack.c.b16 %v3372, %v3368
        %v3609 = vpack.c.b16 %v3377, %v3373
        %v3610 = vpack.c.b16 %v3378, %v3374
        %v3611 = vpack.c.b16 %v3379, %v3375
        %v3612 = vpack.c.b16 %v3380, %v3376
        %v3613 = vpack.c.b16 %v3385, %v3381
        %v3614 = vpack.c.b16 %v3386, %v3382
        %v3615 = vpack.c.b16 %v3387, %v3383
        %v3616 = vpack.c.b16 %v3388, %v3384
        %v3617 = vpack.c.b16 %v3393, %v3389
        %v3618 = vpack.c.b16 %v3394, %v3390
        %v3619 = vpack.c.b16 %v3395, %v3391
        %v3620 = vpack.c.b16 %v3396, %v3392
        %v3621 = vpack.c.b16 %v3401, %v3397
        %v3622 = vpack.c.b16 %v3402, %v3398
        %v3623 = vpack.c.b16 %v3403, %v3399
        %v3624 = vpack.c.b16 %v3404, %v3400
        %v3625 = vpack.c.b16 %v3409, %v3405
        %v3626 = vpack.c.b16 %v3410, %v3406
        %v3627 = vpack.c.b16 %v3411, %v3407
        %v3628 = vpack.c.b16 %v3412, %v3408
        %v3629 = vpack.c.b16 %v3417, %v3413
        %v3630 = vpack.c.b16 %v3418, %v3414
        %v3631 = vpack.c.b16 %v3419, %v3415
        %v3632 = vpack.c.b16 %v3420, %v3416
        %v3633 = vpack.c.b16 %v3425, %v3421
        %v3634 = vpack.c.b16 %v3426, %v3422
        %v3635 = vpack.c.b16 %v3427, %v3423
        %v3636 = vpack.c.b16 %v3428, %v3424
        %v3637 = vpack.c.b16 %v3433, %v3429
        %v3638 = vpack.c.b16 %v3434, %v3430
        %v3639 = vpack.c.b16 %v3435, %v3431
        %v3640 = vpack.c.b16 %v3436, %v3432
        %v3641 = vpack.c.b16 %v3441, %v3437
        %v3642 = vpack.c.b16 %v3442, %v3438
        %v3643 = vpack.c.b16 %v3443, %v3439
        %v3644 = vpack.c.b16 %v3444, %v3440
        %v3645 = vpack.c.b16 %v3449, %v3445
        %v3646 = vpack.c.b16 %v3450, %v3446
        %v3647 = vpack.c.b16 %v3451, %v3447
        %v3648 = vpack.c.b16 %v3452, %v3448
        %v3649 = vpack.c.b16 %v3457, %v3453
        %v3650 = vpack.c.b16 %v3458, %v3454
        %v3651 = vpack.c.b16 %v3459, %v3455
        %v3652 = vpack.c.b16 %v3460, %v3456
        %v3653 = vpack.c.b16 %v3465, %v3461
        %v3654 = vpack.c.b16 %v3466, %v3462
        %v3655 = vpack.c.b16 %v3467, %v3463
        %v3656 = vpack.c.b16 %v3468, %v3464
        %v3657 = vpack.c.b16 %v3473, %v3469
        %v3658 = vpack.c.b16 %v3474, %v3470
        %v3659 = vpack.c.b16 %v3475, %v3471
        %v3660 = vpack.c.b16 %v3476, %v3472
        %v3661 = vpack.c.b16 %v3481, %v3477
        %v3662 = vpack.c.b16 %v3482, %v3478
        %v3663 = vpack.c.b16 %v3483, %v3479
        %v3664 = vpack.c.b16 %v3484, %v3480
        %v3665 = vpack.c.b16 %v3489, %v3485
        %v3666 = vpack.c.b16 %v3490, %v3486
        %v3667 = vpack.c.b16 %v3491, %v3487
        %v3668 = vpack.c.b16 %v3492, %v3488
        %v3669 = vpack.c.b16 %v3497, %v3493
        %v3670 = vpack.c.b16 %v3498, %v3494
        %v3671 = vpack.c.b16 %v3499, %v3495
        %v3672 = vpack.c.b16 %v3500, %v3496
        %v3673 = vpack.c.b16 %v3505, %v3501
        %v3674 = vpack.c.b16 %v3506, %v3502
        %v3675 = vpack.c.b16 %v3507, %v3503
        %v3676 = vpack.c.b16 %v3508, %v3504
        %v3677 = vpack.c.b16 %v3513, %v3509
        %v3678 = vpack.c.b16 %v3514, %v3510
        %v3679 = vpack.c.b16 %v3515, %v3511
        %v3680 = vpack.c.b16 %v3516, %v3512
        %v3681 = vpack.c.b16 %v3521, %v3517
        %v3682 = vpack.c.b16 %v3522, %v3518
        %v3683 = vpack.c.b16 %v3523, %v3519
        %v3684 = vpack.c.b16 %v3524, %v3520
        %v3685 = vpack.c.b16 %v3529, %v3525
        %v3686 = vpack.c.b16 %v3530, %v3526
        %v3687 = vpack.c.b16 %v3531, %v3527
        %v3688 = vpack.c.b16 %v3532, %v3528
        %v3689 = vpack.c.b16 %v3537, %v3533
        %v3690 = vpack.c.b16 %v3538, %v3534
        %v3691 = vpack.c.b16 %v3539, %v3535
        %v3692 = vpack.c.b16 %v3540, %v3536
        %v3693 = vpack.c.b16 %v3545, %v3541
        %v3694 = vpack.c.b16 %v3546, %v3542
        %v3695 = vpack.c.b16 %v3547, %v3543
        %v3696 = vpack.c.b16 %v3548, %v3544
        %v3697 = vpack.c.b16 %v3553, %v3549
        %v3698 = vpack.c.b16 %v3554, %v3550
        %v3699 = vpack.c.b16 %v3555, %v3551
        %v3700 = vpack.c.b16 %v3556, %v3552
        %v3701 = vpack.c.b16 %v3561, %v3557
        %v3702 = vpack.c.b16 %v3562, %v3558
        %v3703 = vpack.c.b16 %v3563, %v3559
        %v3704 = vpack.c.b16 %v3564, %v3560
        %v3705 = vpack.c.b16 %v3569, %v3565
        %v3706 = vpack.c.b16 %v3570, %v3566
        %v3707 = vpack.c.b16 %v3571, %v3567
        %v3708 = vpack.c.b16 %v3572, %v3568
        %v3709 = vpack.c.b16 %v3577, %v3573
        %v3710 = vpack.c.b16 %v3578, %v3574
        %v3711 = vpack.c.b16 %v3579, %v3575
        %v3712 = vpack.c.b16 %v3580, %v3576
        %v3713 = vpack.c.b16 %v3585, %v3581
        %v3714 = vpack.c.b16 %v3586, %v3582
        %v3715 = vpack.c.b16 %v3587, %v3583
        %v3716 = vpack.c.b16 %v3588, %v3584
        %3845 = vmatprep.subr.bf16.mxu0 %v3590
        %3846 = vmatpush1.bf16.msra.mxu0 %v3589
        %3847 = vmatprep.subr.bf16.mxu0 %v3594
        %3848 = vmatpush1.bf16.msra.mxu0 %v3593
        %3849 = vmatprep.subr.bf16.mxu0 %v3598
        %3850 = vmatpush1.bf16.msra.mxu0 %v3597
        %3851 = vmatprep.subr.bf16.mxu0 %v3602
        %3852 = vmatpush1.bf16.msra.mxu0 %v3601
        %3853 = vmatprep.subr.bf16.mxu0 %v3606
        %3854 = vmatpush1.bf16.msra.mxu0 %v3605
        %3855 = vmatprep.subr.bf16.mxu0 %v3610
        %3856 = vmatpush1.bf16.msra.mxu0 %v3609
        %3857 = vmatprep.subr.bf16.mxu0 %v3614
        %3858 = vmatpush1.bf16.msra.mxu0 %v3613
        %3859 = vmatprep.subr.bf16.mxu0 %v3618
        %3860 = vmatpush1.bf16.msra.mxu0 %v3617
        %3861 = vmatprep.subr.bf16.mxu0 %v3622
        %3862 = vmatpush1.bf16.msra.mxu0 %v3621
        %3863 = vmatprep.subr.bf16.mxu0 %v3626
        %3864 = vmatpush1.bf16.msra.mxu0 %v3625
        %3865 = vmatprep.subr.bf16.mxu0 %v3630
        %3866 = vmatpush1.bf16.msra.mxu0 %v3629
        %3867 = vmatprep.subr.bf16.mxu0 %v3634
        %3868 = vmatpush1.bf16.msra.mxu0 %v3633
        %3869 = vmatprep.subr.bf16.mxu0 %v3638
        %3870 = vmatpush1.bf16.msra.mxu0 %v3637
        %3871 = vmatprep.subr.bf16.mxu0 %v3642
        %3872 = vmatpush1.bf16.msra.mxu0 %v3641
        %3873 = vmatprep.subr.bf16.mxu0 %v3646
        %3874 = vmatpush1.bf16.msra.mxu0 %v3645
        %3875 = vmatprep.subr.bf16.mxu0 %v3650
        %3876 = vmatpush1.bf16.msra.mxu0 %v3649
        %3877 = vmatprep.mubr.bf16.mxu0 %v3052
        %3878 = vmatmul.mubr.bf16.gmra.mrb[0].mxu0 %v3051
        %v3879 = vpop.f32.mrb[0].mxu0
        %v3880 = vadd.f32 %v3188, %v3879
        %v3881 = vpop.f32.mrb[0].mxu0
        %v3882 = vadd.f32 %v3192, %v3881
        %v3883 = vpop.f32.mrb[0].mxu0
        %v3884 = vpop.f32.mrb[0].mxu0
        %3885 = vdwg.mxu0
        %3886 = vmatprep.subr.bf16.mxu0 %v3654
        %3887 = vmatpush1.bf16.msra.mxu0 %v3653
        %3888 = vmatprep.subr.bf16.mxu0 %v3658
        %3889 = vmatpush1.bf16.msra.mxu0 %v3657
        %3890 = vmatprep.subr.bf16.mxu0 %v3662
        %3891 = vmatpush1.bf16.msra.mxu0 %v3661
        %3892 = vmatprep.subr.bf16.mxu0 %v3666
        %3893 = vmatpush1.bf16.msra.mxu0 %v3665
        %3894 = vmatprep.subr.bf16.mxu0 %v3670
        %3895 = vmatpush1.bf16.msra.mxu0 %v3669
        %3896 = vmatprep.subr.bf16.mxu0 %v3674
        %3897 = vmatpush1.bf16.msra.mxu0 %v3673
        %3898 = vmatprep.subr.bf16.mxu0 %v3678
        %3899 = vmatpush1.bf16.msra.mxu0 %v3677
        %3900 = vmatprep.subr.bf16.mxu0 %v3682
        %3901 = vmatpush1.bf16.msra.mxu0 %v3681
        %3902 = vmatprep.subr.bf16.mxu0 %v3686
        %3903 = vmatpush1.bf16.msra.mxu0 %v3685
        %3904 = vmatprep.subr.bf16.mxu0 %v3690
        %3905 = vmatpush1.bf16.msra.mxu0 %v3689
        %3906 = vmatprep.subr.bf16.mxu0 %v3694
        %3907 = vmatpush1.bf16.msra.mxu0 %v3693
        %3908 = vmatprep.subr.bf16.mxu0 %v3698
        %3909 = vmatpush1.bf16.msra.mxu0 %v3697
        %3910 = vmatprep.subr.bf16.mxu0 %v3702
        %3911 = vmatpush1.bf16.msra.mxu0 %v3701
        %3912 = vmatprep.subr.bf16.mxu0 %v3706
        %3913 = vmatpush1.bf16.msra.mxu0 %v3705
        %3914 = vmatprep.subr.bf16.mxu0 %v3710
        %3915 = vmatpush1.bf16.msra.mxu0 %v3709
        %3916 = vmatprep.subr.bf16.mxu0 %v3714
        %3917 = vmatpush1.bf16.msra.mxu0 %v3713
        %3918 = vmatprep.mubr.bf16.mxu0 %v3054
        %3919 = vmatmul.mubr.bf16.gmra.mrb[0].mxu0 %v3053
        %v3920 = vpop.f32.mrb[0].mxu0
        %v3921 = vadd.f32 %v3880, %v3920
        %v3922 = vpop.f32.mrb[0].mxu0
        %v3923 = vadd.f32 %v3882, %v3922
        %v3924 = vpop.f32.mrb[0].mxu0
        %v3925 = vpop.f32.mrb[0].mxu0
        %3926 = vdwg.mxu0
        %3927 = vmatprep.subr.bf16.mxu0 %v3592
        %3928 = vmatpush1.bf16.msra.mxu0 %v3591
        %3929 = vmatprep.subr.bf16.mxu0 %v3596
        %3930 = vmatpush1.bf16.msra.mxu0 %v3595
        %3931 = vmatprep.subr.bf16.mxu0 %v3600
        %3932 = vmatpush1.bf16.msra.mxu0 %v3599
        %3933 = vmatprep.subr.bf16.mxu0 %v3604
        %3934 = vmatpush1.bf16.msra.mxu0 %v3603
        %3935 = vmatprep.subr.bf16.mxu0 %v3608
        %3936 = vmatpush1.bf16.msra.mxu0 %v3607
        %3937 = vmatprep.subr.bf16.mxu0 %v3612
        %3938 = vmatpush1.bf16.msra.mxu0 %v3611
        %3939 = vmatprep.subr.bf16.mxu0 %v3616
        %3940 = vmatpush1.bf16.msra.mxu0 %v3615
        %3941 = vmatprep.subr.bf16.mxu0 %v3620
        %3942 = vmatpush1.bf16.msra.mxu0 %v3619
        %3943 = vmatprep.subr.bf16.mxu0 %v3624
        %3944 = vmatpush1.bf16.msra.mxu0 %v3623
        %3945 = vmatprep.subr.bf16.mxu0 %v3628
        %3946 = vmatpush1.bf16.msra.mxu0 %v3627
        %3947 = vmatprep.subr.bf16.mxu0 %v3632
        %3948 = vmatpush1.bf16.msra.mxu0 %v3631
        %3949 = vmatprep.subr.bf16.mxu0 %v3636
        %3950 = vmatpush1.bf16.msra.mxu0 %v3635
        %3951 = vmatprep.subr.bf16.mxu0 %v3640
        %3952 = vmatpush1.bf16.msra.mxu0 %v3639
        %3953 = vmatprep.subr.bf16.mxu0 %v3644
        %3954 = vmatpush1.bf16.msra.mxu0 %v3643
        %3955 = vmatprep.subr.bf16.mxu0 %v3648
        %3956 = vmatpush1.bf16.msra.mxu0 %v3647
        %3957 = vmatprep.subr.bf16.mxu0 %v3652
        %3958 = vmatpush1.bf16.msra.mxu0 %v3651
        %3959 = vmatprep.mubr.bf16.mxu0 %v3052
        %3960 = vmatmul.mubr.bf16.gmra.mrb[0].mxu0 %v3051
        %v3961 = vpop.f32.mrb[0].mxu0
        %v3962 = vadd.f32 %v3196, %v3961
        %v3963 = vpop.f32.mrb[0].mxu0
        %v3964 = vadd.f32 %v3200, %v3963
        %v3965 = vpop.f32.mrb[0].mxu0
        %v3966 = vpop.f32.mrb[0].mxu0
        %3967 = vdwg.mxu0
        %3968 = vmatprep.subr.bf16.mxu0 %v3656
        %3969 = vmatpush1.bf16.msra.mxu0 %v3655
        %3970 = vmatprep.subr.bf16.mxu0 %v3660
        %3971 = vmatpush1.bf16.msra.mxu0 %v3659
        %3972 = vmatprep.subr.bf16.mxu0 %v3664
        %3973 = vmatpush1.bf16.msra.mxu0 %v3663
        %3974 = vmatprep.subr.bf16.mxu0 %v3668
        %3975 = vmatpush1.bf16.msra.mxu0 %v3667
        %3976 = vmatprep.subr.bf16.mxu0 %v3672
        %3977 = vmatpush1.bf16.msra.mxu0 %v3671
        %3978 = vmatprep.subr.bf16.mxu0 %v3676
        %3979 = vmatpush1.bf16.msra.mxu0 %v3675
        %3980 = vmatprep.subr.bf16.mxu0 %v3680
        %3981 = vmatpush1.bf16.msra.mxu0 %v3679
        %3982 = vmatprep.subr.bf16.mxu0 %v3684
        %3983 = vmatpush1.bf16.msra.mxu0 %v3683
        %3984 = vmatprep.subr.bf16.mxu0 %v3688
        %3985 = vmatpush1.bf16.msra.mxu0 %v3687
        %3986 = vmatprep.subr.bf16.mxu0 %v3692
        %3987 = vmatpush1.bf16.msra.mxu0 %v3691
        %3988 = vmatprep.subr.bf16.mxu0 %v3696
        %3989 = vmatpush1.bf16.msra.mxu0 %v3695
        %3990 = vmatprep.subr.bf16.mxu0 %v3700
        %3991 = vmatpush1.bf16.msra.mxu0 %v3699
        %3992 = vmatprep.subr.bf16.mxu0 %v3704
        %3993 = vmatpush1.bf16.msra.mxu0 %v3703
        %3994 = vmatprep.subr.bf16.mxu0 %v3708
        %3995 = vmatpush1.bf16.msra.mxu0 %v3707
        %3996 = vmatprep.subr.bf16.mxu0 %v3712
        %3997 = vmatpush1.bf16.msra.mxu0 %v3711
        %3998 = vmatprep.subr.bf16.mxu0 %v3716
        %3999 = vmatpush1.bf16.msra.mxu0 %v3715
        %4000 = vmatprep.mubr.bf16.mxu0 %v3054
        %4001 = vmatmul.mubr.bf16.gmra.mrb[0].mxu0 %v3053
        %v4002 = vpop.f32.mrb[0].mxu0
        %v4003 = vadd.f32 %v3962, %v4002
        %v4004 = vpop.f32.mrb[0].mxu0
        %v4005 = vadd.f32 %v3964, %v4004
        %v4006 = vpop.f32.mrb[0].mxu0
        %v4007 = vpop.f32.mrb[0].mxu0
        %4008 = vdwg.mxu0
        %v4009 = vmax.f32 %v3921, 0.0
        %v4010 = vmax.f32 %v3923, 0.0
        %v4011 = vmax.f32 %v4003, 0.0
        %v4012 = vmax.f32 %v4005, 0.0
        %v4013 = vpack.c.bf16 %v4009, %v4009
        %v4014 = vpack.c.bf16 %v4010, %v4010
        %v4015 = vpack.c.bf16 %v4011, %v4011
        %v4016 = vpack.c.bf16 %v4012, %v4012
        %v4017 = vld [vmem:[#allocation10] sm:$0xff]
        %v4018 = vld [vmem:[#allocation10 + $0x8] sm:$0xff]
        %v4019 = vld [vmem:[#allocation10 + $0x10] sm:$0xff]
        %v4020 = vld [vmem:[#allocation10 + $0x18] sm:$0xff]
        %v4021 = vld [vmem:[#allocation10 + $0x20] sm:$0xff]
        %v4022 = vld [vmem:[#allocation10 + $0x28] sm:$0xff]
        %v4023 = vld [vmem:[#allocation10 + $0x30] sm:$0xff]
        %v4024 = vld [vmem:[#allocation10 + $0x38] sm:$0xff]
        %v4025 = vld [vmem:[#allocation10 + $0x40] sm:$0xff]
        %v4026 = vld [vmem:[#allocation10 + $0x48] sm:$0xff]
        %v4027 = vld [vmem:[#allocation10 + $0x50] sm:$0xff]
        %v4028 = vld [vmem:[#allocation10 + $0x58] sm:$0xff]
        %v4029 = vld [vmem:[#allocation10 + $0x60] sm:$0xff]
        %v4030 = vld [vmem:[#allocation10 + $0x68] sm:$0xff]
        %v4031 = vld [vmem:[#allocation10 + $0x70] sm:$0xff]
        %v4032 = vld [vmem:[#allocation10 + $0x78] sm:$0xff]
        %v4033 = vld [vmem:[#allocation10 + $0x80] sm:$0xff]
        %v4034 = vld [vmem:[#allocation10 + $0x88] sm:$0xff]
        %v4035 = vld [vmem:[#allocation10 + $0x90] sm:$0xff]
        %v4036 = vld [vmem:[#allocation10 + $0x98] sm:$0xff]
        %v4037 = vld [vmem:[#allocation10 + $0xa0] sm:$0xff]
        %v4038 = vld [vmem:[#allocation10 + $0xa8] sm:$0xff]
        %v4039 = vld [vmem:[#allocation10 + $0xb0] sm:$0xff]
        %v4040 = vld [vmem:[#allocation10 + $0xb8] sm:$0xff]
        %v4041 = vld [vmem:[#allocation10 + $0xc0] sm:$0xff]
        %v4042 = vld [vmem:[#allocation10 + $0xc8] sm:$0xff]
        %v4043 = vld [vmem:[#allocation10 + $0xd0] sm:$0xff]
        %v4044 = vld [vmem:[#allocation10 + $0xd8] sm:$0xff]
        %v4045 = vld [vmem:[#allocation10 + $0xe0] sm:$0xff]
        %v4046 = vld [vmem:[#allocation10 + $0xe8] sm:$0xff]
        %v4047 = vld [vmem:[#allocation10 + $0xf0] sm:$0xff]
        %v4048 = vld [vmem:[#allocation10 + $0xf8] sm:$0xff]
        %v4049 = vld [vmem:[#allocation10 + $0x100] sm:$0xff]
        %v4050 = vld [vmem:[#allocation10 + $0x108] sm:$0xff]
        %v4051 = vld [vmem:[#allocation10 + $0x110] sm:$0xff]
        %v4052 = vld [vmem:[#allocation10 + $0x118] sm:$0xff]
        %v4053 = vld [vmem:[#allocation10 + $0x120] sm:$0xff]
        %v4054 = vld [vmem:[#allocation10 + $0x128] sm:$0xff]
        %v4055 = vld [vmem:[#allocation10 + $0x130] sm:$0xff]
        %v4056 = vld [vmem:[#allocation10 + $0x138] sm:$0xff]
        %v4057 = vld [vmem:[#allocation10 + $0x140] sm:$0xff]
        %v4058 = vld [vmem:[#allocation10 + $0x148] sm:$0xff]
        %v4059 = vld [vmem:[#allocation10 + $0x150] sm:$0xff]
        %v4060 = vld [vmem:[#allocation10 + $0x158] sm:$0xff]
        %v4061 = vld [vmem:[#allocation10 + $0x160] sm:$0xff]
        %v4062 = vld [vmem:[#allocation10 + $0x168] sm:$0xff]
        %v4063 = vld [vmem:[#allocation10 + $0x170] sm:$0xff]
        %v4064 = vld [vmem:[#allocation10 + $0x178] sm:$0xff]
        %v4065 = vld [vmem:[#allocation10 + $0x180] sm:$0xff]
        %v4066 = vld [vmem:[#allocation10 + $0x188] sm:$0xff]
        %v4067 = vld [vmem:[#allocation10 + $0x190] sm:$0xff]
        %v4068 = vld [vmem:[#allocation10 + $0x198] sm:$0xff]
        %v4069 = vld [vmem:[#allocation10 + $0x1a0] sm:$0xff]
        %v4070 = vld [vmem:[#allocation10 + $0x1a8] sm:$0xff]
        %v4071 = vld [vmem:[#allocation10 + $0x1b0] sm:$0xff]
        %v4072 = vld [vmem:[#allocation10 + $0x1b8] sm:$0xff]
        %v4073 = vld [vmem:[#allocation10 + $0x1c0] sm:$0xff]
        %v4074 = vld [vmem:[#allocation10 + $0x1c8] sm:$0xff]
        %v4075 = vld [vmem:[#allocation10 + $0x1d0] sm:$0xff]
        %v4076 = vld [vmem:[#allocation10 + $0x1d8] sm:$0xff]
        %v4077 = vld [vmem:[#allocation10 + $0x1e0] sm:$0xff]
        %v4078 = vld [vmem:[#allocation10 + $0x1e8] sm:$0xff]
        %v4079 = vld [vmem:[#allocation10 + $0x1f0] sm:$0xff]
        %v4080 = vld [vmem:[#allocation10 + $0x1f8] sm:$0xff]
        %v4081 = vld [vmem:[#allocation10 + $0x200] sm:$0xff]
        %v4082 = vld [vmem:[#allocation10 + $0x208] sm:$0xff]
        %v4083 = vld [vmem:[#allocation10 + $0x210] sm:$0xff]
        %v4084 = vld [vmem:[#allocation10 + $0x218] sm:$0xff]
        %v4085 = vld [vmem:[#allocation10 + $0x220] sm:$0xff]
        %v4086 = vld [vmem:[#allocation10 + $0x228] sm:$0xff]
        %v4087 = vld [vmem:[#allocation10 + $0x230] sm:$0xff]
        %v4088 = vld [vmem:[#allocation10 + $0x238] sm:$0xff]
        %v4089 = vld [vmem:[#allocation10 + $0x240] sm:$0xff]
        %v4090 = vld [vmem:[#allocation10 + $0x248] sm:$0xff]
        %v4091 = vld [vmem:[#allocation10 + $0x250] sm:$0xff]
        %v4092 = vld [vmem:[#allocation10 + $0x258] sm:$0xff]
        %v4093 = vld [vmem:[#allocation10 + $0x260] sm:$0xff]
        %v4094 = vld [vmem:[#allocation10 + $0x268] sm:$0xff]
        %v4095 = vld [vmem:[#allocation10 + $0x270] sm:$0xff]
        %v4096 = vld [vmem:[#allocation10 + $0x278] sm:$0xff]
        %v4097 = vld [vmem:[#allocation10 + $0x280] sm:$0xff]
        %v4098 = vld [vmem:[#allocation10 + $0x288] sm:$0xff]
        %v4099 = vld [vmem:[#allocation10 + $0x290] sm:$0xff]
        %v4100 = vld [vmem:[#allocation10 + $0x298] sm:$0xff]
        %v4101 = vld [vmem:[#allocation10 + $0x2a0] sm:$0xff]
        %v4102 = vld [vmem:[#allocation10 + $0x2a8] sm:$0xff]
        %v4103 = vld [vmem:[#allocation10 + $0x2b0] sm:$0xff]
        %v4104 = vld [vmem:[#allocation10 + $0x2b8] sm:$0xff]
        %v4105 = vld [vmem:[#allocation10 + $0x2c0] sm:$0xff]
        %v4106 = vld [vmem:[#allocation10 + $0x2c8] sm:$0xff]
        %v4107 = vld [vmem:[#allocation10 + $0x2d0] sm:$0xff]
        %v4108 = vld [vmem:[#allocation10 + $0x2d8] sm:$0xff]
        %v4109 = vld [vmem:[#allocation10 + $0x2e0] sm:$0xff]
        %v4110 = vld [vmem:[#allocation10 + $0x2e8] sm:$0xff]
        %v4111 = vld [vmem:[#allocation10 + $0x2f0] sm:$0xff]
        %v4112 = vld [vmem:[#allocation10 + $0x2f8] sm:$0xff]
        %v4113 = vld [vmem:[#allocation10 + $0x300] sm:$0xff]
        %v4114 = vld [vmem:[#allocation10 + $0x308] sm:$0xff]
        %v4115 = vld [vmem:[#allocation10 + $0x310] sm:$0xff]
        %v4116 = vld [vmem:[#allocation10 + $0x318] sm:$0xff]
        %v4117 = vld [vmem:[#allocation10 + $0x320] sm:$0xff]
        %v4118 = vld [vmem:[#allocation10 + $0x328] sm:$0xff]
        %v4119 = vld [vmem:[#allocation10 + $0x330] sm:$0xff]
        %v4120 = vld [vmem:[#allocation10 + $0x338] sm:$0xff]
        %v4121 = vld [vmem:[#allocation10 + $0x340] sm:$0xff]
        %v4122 = vld [vmem:[#allocation10 + $0x348] sm:$0xff]
        %v4123 = vld [vmem:[#allocation10 + $0x350] sm:$0xff]
        %v4124 = vld [vmem:[#allocation10 + $0x358] sm:$0xff]
        %v4125 = vld [vmem:[#allocation10 + $0x360] sm:$0xff]
        %v4126 = vld [vmem:[#allocation10 + $0x368] sm:$0xff]
        %v4127 = vld [vmem:[#allocation10 + $0x370] sm:$0xff]
        %v4128 = vld [vmem:[#allocation10 + $0x378] sm:$0xff]
        %v4129 = vld [vmem:[#allocation10 + $0x380] sm:$0xff]
        %v4130 = vld [vmem:[#allocation10 + $0x388] sm:$0xff]
        %v4131 = vld [vmem:[#allocation10 + $0x390] sm:$0xff]
        %v4132 = vld [vmem:[#allocation10 + $0x398] sm:$0xff]
        %v4133 = vld [vmem:[#allocation10 + $0x3a0] sm:$0xff]
        %v4134 = vld [vmem:[#allocation10 + $0x3a8] sm:$0xff]
        %v4135 = vld [vmem:[#allocation10 + $0x3b0] sm:$0xff]
        %v4136 = vld [vmem:[#allocation10 + $0x3b8] sm:$0xff]
        %v4137 = vld [vmem:[#allocation10 + $0x3c0] sm:$0xff]
        %v4138 = vld [vmem:[#allocation10 + $0x3c8] sm:$0xff]
        %v4139 = vld [vmem:[#allocation10 + $0x3d0] sm:$0xff]
        %v4140 = vld [vmem:[#allocation10 + $0x3d8] sm:$0xff]
        %v4141 = vld [vmem:[#allocation10 + $0x3e0] sm:$0xff]
        %v4142 = vld [vmem:[#allocation10 + $0x3e8] sm:$0xff]
        %v4143 = vld [vmem:[#allocation10 + $0x3f0] sm:$0xff]
        %v4144 = vld [vmem:[#allocation10 + $0x3f8] sm:$0xff]
        %v4145 = vld [vmem:[%s23] sm:$0xf]
        %v4147 = vlaneseq
        %v4148 = vshrl.u32 %v4147, 7
        %v4149 = vsub.s32 0, %v4148
        %v4150 = vrot.slane %v4145, %v4149
        %v4151 = vlaneseq
        %v4152 = vshrl.u32 %v4151, 7
        %v4153 = vsub.s32 1, %v4152
        %v4154 = vrot.slane %v4145, %v4153
        %v4155 = vlaneseq
        %v4156 = vshrl.u32 %v4155, 7
        %v4157 = vsub.s32 2, %v4156
        %v4158 = vrot.slane %v4145, %v4157
        %v4159 = vlaneseq
        %v4160 = vshrl.u32 %v4159, 7
        %v4161 = vsub.s32 3, %v4160
        %v4162 = vrot.slane %v4145, %v4161
        %v4295 = vunpack.c.l.b16 %v4017
        %v4296 = vunpack.c.h.b16 %v4017
        %v4297 = vunpack.c.l.b16 %v4018
        %v4298 = vunpack.c.h.b16 %v4018
        %v4299 = vunpack.c.l.b16 %v4019
        %v4300 = vunpack.c.h.b16 %v4019
        %v4301 = vunpack.c.l.b16 %v4020
        %v4302 = vunpack.c.h.b16 %v4020
        %v4303 = vunpack.c.l.b16 %v4021
        %v4304 = vunpack.c.h.b16 %v4021
        %v4305 = vunpack.c.l.b16 %v4022
        %v4306 = vunpack.c.h.b16 %v4022
        %v4307 = vunpack.c.l.b16 %v4023
        %v4308 = vunpack.c.h.b16 %v4023
        %v4309 = vunpack.c.l.b16 %v4024
        %v4310 = vunpack.c.h.b16 %v4024
        %v4311 = vunpack.c.l.b16 %v4025
        %v4312 = vunpack.c.h.b16 %v4025
        %v4313 = vunpack.c.l.b16 %v4026
        %v4314 = vunpack.c.h.b16 %v4026
        %v4315 = vunpack.c.l.b16 %v4027
        %v4316 = vunpack.c.h.b16 %v4027
        %v4317 = vunpack.c.l.b16 %v4028
        %v4318 = vunpack.c.h.b16 %v4028
        %v4319 = vunpack.c.l.b16 %v4029
        %v4320 = vunpack.c.h.b16 %v4029
        %v4321 = vunpack.c.l.b16 %v4030
        %v4322 = vunpack.c.h.b16 %v4030
        %v4323 = vunpack.c.l.b16 %v4031
        %v4324 = vunpack.c.h.b16 %v4031
        %v4325 = vunpack.c.l.b16 %v4032
        %v4326 = vunpack.c.h.b16 %v4032
        %v4327 = vunpack.c.l.b16 %v4033
        %v4328 = vunpack.c.h.b16 %v4033
        %v4329 = vunpack.c.l.b16 %v4034
        %v4330 = vunpack.c.h.b16 %v4034
        %v4331 = vunpack.c.l.b16 %v4035
        %v4332 = vunpack.c.h.b16 %v4035
        %v4333 = vunpack.c.l.b16 %v4036
        %v4334 = vunpack.c.h.b16 %v4036
        %v4335 = vunpack.c.l.b16 %v4037
        %v4336 = vunpack.c.h.b16 %v4037
        %v4337 = vunpack.c.l.b16 %v4038
        %v4338 = vunpack.c.h.b16 %v4038
        %v4339 = vunpack.c.l.b16 %v4039
        %v4340 = vunpack.c.h.b16 %v4039
        %v4341 = vunpack.c.l.b16 %v4040
        %v4342 = vunpack.c.h.b16 %v4040
        %v4343 = vunpack.c.l.b16 %v4041
        %v4344 = vunpack.c.h.b16 %v4041
        %v4345 = vunpack.c.l.b16 %v4042
        %v4346 = vunpack.c.h.b16 %v4042
        %v4347 = vunpack.c.l.b16 %v4043
        %v4348 = vunpack.c.h.b16 %v4043
        %v4349 = vunpack.c.l.b16 %v4044
        %v4350 = vunpack.c.h.b16 %v4044
        %v4351 = vunpack.c.l.b16 %v4045
        %v4352 = vunpack.c.h.b16 %v4045
        %v4353 = vunpack.c.l.b16 %v4046
        %v4354 = vunpack.c.h.b16 %v4046
        %v4355 = vunpack.c.l.b16 %v4047
        %v4356 = vunpack.c.h.b16 %v4047
        %v4357 = vunpack.c.l.b16 %v4048
        %v4358 = vunpack.c.h.b16 %v4048
        %v4359 = vunpack.c.l.b16 %v4049
        %v4360 = vunpack.c.h.b16 %v4049
        %v4361 = vunpack.c.l.b16 %v4050
        %v4362 = vunpack.c.h.b16 %v4050
        %v4363 = vunpack.c.l.b16 %v4051
        %v4364 = vunpack.c.h.b16 %v4051
        %v4365 = vunpack.c.l.b16 %v4052
        %v4366 = vunpack.c.h.b16 %v4052
        %v4367 = vunpack.c.l.b16 %v4053
        %v4368 = vunpack.c.h.b16 %v4053
        %v4369 = vunpack.c.l.b16 %v4054
        %v4370 = vunpack.c.h.b16 %v4054
        %v4371 = vunpack.c.l.b16 %v4055
        %v4372 = vunpack.c.h.b16 %v4055
        %v4373 = vunpack.c.l.b16 %v4056
        %v4374 = vunpack.c.h.b16 %v4056
        %v4375 = vunpack.c.l.b16 %v4057
        %v4376 = vunpack.c.h.b16 %v4057
        %v4377 = vunpack.c.l.b16 %v4058
        %v4378 = vunpack.c.h.b16 %v4058
        %v4379 = vunpack.c.l.b16 %v4059
        %v4380 = vunpack.c.h.b16 %v4059
        %v4381 = vunpack.c.l.b16 %v4060
        %v4382 = vunpack.c.h.b16 %v4060
        %v4383 = vunpack.c.l.b16 %v4061
        %v4384 = vunpack.c.h.b16 %v4061
        %v4385 = vunpack.c.l.b16 %v4062
        %v4386 = vunpack.c.h.b16 %v4062
        %v4387 = vunpack.c.l.b16 %v4063
        %v4388 = vunpack.c.h.b16 %v4063
        %v4389 = vunpack.c.l.b16 %v4064
        %v4390 = vunpack.c.h.b16 %v4064
        %v4391 = vunpack.c.l.b16 %v4065
        %v4392 = vunpack.c.h.b16 %v4065
        %v4393 = vunpack.c.l.b16 %v4066
        %v4394 = vunpack.c.h.b16 %v4066
        %v4395 = vunpack.c.l.b16 %v4067
        %v4396 = vunpack.c.h.b16 %v4067
        %v4397 = vunpack.c.l.b16 %v4068
        %v4398 = vunpack.c.h.b16 %v4068
        %v4399 = vunpack.c.l.b16 %v4069
        %v4400 = vunpack.c.h.b16 %v4069
        %v4401 = vunpack.c.l.b16 %v4070
        %v4402 = vunpack.c.h.b16 %v4070
        %v4403 = vunpack.c.l.b16 %v4071
        %v4404 = vunpack.c.h.b16 %v4071
        %v4405 = vunpack.c.l.b16 %v4072
        %v4406 = vunpack.c.h.b16 %v4072
        %v4407 = vunpack.c.l.b16 %v4073
        %v4408 = vunpack.c.h.b16 %v4073
        %v4409 = vunpack.c.l.b16 %v4074
        %v4410 = vunpack.c.h.b16 %v4074
        %v4411 = vunpack.c.l.b16 %v4075
        %v4412 = vunpack.c.h.b16 %v4075
        %v4413 = vunpack.c.l.b16 %v4076
        %v4414 = vunpack.c.h.b16 %v4076
        %v4415 = vunpack.c.l.b16 %v4077
        %v4416 = vunpack.c.h.b16 %v4077
        %v4417 = vunpack.c.l.b16 %v4078
        %v4418 = vunpack.c.h.b16 %v4078
        %v4419 = vunpack.c.l.b16 %v4079
        %v4420 = vunpack.c.h.b16 %v4079
        %v4421 = vunpack.c.l.b16 %v4080
        %v4422 = vunpack.c.h.b16 %v4080
        %v4423 = vunpack.c.l.b16 %v4081
        %v4424 = vunpack.c.h.b16 %v4081
        %v4425 = vunpack.c.l.b16 %v4082
        %v4426 = vunpack.c.h.b16 %v4082
        %v4427 = vunpack.c.l.b16 %v4083
        %v4428 = vunpack.c.h.b16 %v4083
        %v4429 = vunpack.c.l.b16 %v4084
        %v4430 = vunpack.c.h.b16 %v4084
        %v4431 = vunpack.c.l.b16 %v4085
        %v4432 = vunpack.c.h.b16 %v4085
        %v4433 = vunpack.c.l.b16 %v4086
        %v4434 = vunpack.c.h.b16 %v4086
        %v4435 = vunpack.c.l.b16 %v4087
        %v4436 = vunpack.c.h.b16 %v4087
        %v4437 = vunpack.c.l.b16 %v4088
        %v4438 = vunpack.c.h.b16 %v4088
        %v4439 = vunpack.c.l.b16 %v4089
        %v4440 = vunpack.c.h.b16 %v4089
        %v4441 = vunpack.c.l.b16 %v4090
        %v4442 = vunpack.c.h.b16 %v4090
        %v4443 = vunpack.c.l.b16 %v4091
        %v4444 = vunpack.c.h.b16 %v4091
        %v4445 = vunpack.c.l.b16 %v4092
        %v4446 = vunpack.c.h.b16 %v4092
        %v4447 = vunpack.c.l.b16 %v4093
        %v4448 = vunpack.c.h.b16 %v4093
        %v4449 = vunpack.c.l.b16 %v4094
        %v4450 = vunpack.c.h.b16 %v4094
        %v4451 = vunpack.c.l.b16 %v4095
        %v4452 = vunpack.c.h.b16 %v4095
        %v4453 = vunpack.c.l.b16 %v4096
        %v4454 = vunpack.c.h.b16 %v4096
        %v4455 = vunpack.c.l.b16 %v4097
        %v4456 = vunpack.c.h.b16 %v4097
        %v4457 = vunpack.c.l.b16 %v4098
        %v4458 = vunpack.c.h.b16 %v4098
        %v4459 = vunpack.c.l.b16 %v4099
        %v4460 = vunpack.c.h.b16 %v4099
        %v4461 = vunpack.c.l.b16 %v4100
        %v4462 = vunpack.c.h.b16 %v4100
        %v4463 = vunpack.c.l.b16 %v4101
        %v4464 = vunpack.c.h.b16 %v4101
        %v4465 = vunpack.c.l.b16 %v4102
        %v4466 = vunpack.c.h.b16 %v4102
        %v4467 = vunpack.c.l.b16 %v4103
        %v4468 = vunpack.c.h.b16 %v4103
        %v4469 = vunpack.c.l.b16 %v4104
        %v4470 = vunpack.c.h.b16 %v4104
        %v4471 = vunpack.c.l.b16 %v4105
        %v4472 = vunpack.c.h.b16 %v4105
        %v4473 = vunpack.c.l.b16 %v4106
        %v4474 = vunpack.c.h.b16 %v4106
        %v4475 = vunpack.c.l.b16 %v4107
        %v4476 = vunpack.c.h.b16 %v4107
        %v4477 = vunpack.c.l.b16 %v4108
        %v4478 = vunpack.c.h.b16 %v4108
        %v4479 = vunpack.c.l.b16 %v4109
        %v4480 = vunpack.c.h.b16 %v4109
        %v4481 = vunpack.c.l.b16 %v4110
        %v4482 = vunpack.c.h.b16 %v4110
        %v4483 = vunpack.c.l.b16 %v4111
        %v4484 = vunpack.c.h.b16 %v4111
        %v4485 = vunpack.c.l.b16 %v4112
        %v4486 = vunpack.c.h.b16 %v4112
        %v4487 = vunpack.c.l.b16 %v4113
        %v4488 = vunpack.c.h.b16 %v4113
        %v4489 = vunpack.c.l.b16 %v4114
        %v4490 = vunpack.c.h.b16 %v4114
        %v4491 = vunpack.c.l.b16 %v4115
        %v4492 = vunpack.c.h.b16 %v4115
        %v4493 = vunpack.c.l.b16 %v4116
        %v4494 = vunpack.c.h.b16 %v4116
        %v4495 = vunpack.c.l.b16 %v4117
        %v4496 = vunpack.c.h.b16 %v4117
        %v4497 = vunpack.c.l.b16 %v4118
        %v4498 = vunpack.c.h.b16 %v4118
        %v4499 = vunpack.c.l.b16 %v4119
        %v4500 = vunpack.c.h.b16 %v4119
        %v4501 = vunpack.c.l.b16 %v4120
        %v4502 = vunpack.c.h.b16 %v4120
        %v4503 = vunpack.c.l.b16 %v4121
        %v4504 = vunpack.c.h.b16 %v4121
        %v4505 = vunpack.c.l.b16 %v4122
        %v4506 = vunpack.c.h.b16 %v4122
        %v4507 = vunpack.c.l.b16 %v4123
        %v4508 = vunpack.c.h.b16 %v4123
        %v4509 = vunpack.c.l.b16 %v4124
        %v4510 = vunpack.c.h.b16 %v4124
        %v4511 = vunpack.c.l.b16 %v4125
        %v4512 = vunpack.c.h.b16 %v4125
        %v4513 = vunpack.c.l.b16 %v4126
        %v4514 = vunpack.c.h.b16 %v4126
        %v4515 = vunpack.c.l.b16 %v4127
        %v4516 = vunpack.c.h.b16 %v4127
        %v4517 = vunpack.c.l.b16 %v4128
        %v4518 = vunpack.c.h.b16 %v4128
        %v4519 = vunpack.c.l.b16 %v4129
        %v4520 = vunpack.c.h.b16 %v4129
        %v4521 = vunpack.c.l.b16 %v4130
        %v4522 = vunpack.c.h.b16 %v4130
        %v4523 = vunpack.c.l.b16 %v4131
        %v4524 = vunpack.c.h.b16 %v4131
        %v4525 = vunpack.c.l.b16 %v4132
        %v4526 = vunpack.c.h.b16 %v4132
        %v4527 = vunpack.c.l.b16 %v4133
        %v4528 = vunpack.c.h.b16 %v4133
        %v4529 = vunpack.c.l.b16 %v4134
        %v4530 = vunpack.c.h.b16 %v4134
        %v4531 = vunpack.c.l.b16 %v4135
        %v4532 = vunpack.c.h.b16 %v4135
        %v4533 = vunpack.c.l.b16 %v4136
        %v4534 = vunpack.c.h.b16 %v4136
        %v4535 = vunpack.c.l.b16 %v4137
        %v4536 = vunpack.c.h.b16 %v4137
        %v4537 = vunpack.c.l.b16 %v4138
        %v4538 = vunpack.c.h.b16 %v4138
        %v4539 = vunpack.c.l.b16 %v4139
        %v4540 = vunpack.c.h.b16 %v4139
        %v4541 = vunpack.c.l.b16 %v4140
        %v4542 = vunpack.c.h.b16 %v4140
        %v4543 = vunpack.c.l.b16 %v4141
        %v4544 = vunpack.c.h.b16 %v4141
        %v4545 = vunpack.c.l.b16 %v4142
        %v4546 = vunpack.c.h.b16 %v4142
        %v4547 = vunpack.c.l.b16 %v4143
        %v4548 = vunpack.c.h.b16 %v4143
        %v4549 = vunpack.c.l.b16 %v4144
        %v4550 = vunpack.c.h.b16 %v4144
        %v4551 = vpack.c.b16 %v4299, %v4295
        %v4552 = vpack.c.b16 %v4300, %v4296
        %v4553 = vpack.c.b16 %v4301, %v4297
        %v4554 = vpack.c.b16 %v4302, %v4298
        %v4555 = vpack.c.b16 %v4307, %v4303
        %v4556 = vpack.c.b16 %v4308, %v4304
        %v4557 = vpack.c.b16 %v4309, %v4305
        %v4558 = vpack.c.b16 %v4310, %v4306
        %v4559 = vpack.c.b16 %v4315, %v4311
        %v4560 = vpack.c.b16 %v4316, %v4312
        %v4561 = vpack.c.b16 %v4317, %v4313
        %v4562 = vpack.c.b16 %v4318, %v4314
        %v4563 = vpack.c.b16 %v4323, %v4319
        %v4564 = vpack.c.b16 %v4324, %v4320
        %v4565 = vpack.c.b16 %v4325, %v4321
        %v4566 = vpack.c.b16 %v4326, %v4322
        %v4567 = vpack.c.b16 %v4331, %v4327
        %v4568 = vpack.c.b16 %v4332, %v4328
        %v4569 = vpack.c.b16 %v4333, %v4329
        %v4570 = vpack.c.b16 %v4334, %v4330
        %v4571 = vpack.c.b16 %v4339, %v4335
        %v4572 = vpack.c.b16 %v4340, %v4336
        %v4573 = vpack.c.b16 %v4341, %v4337
        %v4574 = vpack.c.b16 %v4342, %v4338
        %v4575 = vpack.c.b16 %v4347, %v4343
        %v4576 = vpack.c.b16 %v4348, %v4344
        %v4577 = vpack.c.b16 %v4349, %v4345
        %v4578 = vpack.c.b16 %v4350, %v4346
        %v4579 = vpack.c.b16 %v4355, %v4351
        %v4580 = vpack.c.b16 %v4356, %v4352
        %v4581 = vpack.c.b16 %v4357, %v4353
        %v4582 = vpack.c.b16 %v4358, %v4354
        %v4583 = vpack.c.b16 %v4363, %v4359
        %v4584 = vpack.c.b16 %v4364, %v4360
        %v4585 = vpack.c.b16 %v4365, %v4361
        %v4586 = vpack.c.b16 %v4366, %v4362
        %v4587 = vpack.c.b16 %v4371, %v4367
        %v4588 = vpack.c.b16 %v4372, %v4368
        %v4589 = vpack.c.b16 %v4373, %v4369
        %v4590 = vpack.c.b16 %v4374, %v4370
        %v4591 = vpack.c.b16 %v4379, %v4375
        %v4592 = vpack.c.b16 %v4380, %v4376
        %v4593 = vpack.c.b16 %v4381, %v4377
        %v4594 = vpack.c.b16 %v4382, %v4378
        %v4595 = vpack.c.b16 %v4387, %v4383
        %v4596 = vpack.c.b16 %v4388, %v4384
        %v4597 = vpack.c.b16 %v4389, %v4385
        %v4598 = vpack.c.b16 %v4390, %v4386
        %v4599 = vpack.c.b16 %v4395, %v4391
        %v4600 = vpack.c.b16 %v4396, %v4392
        %v4601 = vpack.c.b16 %v4397, %v4393
        %v4602 = vpack.c.b16 %v4398, %v4394
        %v4603 = vpack.c.b16 %v4403, %v4399
        %v4604 = vpack.c.b16 %v4404, %v4400
        %v4605 = vpack.c.b16 %v4405, %v4401
        %v4606 = vpack.c.b16 %v4406, %v4402
        %v4607 = vpack.c.b16 %v4411, %v4407
        %v4608 = vpack.c.b16 %v4412, %v4408
        %v4609 = vpack.c.b16 %v4413, %v4409
        %v4610 = vpack.c.b16 %v4414, %v4410
        %v4611 = vpack.c.b16 %v4419, %v4415
        %v4612 = vpack.c.b16 %v4420, %v4416
        %v4613 = vpack.c.b16 %v4421, %v4417
        %v4614 = vpack.c.b16 %v4422, %v4418
        %v4615 = vpack.c.b16 %v4427, %v4423
        %v4616 = vpack.c.b16 %v4428, %v4424
        %v4617 = vpack.c.b16 %v4429, %v4425
        %v4618 = vpack.c.b16 %v4430, %v4426
        %v4619 = vpack.c.b16 %v4435, %v4431
        %v4620 = vpack.c.b16 %v4436, %v4432
        %v4621 = vpack.c.b16 %v4437, %v4433
        %v4622 = vpack.c.b16 %v4438, %v4434
        %v4623 = vpack.c.b16 %v4443, %v4439
        %v4624 = vpack.c.b16 %v4444, %v4440
        %v4625 = vpack.c.b16 %v4445, %v4441
        %v4626 = vpack.c.b16 %v4446, %v4442
        %v4627 = vpack.c.b16 %v4451, %v4447
        %v4628 = vpack.c.b16 %v4452, %v4448
        %v4629 = vpack.c.b16 %v4453, %v4449
        %v4630 = vpack.c.b16 %v4454, %v4450
        %v4631 = vpack.c.b16 %v4459, %v4455
        %v4632 = vpack.c.b16 %v4460, %v4456
        %v4633 = vpack.c.b16 %v4461, %v4457
        %v4634 = vpack.c.b16 %v4462, %v4458
        %v4635 = vpack.c.b16 %v4467, %v4463
        %v4636 = vpack.c.b16 %v4468, %v4464
        %v4637 = vpack.c.b16 %v4469, %v4465
        %v4638 = vpack.c.b16 %v4470, %v4466
        %v4639 = vpack.c.b16 %v4475, %v4471
        %v4640 = vpack.c.b16 %v4476, %v4472
        %v4641 = vpack.c.b16 %v4477, %v4473
        %v4642 = vpack.c.b16 %v4478, %v4474
        %v4643 = vpack.c.b16 %v4483, %v4479
        %v4644 = vpack.c.b16 %v4484, %v4480
        %v4645 = vpack.c.b16 %v4485, %v4481
        %v4646 = vpack.c.b16 %v4486, %v4482
        %v4647 = vpack.c.b16 %v4491, %v4487
        %v4648 = vpack.c.b16 %v4492, %v4488
        %v4649 = vpack.c.b16 %v4493, %v4489
        %v4650 = vpack.c.b16 %v4494, %v4490
        %v4651 = vpack.c.b16 %v4499, %v4495
        %v4652 = vpack.c.b16 %v4500, %v4496
        %v4653 = vpack.c.b16 %v4501, %v4497
        %v4654 = vpack.c.b16 %v4502, %v4498
        %v4655 = vpack.c.b16 %v4507, %v4503
        %v4656 = vpack.c.b16 %v4508, %v4504
        %v4657 = vpack.c.b16 %v4509, %v4505
        %v4658 = vpack.c.b16 %v4510, %v4506
        %v4659 = vpack.c.b16 %v4515, %v4511
        %v4660 = vpack.c.b16 %v4516, %v4512
        %v4661 = vpack.c.b16 %v4517, %v4513
        %v4662 = vpack.c.b16 %v4518, %v4514
        %v4663 = vpack.c.b16 %v4523, %v4519
        %v4664 = vpack.c.b16 %v4524, %v4520
        %v4665 = vpack.c.b16 %v4525, %v4521
        %v4666 = vpack.c.b16 %v4526, %v4522
        %v4667 = vpack.c.b16 %v4531, %v4527
        %v4668 = vpack.c.b16 %v4532, %v4528
        %v4669 = vpack.c.b16 %v4533, %v4529
        %v4670 = vpack.c.b16 %v4534, %v4530
        %v4671 = vpack.c.b16 %v4539, %v4535
        %v4672 = vpack.c.b16 %v4540, %v4536
        %v4673 = vpack.c.b16 %v4541, %v4537
        %v4674 = vpack.c.b16 %v4542, %v4538
        %v4675 = vpack.c.b16 %v4547, %v4543
        %v4676 = vpack.c.b16 %v4548, %v4544
        %v4677 = vpack.c.b16 %v4549, %v4545
        %v4678 = vpack.c.b16 %v4550, %v4546
        %4807 = vmatprep.subr.bf16.mxu0 %v4552
        %4808 = vmatpush1.bf16.msra.mxu0 %v4551
        %4809 = vmatprep.subr.bf16.mxu0 %v4556
        %4810 = vmatpush1.bf16.msra.mxu0 %v4555
        %4811 = vmatprep.subr.bf16.mxu0 %v4560
        %4812 = vmatpush1.bf16.msra.mxu0 %v4559
        %4813 = vmatprep.subr.bf16.mxu0 %v4564
        %4814 = vmatpush1.bf16.msra.mxu0 %v4563
        %4815 = vmatprep.subr.bf16.mxu0 %v4568
        %4816 = vmatpush1.bf16.msra.mxu0 %v4567
        %4817 = vmatprep.subr.bf16.mxu0 %v4572
        %4818 = vmatpush1.bf16.msra.mxu0 %v4571
        %4819 = vmatprep.subr.bf16.mxu0 %v4576
        %4820 = vmatpush1.bf16.msra.mxu0 %v4575
        %4821 = vmatprep.subr.bf16.mxu0 %v4580
        %4822 = vmatpush1.bf16.msra.mxu0 %v4579
        %4823 = vmatprep.subr.bf16.mxu0 %v4584
        %4824 = vmatpush1.bf16.msra.mxu0 %v4583
        %4825 = vmatprep.subr.bf16.mxu0 %v4588
        %4826 = vmatpush1.bf16.msra.mxu0 %v4587
        %4827 = vmatprep.subr.bf16.mxu0 %v4592
        %4828 = vmatpush1.bf16.msra.mxu0 %v4591
        %4829 = vmatprep.subr.bf16.mxu0 %v4596
        %4830 = vmatpush1.bf16.msra.mxu0 %v4595
        %4831 = vmatprep.subr.bf16.mxu0 %v4600
        %4832 = vmatpush1.bf16.msra.mxu0 %v4599
        %4833 = vmatprep.subr.bf16.mxu0 %v4604
        %4834 = vmatpush1.bf16.msra.mxu0 %v4603
        %4835 = vmatprep.subr.bf16.mxu0 %v4608
        %4836 = vmatpush1.bf16.msra.mxu0 %v4607
        %4837 = vmatprep.subr.bf16.mxu0 %v4612
        %4838 = vmatpush1.bf16.msra.mxu0 %v4611
        %4839 = vmatprep.mubr.bf16.mxu0 %v4014
        %4840 = vmatmul.mubr.bf16.gmra.mrb[0].mxu0 %v4013
        %v4841 = vpop.f32.mrb[0].mxu0
        %v4842 = vadd.f32 %v4150, %v4841
        %v4843 = vpop.f32.mrb[0].mxu0
        %v4844 = vadd.f32 %v4154, %v4843
        %v4845 = vpop.f32.mrb[0].mxu0
        %v4846 = vpop.f32.mrb[0].mxu0
        %4847 = vdwg.mxu0
        %4848 = vmatprep.subr.bf16.mxu0 %v4616
        %4849 = vmatpush1.bf16.msra.mxu0 %v4615
        %4850 = vmatprep.subr.bf16.mxu0 %v4620
        %4851 = vmatpush1.bf16.msra.mxu0 %v4619
        %4852 = vmatprep.subr.bf16.mxu0 %v4624
        %4853 = vmatpush1.bf16.msra.mxu0 %v4623
        %4854 = vmatprep.subr.bf16.mxu0 %v4628
        %4855 = vmatpush1.bf16.msra.mxu0 %v4627
        %4856 = vmatprep.subr.bf16.mxu0 %v4632
        %4857 = vmatpush1.bf16.msra.mxu0 %v4631
        %4858 = vmatprep.subr.bf16.mxu0 %v4636
        %4859 = vmatpush1.bf16.msra.mxu0 %v4635
        %4860 = vmatprep.subr.bf16.mxu0 %v4640
        %4861 = vmatpush1.bf16.msra.mxu0 %v4639
        %4862 = vmatprep.subr.bf16.mxu0 %v4644
        %4863 = vmatpush1.bf16.msra.mxu0 %v4643
        %4864 = vmatprep.subr.bf16.mxu0 %v4648
        %4865 = vmatpush1.bf16.msra.mxu0 %v4647
        %4866 = vmatprep.subr.bf16.mxu0 %v4652
        %4867 = vmatpush1.bf16.msra.mxu0 %v4651
        %4868 = vmatprep.subr.bf16.mxu0 %v4656
        %4869 = vmatpush1.bf16.msra.mxu0 %v4655
        %4870 = vmatprep.subr.bf16.mxu0 %v4660
        %4871 = vmatpush1.bf16.msra.mxu0 %v4659
        %4872 = vmatprep.subr.bf16.mxu0 %v4664
        %4873 = vmatpush1.bf16.msra.mxu0 %v4663
        %4874 = vmatprep.subr.bf16.mxu0 %v4668
        %4875 = vmatpush1.bf16.msra.mxu0 %v4667
        %4876 = vmatprep.subr.bf16.mxu0 %v4672
        %4877 = vmatpush1.bf16.msra.mxu0 %v4671
        %4878 = vmatprep.subr.bf16.mxu0 %v4676
        %4879 = vmatpush1.bf16.msra.mxu0 %v4675
        %4880 = vmatprep.mubr.bf16.mxu0 %v4016
        %4881 = vmatmul.mubr.bf16.gmra.mrb[0].mxu0 %v4015
        %v4882 = vpop.f32.mrb[0].mxu0
        %v4883 = vadd.f32 %v4842, %v4882
        %v4884 = vpop.f32.mrb[0].mxu0
        %v4885 = vadd.f32 %v4844, %v4884
        %v4886 = vpop.f32.mrb[0].mxu0
        %v4887 = vpop.f32.mrb[0].mxu0
        %4888 = vdwg.mxu0
        %4889 = vmatprep.subr.bf16.mxu0 %v4554
        %4890 = vmatpush1.bf16.msra.mxu0 %v4553
        %4891 = vmatprep.subr.bf16.mxu0 %v4558
        %4892 = vmatpush1.bf16.msra.mxu0 %v4557
        %4893 = vmatprep.subr.bf16.mxu0 %v4562
        %4894 = vmatpush1.bf16.msra.mxu0 %v4561
        %4895 = vmatprep.subr.bf16.mxu0 %v4566
        %4896 = vmatpush1.bf16.msra.mxu0 %v4565
        %4897 = vmatprep.subr.bf16.mxu0 %v4570
        %4898 = vmatpush1.bf16.msra.mxu0 %v4569
        %4899 = vmatprep.subr.bf16.mxu0 %v4574
        %4900 = vmatpush1.bf16.msra.mxu0 %v4573
        %4901 = vmatprep.subr.bf16.mxu0 %v4578
        %4902 = vmatpush1.bf16.msra.mxu0 %v4577
        %4903 = vmatprep.subr.bf16.mxu0 %v4582
        %4904 = vmatpush1.bf16.msra.mxu0 %v4581
        %4905 = vmatprep.subr.bf16.mxu0 %v4586
        %4906 = vmatpush1.bf16.msra.mxu0 %v4585
        %4907 = vmatprep.subr.bf16.mxu0 %v4590
        %4908 = vmatpush1.bf16.msra.mxu0 %v4589
        %4909 = vmatprep.subr.bf16.mxu0 %v4594
        %4910 = vmatpush1.bf16.msra.mxu0 %v4593
        %4911 = vmatprep.subr.bf16.mxu0 %v4598
        %4912 = vmatpush1.bf16.msra.mxu0 %v4597
        %4913 = vmatprep.subr.bf16.mxu0 %v4602
        %4914 = vmatpush1.bf16.msra.mxu0 %v4601
        %4915 = vmatprep.subr.bf16.mxu0 %v4606
        %4916 = vmatpush1.bf16.msra.mxu0 %v4605
        %4917 = vmatprep.subr.bf16.mxu0 %v4610
        %4918 = vmatpush1.bf16.msra.mxu0 %v4609
        %4919 = vmatprep.subr.bf16.mxu0 %v4614
        %4920 = vmatpush1.bf16.msra.mxu0 %v4613
        %4921 = vmatprep.mubr.bf16.mxu0 %v4014
        %4922 = vmatmul.mubr.bf16.gmra.mrb[0].mxu0 %v4013
        %v4923 = vpop.f32.mrb[0].mxu0
        %v4924 = vadd.f32 %v4158, %v4923
        %v4925 = vpop.f32.mrb[0].mxu0
        %v4926 = vadd.f32 %v4162, %v4925
        %v4927 = vpop.f32.mrb[0].mxu0
        %v4928 = vpop.f32.mrb[0].mxu0
        %4929 = vdwg.mxu0
        %4930 = vmatprep.subr.bf16.mxu0 %v4618
        %4931 = vmatpush1.bf16.msra.mxu0 %v4617
        %4932 = vmatprep.subr.bf16.mxu0 %v4622
        %4933 = vmatpush1.bf16.msra.mxu0 %v4621
        %4934 = vmatprep.subr.bf16.mxu0 %v4626
        %4935 = vmatpush1.bf16.msra.mxu0 %v4625
        %4936 = vmatprep.subr.bf16.mxu0 %v4630
        %4937 = vmatpush1.bf16.msra.mxu0 %v4629
        %4938 = vmatprep.subr.bf16.mxu0 %v4634
        %4939 = vmatpush1.bf16.msra.mxu0 %v4633
        %4940 = vmatprep.subr.bf16.mxu0 %v4638
        %4941 = vmatpush1.bf16.msra.mxu0 %v4637
        %4942 = vmatprep.subr.bf16.mxu0 %v4642
        %4943 = vmatpush1.bf16.msra.mxu0 %v4641
        %4944 = vmatprep.subr.bf16.mxu0 %v4646
        %4945 = vmatpush1.bf16.msra.mxu0 %v4645
        %4946 = vmatprep.subr.bf16.mxu0 %v4650
        %4947 = vmatpush1.bf16.msra.mxu0 %v4649
        %4948 = vmatprep.subr.bf16.mxu0 %v4654
        %4949 = vmatpush1.bf16.msra.mxu0 %v4653
        %4950 = vmatprep.subr.bf16.mxu0 %v4658
        %4951 = vmatpush1.bf16.msra.mxu0 %v4657
        %4952 = vmatprep.subr.bf16.mxu0 %v4662
        %4953 = vmatpush1.bf16.msra.mxu0 %v4661
        %4954 = vmatprep.subr.bf16.mxu0 %v4666
        %4955 = vmatpush1.bf16.msra.mxu0 %v4665
        %4956 = vmatprep.subr.bf16.mxu0 %v4670
        %4957 = vmatpush1.bf16.msra.mxu0 %v4669
        %4958 = vmatprep.subr.bf16.mxu0 %v4674
        %4959 = vmatpush1.bf16.msra.mxu0 %v4673
        %4960 = vmatprep.subr.bf16.mxu0 %v4678
        %4961 = vmatpush1.bf16.msra.mxu0 %v4677
        %4962 = vmatprep.mubr.bf16.mxu0 %v4016
        %4963 = vmatmul.mubr.bf16.gmra.mrb[0].mxu0 %v4015
        %v4964 = vpop.f32.mrb[0].mxu0
        %v4965 = vadd.f32 %v4924, %v4964
        %v4966 = vpop.f32.mrb[0].mxu0
        %v4967 = vadd.f32 %v4926, %v4966
        %v4968 = vpop.f32.mrb[0].mxu0
        %v4969 = vpop.f32.mrb[0].mxu0
        %4970 = vdwg.mxu0
        %v4971 = vmul.f32 %v4883, %v4883
        %v4972 = vmul.f32 %v4885, %v4885
        %v4973 = vmul.f32 %v4965, %v4965
        %v4974 = vmul.f32 %v4967, %v4967
        %v4975 = vadd.f32 %v4971, %v4972
        %v4976 = vadd.f32 %v4975, %v4973
        %v4977 = vadd.f32 %v4976, %v4974
        %4978 = vadd.xlane.f32.xlu0 %v4977
        %v4979 = vpop.xlane.xlu0 %4978
        %v4980 = vadd.f32 %v4979, 1e-12
        %v4981 = vrsqrt.pop %v4980
        %v4982 = vmul.f32 %v4883, %v4981
        %v4983 = vmul.f32 %v4885, %v4981
        %v4984 = vmul.f32 %v4965, %v4981
        %v4985 = vmul.f32 %v4967, %v4981
        %4986 = vst [vmem:[%s927] sm:$0xff] %v4982
        %4987 = vst [vmem:[%s927 + $0x8] sm:$0xff] %v4983
        %4988 = vst [vmem:[%s927 + $0x10] sm:$0xff] %v4984
        %4989 = vst [vmem:[%s927 + $0x18] sm:$0xff] %v4985
        %s4990 = sand.u32 %s567, 1
        %s4991 = scalar_lea.sflag [#allocation4], %s4990
        %s4992 = sand.u32 %s567, 1
        %s4993 = smul.addr %s4992, 8
        %s4994 = scalar_lea.vmem [#allocation11], %s4993
        %s4995 = sand.u32 %s593, 1
        %s4996 = sand.u32 %s593, 1
        %s4997 = smul.addr %s4996, 16
        %s4998 = scalar_lea.vmem [#allocation12], %s4997
        %p4999 = scmp.lt.s32.totalorder %s45, 1
        %s5000 = scalar_select %p4999, %s45, 1
        %s5001 = scalar_lea.vmem %s26, %s5000
        %p5002 = scmp.lt.s32.totalorder %s45, 1
        %s5003 = scalar_select %p5002, %s45, 1
        %s5004 = smul.addr %s5003, 4
        %s5005 = smul.addr %s5004, 8
        %s5006 = scalar_lea.vmem %s27, %s5005
        // Predicated region
        $region144: #{visn_lang_forward.1} parent=115 // pred_check
          %p5007 = pneg %p577
        $region145: #{visn_lang_forward.1} parent=115 // pred_check_branch
          %5009 = sbr.rel (%p5007) target = $region147
        $region146: #{visn_lang_forward.1} parent=115 // pred_region
          %s5011 = ssub.s32 128, 128
          %5012 = vsyncadd %s4991, %s5011
          %s5013 = smul.addr %s45, 128
          %s5014 = scalar_lea.hbm %s24, %s5013
          %s5016 = sshll.u32 %s4994, 4
          %s5017 = int_to_ptr.vmem [resolvable:$true] %s5016
          %5019 = dma.vmem_to_hbm [thread:$0]  %s5017, 128, %s5014, %s4991
        $region147: #{visn_lang_forward.1} parent=115 // pred_fallthru
          _
        // Predicated region
        $region148: #{visn_lang_forward.1} parent=115 // pred_check
          %p5020 = pneg %p603
        $region149: #{visn_lang_forward.1} parent=115 // pred_check_branch
          %5022 = sbr.rel (%p5020) target = $region151
        $region150: #{visn_lang_forward.1} parent=115 // pred_region
          %s5023 = smul.addr %s45, 8
          %s5024 = scalar_lea.vmem %s25, %s5023
          // Predicated region
          $region152: #{visn_lang_forward.1} parent=150 // pred_check
            _
          $region153: #{visn_lang_forward.1} parent=150 // pred_check_branch
            %5026 = sbr.rel (0) target = $region155
          $region154: #{visn_lang_forward.1} parent=150 // pred_region
            // Predicated region
            $region156: #{visn_lang_forward.1} parent=154 // pred_check
              _
            $region157: #{visn_lang_forward.1} parent=154 // pred_check_branch
              %5028 = sbr.rel (0) target = $region159
            $region158: #{visn_lang_forward.1} parent=154 // pred_region
              // Predicated region
              $region171: #{visn_lang_forward.1} parent=158 // pred_check
                _
              $region172: #{visn_lang_forward.1} parent=158 // pred_check_branch
                %5045 = sbr.rel (0) target = $region174
              $region173: #{visn_lang_forward.1} parent=158 // pred_region
                loop: start=0, step=1, limit=1
                $region175: #{visn_lang_forward.1} parent=173 // loop_pre_header
                  _
                $region176: #{visn_lang_forward.1} parent=173 // loop_header
                  %s5047 = sphi 0, %s5051
                  %p5048 = scmp.ge.s32.totalorder %s5047, 1
                  %s5052 = sphi %s4998, %s4998
                  %s5053 = sphi %s5024, %s5024
                $region177: #{visn_lang_forward.1} parent=173 // loop_header_branch
                  %5050 = sbr.rel (%p5048) target = $region181
                $region178: #{visn_lang_forward.1} parent=173 // loop_body
                  %v5054 = vld [vmem:[%s5052] sm:$0xff]
                  %5055 = vst [vmem:[%s5053] sm:$0xff] %v5054
                  %v5056 = vld [vmem:[%s5052 + $0x8] sm:$0xff]
                  %5057 = vst [vmem:[%s5053 + $0x10] sm:$0xff] %v5056
                $region179: #{visn_lang_forward.1} parent=173 // loop_footer
                  %s5051 = sadd.s32 1, %s5047
                $region180: #{visn_lang_forward.1} parent=173 // loop_footer_branch
                  %5046 = sbr.rel target = $region176
                $region181: #{visn_lang_forward.1} parent=173 // loop_exit
                  _
              $region174: #{visn_lang_forward.1} parent=158 // pred_fallthru
                _
              // Predicated region
              $region182: #{visn_lang_forward.1} parent=158 // pred_check
                _
              $region183: #{visn_lang_forward.1} parent=158 // pred_check_branch
                %5059 = sbr.rel target = $region185
              $region184: #{visn_lang_forward.1} parent=158 // pred_region
                _
              $region185: #{visn_lang_forward.1} parent=158 // pred_fallthru
                _
            $region159: #{visn_lang_forward.1} parent=154 // pred_fallthru
              _
            // Predicated region
            $region160: #{visn_lang_forward.1} parent=154 // pred_check
              _
            $region161: #{visn_lang_forward.1} parent=154 // pred_check_branch
              %5030 = sbr.rel target = $region163
            $region162: #{visn_lang_forward.1} parent=154 // pred_region
              loop: start=0, step=1, limit=1
              $region164: #{visn_lang_forward.1} parent=162 // loop_pre_header
                _
              $region165: #{visn_lang_forward.1} parent=162 // loop_header
                %s5033 = sphi 0, %s5037
                %p5034 = scmp.ge.s32.totalorder %s5033, 1
                %s5038 = sphi %s4998, %s4998
                %s5039 = sphi %s5024, %s5024
              $region166: #{visn_lang_forward.1} parent=162 // loop_header_branch
                %5036 = sbr.rel (%p5034) target = $region170
              $region167: #{visn_lang_forward.1} parent=162 // loop_body
                %v5040 = vld [vmem:[%s5038] sm:$0xff]
                %5041 = vst [vmem:[%s5039] sm:$0xff] %v5040
                %v5042 = vld [vmem:[%s5038 + $0x8] sm:$0xff]
                %5043 = vst [vmem:[%s5039 + $0x10] sm:$0xff] %v5042
              $region168: #{visn_lang_forward.1} parent=162 // loop_footer
                %s5037 = sadd.s32 1, %s5033
              $region169: #{visn_lang_forward.1} parent=162 // loop_footer_branch
                %5032 = sbr.rel target = $region165
              $region170: #{visn_lang_forward.1} parent=162 // loop_exit
                _
            $region163: #{visn_lang_forward.1} parent=154 // pred_fallthru
              _
          $region155: #{visn_lang_forward.1} parent=150 // pred_fallthru
            _
          %5060 = vnop
        $region151: #{visn_lang_forward.1} parent=115 // pred_fallthru
          _
        // Predicated region
        $region186: #{visn_lang_forward.1} parent=115 // pred_check
          %p5061 = pneg %p629
        $region187: #{visn_lang_forward.1} parent=115 // pred_check_branch
          %5063 = sbr.rel (%p5061) target = $region189
        $region188: #{visn_lang_forward.1} parent=115 // pred_region
          _
        $region189: #{visn_lang_forward.1} parent=115 // pred_fallthru
          _
        // Predicated region
        $region190: #{visn_lang_forward.1} parent=115 // pred_check
          %p5064 = pneg %p655
        $region191: #{visn_lang_forward.1} parent=115 // pred_check_branch
          %5066 = sbr.rel (%p5064) target = $region193
        $region192: #{visn_lang_forward.1} parent=115 // pred_region
          _
        $region193: #{visn_lang_forward.1} parent=115 // pred_fallthru
          _
      $region116: #{visn_lang_forward.1} parent=5 // pred_fallthru
        _
      %p5067 = scmp.le.s32.totalorder 2, %s40
      // Predicated region
      $region194: #{visn_lang_forward.1} parent=5 // pred_check
        %p5068 = pneg %p5067
      $region195: #{visn_lang_forward.1} parent=5 // pred_check_branch
        %5070 = sbr.rel (%p5068) target = $region197
      $region196: #{visn_lang_forward.1} parent=5 // pred_region
        %s5071 = ssub.s32 %s40, 2
        // Predicated region
        $region198: #{visn_lang_forward.1} parent=196 // pred_check
          %p5072 = pneg %p583
        $region199: #{visn_lang_forward.1} parent=196 // pred_check_branch
          %5074 = sbr.rel (%p5072) target = $region201
        $region200: #{visn_lang_forward.1} parent=196 // pred_region
          %s5075 = sand.u32 %s568, 1
          %s5076 = scalar_lea.sflag [#allocation4], %s5075
          %s5077 = sand.u32 %s568, 1
          %s5078 = smul.addr %s5077, 8
          %s5079 = scalar_lea.vmem [#allocation11], %s5078
          %5080 = dma.done %s5076, 128
        $region201: #{visn_lang_forward.1} parent=196 // pred_fallthru
          _
        // Predicated region
        $region202: #{visn_lang_forward.1} parent=196 // pred_check
          %p5081 = pneg %p609
        $region203: #{visn_lang_forward.1} parent=196 // pred_check_branch
          %5083 = sbr.rel (%p5081) target = $region205
        $region204: #{visn_lang_forward.1} parent=196 // pred_region
          %s5084 = sand.u32 %s594, 1
          %s5085 = sand.u32 %s594, 1
          %s5086 = smul.addr %s5085, 16
          %s5087 = scalar_lea.vmem [#allocation12], %s5086
        $region205: #{visn_lang_forward.1} parent=196 // pred_fallthru
          _
        // Predicated region
        $region206: #{visn_lang_forward.1} parent=196 // pred_check
          %p5088 = pneg %p635
        $region207: #{visn_lang_forward.1} parent=196 // pred_check_branch
          %5090 = sbr.rel (%p5088) target = $region209
        $region208: #{visn_lang_forward.1} parent=196 // pred_region
          %p5091 = scmp.lt.s32.totalorder %s46, 1
          %s5092 = scalar_select %p5091, %s46, 1
          %s5093 = scalar_lea.vmem %s26, %s5092
        $region209: #{visn_lang_forward.1} parent=196 // pred_fallthru
          _
        // Predicated region
        $region210: #{visn_lang_forward.1} parent=196 // pred_check
          %p5094 = pneg %p661
        $region211: #{visn_lang_forward.1} parent=196 // pred_check_branch
          %5096 = sbr.rel (%p5094) target = $region213
        $region212: #{visn_lang_forward.1} parent=196 // pred_region
          %p5097 = scmp.lt.s32.totalorder %s46, 1
          %s5098 = scalar_select %p5097, %s46, 1
          %s5099 = smul.addr %s5098, 4
          %s5100 = smul.addr %s5099, 8
          %s5101 = scalar_lea.vmem %s27, %s5100
        $region213: #{visn_lang_forward.1} parent=196 // pred_fallthru
          _
      $region197: #{visn_lang_forward.1} parent=5 // pred_fallthru
        _
    $region6: #{visn_lang_forward.1} parent=1 // loop_footer
      %s44 = sadd.s32 1, %s40
    $region7: #{visn_lang_forward.1} parent=1 // loop_footer_branch
      %39 = sbr.rel target = $region3
    $region8: #{visn_lang_forward.1} parent=1 // loop_exit
      _
    %5102 = vsyncpa [#allocation3], 1
    %s5103 = scalar_lea.sflag [#allocation3], 1
    %5104 = vsyncpa %s5103, 1
    %5105 = vsyncpa [#allocation6], 1
    %5106 = vsyncpa [#allocation9], 1
    %5107 = vsyncpa [#allocation4], 1
    %s5108 = scalar_lea.sflag [#allocation4], 1
    %5109 = vsyncpa %s5108, 1

</llo_original>
